<compile_context>
chip_gen: v5e
topology: v5e:2x2
jax: 0.10.0
libtpu: 0.0.40
codegen_flags: <defaults>
</compile_context>

<pallas_src>
import jax
import jax.numpy as jnp
from jax.experimental import pallas as pl
from jax.experimental.pallas import tpu as pltpu

HIDDEN1_UNITS = 400
HIDDEN2_UNITS = 400
HIDDEN3_UNITS = 400


def _softplus(z):
    # torch.nn.functional.softplus(z) == log(1 + exp(z)); logaddexp is the stable form.
    return jnp.logaddexp(z, 0.0)


def penn_kernel(
    x_ref,            # (B, D_in)                f32
    w1_ref, b1_ref,   # (N, D_in, H1), (N, 1, H1) bf16
    w2_ref, b2_ref,   # (N, H1, H2),   (N, 1, H2) bf16
    w3_ref, b3_ref,   # (N, H2, H3),   (N, 1, H3) bf16
    w4_ref, b4_ref,   # (N, H3, 2S),   (N, 1, 2S) bf16
    maxlv_ref,        # (1, 2S) f32  (front-padded; only lanes >= S are used)
    minlv_ref,        # (1, 2S) f32
    out_ref,          # (N, B, 2S) f32  -> [mean | logvar]
):
    num_nets = w1_ref.shape[0]
    batch = x_ref.shape[0]
    two_s = out_ref.shape[-1]
    state_dim = two_s // 2

    x = x_ref[...].astype(jnp.bfloat16)
    max_lv = maxlv_ref[...]          # (1, 2S), broadcasts over batch
    min_lv = minlv_ref[...]

    # Hoisted lane mask: lane >= state_dim  <=>  this column is a logvar column.
    lane = jax.lax.broadcasted_iota(jnp.int32, (batch, two_s), 1)
    is_logvar = lane >= state_dim

    # num_nets is tiny (3); a static unrolled loop keeps everything in VMEM with
    # no per-step pipeline overhead.
    for n in range(num_nets):
        h = jnp.dot(x, w1_ref[n], preferred_element_type=jnp.float32) + b1_ref[n]
        h = jnp.maximum(h, 0.0).astype(jnp.bfloat16)
        h = jnp.dot(h, w2_ref[n], preferred_element_type=jnp.float32) + b2_ref[n]
        h = jnp.maximum(h, 0.0).astype(jnp.bfloat16)
        h = jnp.dot(h, w3_ref[n], preferred_element_type=jnp.float32) + b3_ref[n]
        h = jnp.maximum(h, 0.0).astype(jnp.bfloat16)
        out = jnp.dot(h, w4_ref[n], preferred_element_type=jnp.float32) + b4_ref[n]

        # Apply the softplus bounds to every lane (cheap, EUP) and select:
        # mean lanes pass `out` through untouched, logvar lanes take the bounded value.
        lv = max_lv - _softplus(max_lv - out)
        lv = min_lv + _softplus(lv - min_lv)
        out_ref[n] = jnp.where(is_logvar, lv, out).astype(out_ref.dtype)


def penn_forward(x, params, max_logvar, min_logvar):
    """Run the full ensemble forward pass.

    x:          (B, state_dim + action_dim) float32
    params:     dict of stacked per-net bf16 weights (leading dim = num_nets)
                  w_i: (num_nets, in, out), b_i: (num_nets, 1, out)
    max_logvar: (1, state_dim) float32
    min_logvar: (1, state_dim) float32

    Returns (mean, logvar) each of shape (num_nets, B, state_dim) float32.
    """
    w1, b1 = params["w1"], params["b1"]
    w2, b2 = params["w2"], params["b2"]
    w3, b3 = params["w3"], params["b3"]
    w4, b4 = params["w4"], params["b4"]

    num_nets = w1.shape[0]
    B, d_in = x.shape
    h1 = w1.shape[2]
    h2 = w2.shape[2]
    h3 = w3.shape[2]
    two_s = w4.shape[2]
    state_dim = two_s // 2

    # Pad the logvar bounds to (1, 2S): the first S lanes are never selected,
    # their value only has to stay finite (zeros are fine).
    pad = jnp.zeros((1, state_dim), jnp.float32)
    maxlv_pad = jnp.concatenate([pad, max_logvar.astype(jnp.float32)], axis=1)
    minlv_pad = jnp.concatenate([pad, min_logvar.astype(jnp.float32)], axis=1)

    # Advisory cost estimate so XLA can schedule/overlap around the custom call.
    flops = 2 * num_nets * B * (d_in * h1 + h1 * h2 + h2 * h3 + h3 * two_s)
    transcendentals = 2 * num_nets * B * two_s  # two softplus (exp/log) passes
    weight_bytes = sum(int(v.size) * v.dtype.itemsize for v in params.values())
    bytes_accessed = (
        weight_bytes
        + int(x.size) * 4
        + 2 * two_s * 4
        + num_nets * B * two_s * 4
    )

    # grid=() -> no pipeline: every operand is DMA'd once, whole-array, into VMEM.
    vmem = pl.BlockSpec(memory_space=pltpu.MemorySpace.VMEM)

    fused = pl.pallas_call(
        penn_kernel,
        out_shape=jax.ShapeDtypeStruct((num_nets, B, two_s), jnp.float32),
        in_specs=[vmem] * 11,
        out_specs=vmem,
        cost_estimate=pl.CostEstimate(
            flops=flops,
            transcendentals=transcendentals,
            bytes_accessed=bytes_accessed,
        ),
    )(x, w1, b1, w2, b2, w3, b3, w4, b4, maxlv_pad, minlv_pad)

    mean = fused[..., :state_dim]
    logvar = fused[..., state_dim:]
    return mean, logvar


def init_penn_params(key, num_nets, state_dim, action_dim, dtype=jnp.bfloat16):
    """Deterministic synthetic parameter init (stacked over ensemble members).

    Weights/biases are returned in `dtype` (bf16 by default) to halve HBM traffic;
    matmul accumulation stays in f32 inside the kernel.
    """
    d_in = state_dim + action_dim
    layer_sizes = [d_in, HIDDEN1_UNITS, HIDDEN2_UNITS, HIDDEN3_UNITS, 2 * state_dim]
    params = {}
    for li, (a, b) in enumerate(zip(layer_sizes[:-1], layer_sizes[1:]), start=1):
        key, wk, bk = jax.random.split(key, 3)
        scale = 1.0 / jnp.sqrt(jnp.float32(a))
        w = jax.random.uniform(wk, (num_nets, a, b), jnp.float32, minval=-scale, maxval=scale)
        bia = jax.random.uniform(bk, (num_nets, 1, b), jnp.float32, minval=-scale, maxval=scale)
        params[f"w{li}"] = w.astype(dtype)
        params[f"b{li}"] = bia.astype(dtype)
    return params


def penn_reference(x, params, max_logvar, min_logvar):
    """Pure-JAX reference mirroring the PyTorch forward() with the same bf16 weight
    policy / f32 accumulation as the kernel."""
    num_nets = params["w1"].shape[0]
    state_dim = max_logvar.shape[1]
    means, logvars = [], []
    x_b = x.astype(jnp.bfloat16)
    for n in range(num_nets):
        h = x_b
        for li in range(1, 4):
            h = jnp.dot(h, params[f"w{li}"][n], preferred_element_type=jnp.float32)
            h = h + params[f"b{li}"][n]
            h = jnp.maximum(h, 0.0).astype(jnp.bfloat16)
        out = jnp.dot(h, params["w4"][n], preferred_element_type=jnp.float32)
        out = out + params["b4"][n]
        mean = out[:, :state_dim]
        raw_v = out[:, state_dim:]
        lv = max_logvar - _softplus(max_logvar - raw_v)
        lv = min_logvar + _softplus(lv - min_logvar)
        means.append(mean)
        logvars.append(lv)
    return jnp.stack(means), jnp.stack(logvars)


if __name__ == "__main__":
    num_nets = 3
    state_dim = 4
    action_dim = 2
    batch = 8

    key = jax.random.PRNGKey(0)
    key, xk, pk = jax.random.split(key, 3)

    x = jax.random.normal(xk, (batch, state_dim + action_dim), jnp.float32)
    params = init_penn_params(pk, num_nets, state_dim, action_dim)

    max_logvar = jnp.full((1, state_dim), -3.0, jnp.float32)
    min_logvar = jnp.full((1, state_dim), -7.0, jnp.float32)

    mean, logvar = jax.jit(penn_forward)(x, params, max_logvar, min_logvar)
    jax.block_until_ready((mean, logvar))

    ref_mean, ref_logvar = penn_reference(x, params, max_logvar, min_logvar)
    assert mean.shape == (num_nets, batch, state_dim)
    assert logvar.shape == (num_nets, batch, state_dim)
    assert jnp.allclose(mean, ref_mean, atol=5e-3, rtol=5e-3), "mean mismatch"
    assert jnp.allclose(logvar, ref_logvar, atol=5e-3, rtol=5e-3), "logvar mismatch"

    # Mirror PyTorch's list-of-(mean, logvar)-per-network return convention.
    outputs = [(mean[n], logvar[n]) for n in range(num_nets)]
    assert len(outputs) == num_nets

    print("KERNEL_OK")
</pallas_src>

<mosaic_0001>
module attributes {stable_mosaic.version = 11 : i64} {
  func.func @penn_kernel(%arg0: memref<8x6xf32, #tpu.memory_space<vmem>>, %arg1: memref<3x6x400xbf16, #tpu.memory_space<vmem>>, %arg2: memref<3x1x400xbf16, #tpu.memory_space<vmem>>, %arg3: memref<3x400x400xbf16, #tpu.memory_space<vmem>>, %arg4: memref<3x1x400xbf16, #tpu.memory_space<vmem>>, %arg5: memref<3x400x400xbf16, #tpu.memory_space<vmem>>, %arg6: memref<3x1x400xbf16, #tpu.memory_space<vmem>>, %arg7: memref<3x400x8xbf16, #tpu.memory_space<vmem>>, %arg8: memref<3x1x8xbf16, #tpu.memory_space<vmem>>, %arg9: memref<1x8xf32, #tpu.memory_space<vmem>>, %arg10: memref<1x8xf32, #tpu.memory_space<vmem>>, %arg11: memref<3x8x8xf32, #tpu.memory_space<vmem>>) attributes {dimension_semantics = [], scalar_prefetch = 0 : i64, scratch_operands = 0 : i64, tpu.core_type = #tpu.core_type<tc>} {
    %c0 = arith.constant 0 : index
    %c0_0 = arith.constant 0 : index
    %0 = vector.load %arg0[%c0, %c0_0] : memref<8x6xf32, #tpu.memory_space<vmem>>, vector<8x6xf32>
    %1 = arith.truncf %0 : vector<8x6xf32> to vector<8x6xbf16>
    %c0_1 = arith.constant 0 : index
    %c0_2 = arith.constant 0 : index
    %2 = vector.load %arg9[%c0_1, %c0_2] : memref<1x8xf32, #tpu.memory_space<vmem>>, vector<1x8xf32>
    %c0_3 = arith.constant 0 : index
    %c0_4 = arith.constant 0 : index
    %3 = vector.load %arg10[%c0_3, %c0_4] : memref<1x8xf32, #tpu.memory_space<vmem>>, vector<1x8xf32>
    %4 = tpu.iota {dimensions = array<i32: 1>} : vector<8x8xi32>
    %c4_i32 = arith.constant 4 : i32
    %5 = vector.broadcast %c4_i32 : i32 to vector<8x8xi32>
    %6 = arith.cmpi sge, %4, %5 : vector<8x8xi32>
    %c0_5 = arith.constant 0 : index
    %c0_6 = arith.constant 0 : index
    %c0_7 = arith.constant 0 : index
    %7 = vector.load %arg1[%c0_5, %c0_6, %c0_7] : memref<3x6x400xbf16, #tpu.memory_space<vmem>>, vector<1x6x400xbf16>
    %8 = vector.shape_cast %7 : vector<1x6x400xbf16> to vector<6x400xbf16>
    %cst = arith.constant dense<0.000000e+00> : vector<8x400xf32>
    %9 = tpu.matmul %1, %8, %cst {dimension_numbers = #tpu.dot_dimension_numbers<[1], [0], [0], [1], [0, 0, 1, 1], [], []>} : vector<8x6xbf16>, vector<6x400xbf16>, vector<8x400xf32> -> vector<8x400xf32>
    %c0_8 = arith.constant 0 : index
    %c0_9 = arith.constant 0 : index
    %c0_10 = arith.constant 0 : index
    %10 = vector.load %arg2[%c0_8, %c0_9, %c0_10] : memref<3x1x400xbf16, #tpu.memory_space<vmem>>, vector<1x1x400xbf16>
    %11 = vector.shape_cast %10 : vector<1x1x400xbf16> to vector<1x400xbf16>
    %12 = arith.extf %11 : vector<1x400xbf16> to vector<1x400xf32>
    %13 = vector.broadcast %12 : vector<1x400xf32> to vector<8x400xf32>
    %14 = arith.addf %9, %13 : vector<8x400xf32>
    %cst_11 = arith.constant 0.000000e+00 : f32
    %15 = vector.broadcast %cst_11 : f32 to vector<8x400xf32>
    %16 = arith.maximumf %14, %15 : vector<8x400xf32>
    %17 = arith.truncf %16 : vector<8x400xf32> to vector<8x400xbf16>
    %c0_12 = arith.constant 0 : index
    %c0_13 = arith.constant 0 : index
    %c0_14 = arith.constant 0 : index
    %18 = vector.load %arg3[%c0_12, %c0_13, %c0_14] : memref<3x400x400xbf16, #tpu.memory_space<vmem>>, vector<1x400x400xbf16>
    %19 = vector.shape_cast %18 : vector<1x400x400xbf16> to vector<400x400xbf16>
    %cst_15 = arith.constant dense<0.000000e+00> : vector<8x400xf32>
    %20 = tpu.matmul %17, %19, %cst_15 {dimension_numbers = #tpu.dot_dimension_numbers<[1], [0], [0], [1], [0, 0, 1, 1], [], []>} : vector<8x400xbf16>, vector<400x400xbf16>, vector<8x400xf32> -> vector<8x400xf32>
    %c0_16 = arith.constant 0 : index
    %c0_17 = arith.constant 0 : index
    %c0_18 = arith.constant 0 : index
    %21 = vector.load %arg4[%c0_16, %c0_17, %c0_18] : memref<3x1x400xbf16, #tpu.memory_space<vmem>>, vector<1x1x400xbf16>
    %22 = vector.shape_cast %21 : vector<1x1x400xbf16> to vector<1x400xbf16>
    %23 = arith.extf %22 : vector<1x400xbf16> to vector<1x400xf32>
    %24 = vector.broadcast %23 : vector<1x400xf32> to vector<8x400xf32>
    %25 = arith.addf %20, %24 : vector<8x400xf32>
    %cst_19 = arith.constant 0.000000e+00 : f32
    %26 = vector.broadcast %cst_19 : f32 to vector<8x400xf32>
    %27 = arith.maximumf %25, %26 : vector<8x400xf32>
    %28 = arith.truncf %27 : vector<8x400xf32> to vector<8x400xbf16>
    %c0_20 = arith.constant 0 : index
    %c0_21 = arith.constant 0 : index
    %c0_22 = arith.constant 0 : index
    %29 = vector.load %arg5[%c0_20, %c0_21, %c0_22] : memref<3x400x400xbf16, #tpu.memory_space<vmem>>, vector<1x400x400xbf16>
    %30 = vector.shape_cast %29 : vector<1x400x400xbf16> to vector<400x400xbf16>
    %cst_23 = arith.constant dense<0.000000e+00> : vector<8x400xf32>
    %31 = tpu.matmul %28, %30, %cst_23 {dimension_numbers = #tpu.dot_dimension_numbers<[1], [0], [0], [1], [0, 0, 1, 1], [], []>} : vector<8x400xbf16>, vector<400x400xbf16>, vector<8x400xf32> -> vector<8x400xf32>
    %c0_24 = arith.constant 0 : index
    %c0_25 = arith.constant 0 : index
    %c0_26 = arith.constant 0 : index
    %32 = vector.load %arg6[%c0_24, %c0_25, %c0_26] : memref<3x1x400xbf16, #tpu.memory_space<vmem>>, vector<1x1x400xbf16>
    %33 = vector.shape_cast %32 : vector<1x1x400xbf16> to vector<1x400xbf16>
    %34 = arith.extf %33 : vector<1x400xbf16> to vector<1x400xf32>
    %35 = vector.broadcast %34 : vector<1x400xf32> to vector<8x400xf32>
    %36 = arith.addf %31, %35 : vector<8x400xf32>
    %cst_27 = arith.constant 0.000000e+00 : f32
    %37 = vector.broadcast %cst_27 : f32 to vector<8x400xf32>
    %38 = arith.maximumf %36, %37 : vector<8x400xf32>
    %39 = arith.truncf %38 : vector<8x400xf32> to vector<8x400xbf16>
    %c0_28 = arith.constant 0 : index
    %c0_29 = arith.constant 0 : index
    %c0_30 = arith.constant 0 : index
    %40 = vector.load %arg7[%c0_28, %c0_29, %c0_30] : memref<3x400x8xbf16, #tpu.memory_space<vmem>>, vector<1x400x8xbf16>
    %41 = vector.shape_cast %40 : vector<1x400x8xbf16> to vector<400x8xbf16>
    %cst_31 = arith.constant dense<0.000000e+00> : vector<8x8xf32>
    %42 = tpu.matmul %39, %41, %cst_31 {dimension_numbers = #tpu.dot_dimension_numbers<[1], [0], [0], [1], [0, 0, 1, 1], [], []>} : vector<8x400xbf16>, vector<400x8xbf16>, vector<8x8xf32> -> vector<8x8xf32>
    %c0_32 = arith.constant 0 : index
    %c0_33 = arith.constant 0 : index
    %c0_34 = arith.constant 0 : index
    %43 = vector.load %arg8[%c0_32, %c0_33, %c0_34] : memref<3x1x8xbf16, #tpu.memory_space<vmem>>, vector<1x1x8xbf16>
    %44 = vector.shape_cast %43 : vector<1x1x8xbf16> to vector<1x8xbf16>
    %45 = arith.extf %44 : vector<1x8xbf16> to vector<1x8xf32>
    %46 = vector.broadcast %45 : vector<1x8xf32> to vector<8x8xf32>
    %47 = arith.addf %42, %46 : vector<8x8xf32>
    %48 = vector.broadcast %2 : vector<1x8xf32> to vector<8x8xf32>
    %49 = arith.subf %48, %47 : vector<8x8xf32>
    %cst_35 = arith.constant 0.000000e+00 : f32
    %50 = vector.broadcast %cst_35 : f32 to vector<8x8xf32>
    %51 = arith.maximumf %49, %50 : vector<8x8xf32>
    %52 = vector.broadcast %cst_35 : f32 to vector<8x8xf32>
    %53 = arith.subf %49, %52 : vector<8x8xf32>
    %54 = arith.cmpf one, %53, %53 : vector<8x8xf32>
    %55 = vector.broadcast %cst_35 : f32 to vector<8x8xf32>
    %56 = arith.addf %49, %55 : vector<8x8xf32>
    %57 = math.absf %53 : vector<8x8xf32>
    %cst_36 = arith.constant 0.000000e+00 : f32
    %58 = vector.broadcast %cst_36 : f32 to vector<8x8xf32>
    %59 = arith.subf %58, %57 : vector<8x8xf32>
    %60 = math.exp %59 : vector<8x8xf32>
    %61 = math.log1p %60 : vector<8x8xf32>
    %62 = arith.addf %51, %61 : vector<8x8xf32>
    %63 = arith.select %54, %56, %62 : vector<8x8xi1>, vector<8x8xf32>
    %64 = vector.broadcast %2 : vector<1x8xf32> to vector<8x8xf32>
    %65 = arith.subf %64, %63 : vector<8x8xf32>
    %66 = vector.broadcast %3 : vector<1x8xf32> to vector<8x8xf32>
    %67 = arith.subf %65, %66 : vector<8x8xf32>
    %cst_37 = arith.constant 0.000000e+00 : f32
    %68 = vector.broadcast %cst_37 : f32 to vector<8x8xf32>
    %69 = arith.maximumf %67, %68 : vector<8x8xf32>
    %70 = vector.broadcast %cst_37 : f32 to vector<8x8xf32>
    %71 = arith.subf %67, %70 : vector<8x8xf32>
    %72 = arith.cmpf one, %71, %71 : vector<8x8xf32>
    %73 = vector.broadcast %cst_37 : f32 to vector<8x8xf32>
    %74 = arith.addf %67, %73 : vector<8x8xf32>
    %75 = math.absf %71 : vector<8x8xf32>
    %cst_38 = arith.constant 0.000000e+00 : f32
    %76 = vector.broadcast %cst_38 : f32 to vector<8x8xf32>
    %77 = arith.subf %76, %75 : vector<8x8xf32>
    %78 = math.exp %77 : vector<8x8xf32>
    %79 = math.log1p %78 : vector<8x8xf32>
    %80 = arith.addf %69, %79 : vector<8x8xf32>
    %81 = arith.select %72, %74, %80 : vector<8x8xi1>, vector<8x8xf32>
    %82 = vector.broadcast %3 : vector<1x8xf32> to vector<8x8xf32>
    %83 = arith.addf %82, %81 : vector<8x8xf32>
    %84 = arith.select %6, %83, %47 : vector<8x8xi1>, vector<8x8xf32>
    %c0_39 = arith.constant 0 : index
    %c0_40 = arith.constant 0 : index
    %c0_41 = arith.constant 0 : index
    %85 = vector.load %arg11[%c0_39, %c0_40, %c0_41] : memref<3x8x8xf32, #tpu.memory_space<vmem>>, vector<1x8x8xf32>
    %86 = vector.shape_cast %85 : vector<1x8x8xf32> to vector<8x8xf32>
    %87 = vector.shape_cast %84 : vector<8x8xf32> to vector<1x8x8xf32>
    tpu.vector_store %arg11[%c0_39, %c0_40, %c0_41], %87 {strides = array<i32>} : memref<3x8x8xf32, #tpu.memory_space<vmem>>, vector<1x8x8xf32>,
    %c1 = arith.constant 1 : index
    %c0_42 = arith.constant 0 : index
    %c0_43 = arith.constant 0 : index
    %88 = vector.load %arg1[%c1, %c0_42, %c0_43] : memref<3x6x400xbf16, #tpu.memory_space<vmem>>, vector<1x6x400xbf16>
    %89 = vector.shape_cast %88 : vector<1x6x400xbf16> to vector<6x400xbf16>
    %cst_44 = arith.constant dense<0.000000e+00> : vector<8x400xf32>
    %90 = tpu.matmul %1, %89, %cst_44 {dimension_numbers = #tpu.dot_dimension_numbers<[1], [0], [0], [1], [0, 0, 1, 1], [], []>} : vector<8x6xbf16>, vector<6x400xbf16>, vector<8x400xf32> -> vector<8x400xf32>
    %c1_45 = arith.constant 1 : index
    %c0_46 = arith.constant 0 : index
    %c0_47 = arith.constant 0 : index
    %91 = vector.load %arg2[%c1_45, %c0_46, %c0_47] : memref<3x1x400xbf16, #tpu.memory_space<vmem>>, vector<1x1x400xbf16>
    %92 = vector.shape_cast %91 : vector<1x1x400xbf16> to vector<1x400xbf16>
    %93 = arith.extf %92 : vector<1x400xbf16> to vector<1x400xf32>
    %94 = vector.broadcast %93 : vector<1x400xf32> to vector<8x400xf32>
    %95 = arith.addf %90, %94 : vector<8x400xf32>
    %cst_48 = arith.constant 0.000000e+00 : f32
    %96 = vector.broadcast %cst_48 : f32 to vector<8x400xf32>
    %97 = arith.maximumf %95, %96 : vector<8x400xf32>
    %98 = arith.truncf %97 : vector<8x400xf32> to vector<8x400xbf16>
    %c1_49 = arith.constant 1 : index
    %c0_50 = arith.constant 0 : index
    %c0_51 = arith.constant 0 : index
    %99 = vector.load %arg3[%c1_49, %c0_50, %c0_51] : memref<3x400x400xbf16, #tpu.memory_space<vmem>>, vector<1x400x400xbf16>
    %100 = vector.shape_cast %99 : vector<1x400x400xbf16> to vector<400x400xbf16>
    %cst_52 = arith.constant dense<0.000000e+00> : vector<8x400xf32>
    %101 = tpu.matmul %98, %100, %cst_52 {dimension_numbers = #tpu.dot_dimension_numbers<[1], [0], [0], [1], [0, 0, 1, 1], [], []>} : vector<8x400xbf16>, vector<400x400xbf16>, vector<8x400xf32> -> vector<8x400xf32>
    %c1_53 = arith.constant 1 : index
    %c0_54 = arith.constant 0 : index
    %c0_55 = arith.constant 0 : index
    %102 = vector.load %arg4[%c1_53, %c0_54, %c0_55] : memref<3x1x400xbf16, #tpu.memory_space<vmem>>, vector<1x1x400xbf16>
    %103 = vector.shape_cast %102 : vector<1x1x400xbf16> to vector<1x400xbf16>
    %104 = arith.extf %103 : vector<1x400xbf16> to vector<1x400xf32>
    %105 = vector.broadcast %104 : vector<1x400xf32> to vector<8x400xf32>
    %106 = arith.addf %101, %105 : vector<8x400xf32>
    %cst_56 = arith.constant 0.000000e+00 : f32
    %107 = vector.broadcast %cst_56 : f32 to vector<8x400xf32>
    %108 = arith.maximumf %106, %107 : vector<8x400xf32>
    %109 = arith.truncf %108 : vector<8x400xf32> to vector<8x400xbf16>
    %c1_57 = arith.constant 1 : index
    %c0_58 = arith.constant 0 : index
    %c0_59 = arith.constant 0 : index
    %110 = vector.load %arg5[%c1_57, %c0_58, %c0_59] : memref<3x400x400xbf16, #tpu.memory_space<vmem>>, vector<1x400x400xbf16>
    %111 = vector.shape_cast %110 : vector<1x400x400xbf16> to vector<400x400xbf16>
    %cst_60 = arith.constant dense<0.000000e+00> : vector<8x400xf32>
    %112 = tpu.matmul %109, %111, %cst_60 {dimension_numbers = #tpu.dot_dimension_numbers<[1], [0], [0], [1], [0, 0, 1, 1], [], []>} : vector<8x400xbf16>, vector<400x400xbf16>, vector<8x400xf32> -> vector<8x400xf32>
    %c1_61 = arith.constant 1 : index
    %c0_62 = arith.constant 0 : index
    %c0_63 = arith.constant 0 : index
    %113 = vector.load %arg6[%c1_61, %c0_62, %c0_63] : memref<3x1x400xbf16, #tpu.memory_space<vmem>>, vector<1x1x400xbf16>
    %114 = vector.shape_cast %113 : vector<1x1x400xbf16> to vector<1x400xbf16>
    %115 = arith.extf %114 : vector<1x400xbf16> to vector<1x400xf32>
    %116 = vector.broadcast %115 : vector<1x400xf32> to vector<8x400xf32>
    %117 = arith.addf %112, %116 : vector<8x400xf32>
    %cst_64 = arith.constant 0.000000e+00 : f32
    %118 = vector.broadcast %cst_64 : f32 to vector<8x400xf32>
    %119 = arith.maximumf %117, %118 : vector<8x400xf32>
    %120 = arith.truncf %119 : vector<8x400xf32> to vector<8x400xbf16>
    %c1_65 = arith.constant 1 : index
    %c0_66 = arith.constant 0 : index
    %c0_67 = arith.constant 0 : index
    %121 = vector.load %arg7[%c1_65, %c0_66, %c0_67] : memref<3x400x8xbf16, #tpu.memory_space<vmem>>, vector<1x400x8xbf16>
    %122 = vector.shape_cast %121 : vector<1x400x8xbf16> to vector<400x8xbf16>
    %cst_68 = arith.constant dense<0.000000e+00> : vector<8x8xf32>
    %123 = tpu.matmul %120, %122, %cst_68 {dimension_numbers = #tpu.dot_dimension_numbers<[1], [0], [0], [1], [0, 0, 1, 1], [], []>} : vector<8x400xbf16>, vector<400x8xbf16>, vector<8x8xf32> -> vector<8x8xf32>
    %c1_69 = arith.constant 1 : index
    %c0_70 = arith.constant 0 : index
    %c0_71 = arith.constant 0 : index
    %124 = vector.load %arg8[%c1_69, %c0_70, %c0_71] : memref<3x1x8xbf16, #tpu.memory_space<vmem>>, vector<1x1x8xbf16>
    %125 = vector.shape_cast %124 : vector<1x1x8xbf16> to vector<1x8xbf16>
    %126 = arith.extf %125 : vector<1x8xbf16> to vector<1x8xf32>
    %127 = vector.broadcast %126 : vector<1x8xf32> to vector<8x8xf32>
    %128 = arith.addf %123, %127 : vector<8x8xf32>
    %129 = vector.broadcast %2 : vector<1x8xf32> to vector<8x8xf32>
    %130 = arith.subf %129, %128 : vector<8x8xf32>
    %cst_72 = arith.constant 0.000000e+00 : f32
    %131 = vector.broadcast %cst_72 : f32 to vector<8x8xf32>
    %132 = arith.maximumf %130, %131 : vector<8x8xf32>
    %133 = vector.broadcast %cst_72 : f32 to vector<8x8xf32>
    %134 = arith.subf %130, %133 : vector<8x8xf32>
    %135 = arith.cmpf one, %134, %134 : vector<8x8xf32>
    %136 = vector.broadcast %cst_72 : f32 to vector<8x8xf32>
    %137 = arith.addf %130, %136 : vector<8x8xf32>
    %138 = math.absf %134 : vector<8x8xf32>
    %cst_73 = arith.constant 0.000000e+00 : f32
    %139 = vector.broadcast %cst_73 : f32 to vector<8x8xf32>
    %140 = arith.subf %139, %138 : vector<8x8xf32>
    %141 = math.exp %140 : vector<8x8xf32>
    %142 = math.log1p %141 : vector<8x8xf32>
    %143 = arith.addf %132, %142 : vector<8x8xf32>
    %144 = arith.select %135, %137, %143 : vector<8x8xi1>, vector<8x8xf32>
    %145 = vector.broadcast %2 : vector<1x8xf32> to vector<8x8xf32>
    %146 = arith.subf %145, %144 : vector<8x8xf32>
    %147 = vector.broadcast %3 : vector<1x8xf32> to vector<8x8xf32>
    %148 = arith.subf %146, %147 : vector<8x8xf32>
    %cst_74 = arith.constant 0.000000e+00 : f32
    %149 = vector.broadcast %cst_74 : f32 to vector<8x8xf32>
    %150 = arith.maximumf %148, %149 : vector<8x8xf32>
    %151 = vector.broadcast %cst_74 : f32 to vector<8x8xf32>
    %152 = arith.subf %148, %151 : vector<8x8xf32>
    %153 = arith.cmpf one, %152, %152 : vector<8x8xf32>
    %154 = vector.broadcast %cst_74 : f32 to vector<8x8xf32>
    %155 = arith.addf %148, %154 : vector<8x8xf32>
    %156 = math.absf %152 : vector<8x8xf32>
    %cst_75 = arith.constant 0.000000e+00 : f32
    %157 = vector.broadcast %cst_75 : f32 to vector<8x8xf32>
    %158 = arith.subf %157, %156 : vector<8x8xf32>
    %159 = math.exp %158 : vector<8x8xf32>
    %160 = math.log1p %159 : vector<8x8xf32>
    %161 = arith.addf %150, %160 : vector<8x8xf32>
    %162 = arith.select %153, %155, %161 : vector<8x8xi1>, vector<8x8xf32>
    %163 = vector.broadcast %3 : vector<1x8xf32> to vector<8x8xf32>
    %164 = arith.addf %163, %162 : vector<8x8xf32>
    %165 = arith.select %6, %164, %128 : vector<8x8xi1>, vector<8x8xf32>
    %c1_76 = arith.constant 1 : index
    %c0_77 = arith.constant 0 : index
    %c0_78 = arith.constant 0 : index
    %166 = vector.load %arg11[%c1_76, %c0_77, %c0_78] : memref<3x8x8xf32, #tpu.memory_space<vmem>>, vector<1x8x8xf32>
    %167 = vector.shape_cast %166 : vector<1x8x8xf32> to vector<8x8xf32>
    %168 = vector.shape_cast %165 : vector<8x8xf32> to vector<1x8x8xf32>
    tpu.vector_store %arg11[%c1_76, %c0_77, %c0_78], %168 {strides = array<i32>} : memref<3x8x8xf32, #tpu.memory_space<vmem>>, vector<1x8x8xf32>,
    %c2 = arith.constant 2 : index
    %c0_79 = arith.constant 0 : index
    %c0_80 = arith.constant 0 : index
    %169 = vector.load %arg1[%c2, %c0_79, %c0_80] : memref<3x6x400xbf16, #tpu.memory_space<vmem>>, vector<1x6x400xbf16>
    %170 = vector.shape_cast %169 : vector<1x6x400xbf16> to vector<6x400xbf16>
    %cst_81 = arith.constant dense<0.000000e+00> : vector<8x400xf32>
    %171 = tpu.matmul %1, %170, %cst_81 {dimension_numbers = #tpu.dot_dimension_numbers<[1], [0], [0], [1], [0, 0, 1, 1], [], []>} : vector<8x6xbf16>, vector<6x400xbf16>, vector<8x400xf32> -> vector<8x400xf32>
    %c2_82 = arith.constant 2 : index
    %c0_83 = arith.constant 0 : index
    %c0_84 = arith.constant 0 : index
    %172 = vector.load %arg2[%c2_82, %c0_83, %c0_84] : memref<3x1x400xbf16, #tpu.memory_space<vmem>>, vector<1x1x400xbf16>
    %173 = vector.shape_cast %172 : vector<1x1x400xbf16> to vector<1x400xbf16>
    %174 = arith.extf %173 : vector<1x400xbf16> to vector<1x400xf32>
    %175 = vector.broadcast %174 : vector<1x400xf32> to vector<8x400xf32>
    %176 = arith.addf %171, %175 : vector<8x400xf32>
    %cst_85 = arith.constant 0.000000e+00 : f32
    %177 = vector.broadcast %cst_85 : f32 to vector<8x400xf32>
    %178 = arith.maximumf %176, %177 : vector<8x400xf32>
    %179 = arith.truncf %178 : vector<8x400xf32> to vector<8x400xbf16>
    %c2_86 = arith.constant 2 : index
    %c0_87 = arith.constant 0 : index
    %c0_88 = arith.constant 0 : index
    %180 = vector.load %arg3[%c2_86, %c0_87, %c0_88] : memref<3x400x400xbf16, #tpu.memory_space<vmem>>, vector<1x400x400xbf16>
    %181 = vector.shape_cast %180 : vector<1x400x400xbf16> to vector<400x400xbf16>
    %cst_89 = arith.constant dense<0.000000e+00> : vector<8x400xf32>
    %182 = tpu.matmul %179, %181, %cst_89 {dimension_numbers = #tpu.dot_dimension_numbers<[1], [0], [0], [1], [0, 0, 1, 1], [], []>} : vector<8x400xbf16>, vector<400x400xbf16>, vector<8x400xf32> -> vector<8x400xf32>
    %c2_90 = arith.constant 2 : index
    %c0_91 = arith.constant 0 : index
    %c0_92 = arith.constant 0 : index
    %183 = vector.load %arg4[%c2_90, %c0_91, %c0_92] : memref<3x1x400xbf16, #tpu.memory_space<vmem>>, vector<1x1x400xbf16>
    %184 = vector.shape_cast %183 : vector<1x1x400xbf16> to vector<1x400xbf16>
    %185 = arith.extf %184 : vector<1x400xbf16> to vector<1x400xf32>
    %186 = vector.broadcast %185 : vector<1x400xf32> to vector<8x400xf32>
    %187 = arith.addf %182, %186 : vector<8x400xf32>
    %cst_93 = arith.constant 0.000000e+00 : f32
    %188 = vector.broadcast %cst_93 : f32 to vector<8x400xf32>
    %189 = arith.maximumf %187, %188 : vector<8x400xf32>
    %190 = arith.truncf %189 : vector<8x400xf32> to vector<8x400xbf16>
    %c2_94 = arith.constant 2 : index
    %c0_95 = arith.constant 0 : index
    %c0_96 = arith.constant 0 : index
    %191 = vector.load %arg5[%c2_94, %c0_95, %c0_96] : memref<3x400x400xbf16, #tpu.memory_space<vmem>>, vector<1x400x400xbf16>
    %192 = vector.shape_cast %191 : vector<1x400x400xbf16> to vector<400x400xbf16>
    %cst_97 = arith.constant dense<0.000000e+00> : vector<8x400xf32>
    %193 = tpu.matmul %190, %192, %cst_97 {dimension_numbers = #tpu.dot_dimension_numbers<[1], [0], [0], [1], [0, 0, 1, 1], [], []>} : vector<8x400xbf16>, vector<400x400xbf16>, vector<8x400xf32> -> vector<8x400xf32>
    %c2_98 = arith.constant 2 : index
    %c0_99 = arith.constant 0 : index
    %c0_100 = arith.constant 0 : index
    %194 = vector.load %arg6[%c2_98, %c0_99, %c0_100] : memref<3x1x400xbf16, #tpu.memory_space<vmem>>, vector<1x1x400xbf16>
    %195 = vector.shape_cast %194 : vector<1x1x400xbf16> to vector<1x400xbf16>
    %196 = arith.extf %195 : vector<1x400xbf16> to vector<1x400xf32>
    %197 = vector.broadcast %196 : vector<1x400xf32> to vector<8x400xf32>
    %198 = arith.addf %193, %197 : vector<8x400xf32>
    %cst_101 = arith.constant 0.000000e+00 : f32
    %199 = vector.broadcast %cst_101 : f32 to vector<8x400xf32>
    %200 = arith.maximumf %198, %199 : vector<8x400xf32>
    %201 = arith.truncf %200 : vector<8x400xf32> to vector<8x400xbf16>
    %c2_102 = arith.constant 2 : index
    %c0_103 = arith.constant 0 : index
    %c0_104 = arith.constant 0 : index
    %202 = vector.load %arg7[%c2_102, %c0_103, %c0_104] : memref<3x400x8xbf16, #tpu.memory_space<vmem>>, vector<1x400x8xbf16>
    %203 = vector.shape_cast %202 : vector<1x400x8xbf16> to vector<400x8xbf16>
    %cst_105 = arith.constant dense<0.000000e+00> : vector<8x8xf32>
    %204 = tpu.matmul %201, %203, %cst_105 {dimension_numbers = #tpu.dot_dimension_numbers<[1], [0], [0], [1], [0, 0, 1, 1], [], []>} : vector<8x400xbf16>, vector<400x8xbf16>, vector<8x8xf32> -> vector<8x8xf32>
    %c2_106 = arith.constant 2 : index
    %c0_107 = arith.constant 0 : index
    %c0_108 = arith.constant 0 : index
    %205 = vector.load %arg8[%c2_106, %c0_107, %c0_108] : memref<3x1x8xbf16, #tpu.memory_space<vmem>>, vector<1x1x8xbf16>
    %206 = vector.shape_cast %205 : vector<1x1x8xbf16> to vector<1x8xbf16>
    %207 = arith.extf %206 : vector<1x8xbf16> to vector<1x8xf32>
    %208 = vector.broadcast %207 : vector<1x8xf32> to vector<8x8xf32>
    %209 = arith.addf %204, %208 : vector<8x8xf32>
    %210 = vector.broadcast %2 : vector<1x8xf32> to vector<8x8xf32>
    %211 = arith.subf %210, %209 : vector<8x8xf32>
    %cst_109 = arith.constant 0.000000e+00 : f32
    %212 = vector.broadcast %cst_109 : f32 to vector<8x8xf32>
    %213 = arith.maximumf %211, %212 : vector<8x8xf32>
    %214 = vector.broadcast %cst_109 : f32 to vector<8x8xf32>
    %215 = arith.subf %211, %214 : vector<8x8xf32>
    %216 = arith.cmpf one, %215, %215 : vector<8x8xf32>
    %217 = vector.broadcast %cst_109 : f32 to vector<8x8xf32>
    %218 = arith.addf %211, %217 : vector<8x8xf32>
    %219 = math.absf %215 : vector<8x8xf32>
    %cst_110 = arith.constant 0.000000e+00 : f32
    %220 = vector.broadcast %cst_110 : f32 to vector<8x8xf32>
    %221 = arith.subf %220, %219 : vector<8x8xf32>
    %222 = math.exp %221 : vector<8x8xf32>
    %223 = math.log1p %222 : vector<8x8xf32>
    %224 = arith.addf %213, %223 : vector<8x8xf32>
    %225 = arith.select %216, %218, %224 : vector<8x8xi1>, vector<8x8xf32>
    %226 = vector.broadcast %2 : vector<1x8xf32> to vector<8x8xf32>
    %227 = arith.subf %226, %225 : vector<8x8xf32>
    %228 = vector.broadcast %3 : vector<1x8xf32> to vector<8x8xf32>
    %229 = arith.subf %227, %228 : vector<8x8xf32>
    %cst_111 = arith.constant 0.000000e+00 : f32
    %230 = vector.broadcast %cst_111 : f32 to vector<8x8xf32>
    %231 = arith.maximumf %229, %230 : vector<8x8xf32>
    %232 = vector.broadcast %cst_111 : f32 to vector<8x8xf32>
    %233 = arith.subf %229, %232 : vector<8x8xf32>
    %234 = arith.cmpf one, %233, %233 : vector<8x8xf32>
    %235 = vector.broadcast %cst_111 : f32 to vector<8x8xf32>
    %236 = arith.addf %229, %235 : vector<8x8xf32>
    %237 = math.absf %233 : vector<8x8xf32>
    %cst_112 = arith.constant 0.000000e+00 : f32
    %238 = vector.broadcast %cst_112 : f32 to vector<8x8xf32>
    %239 = arith.subf %238, %237 : vector<8x8xf32>
    %240 = math.exp %239 : vector<8x8xf32>
    %241 = math.log1p %240 : vector<8x8xf32>
    %242 = arith.addf %231, %241 : vector<8x8xf32>
    %243 = arith.select %234, %236, %242 : vector<8x8xi1>, vector<8x8xf32>
    %244 = vector.broadcast %3 : vector<1x8xf32> to vector<8x8xf32>
    %245 = arith.addf %244, %243 : vector<8x8xf32>
    %246 = arith.select %6, %245, %209 : vector<8x8xi1>, vector<8x8xf32>
    %c2_113 = arith.constant 2 : index
    %c0_114 = arith.constant 0 : index
    %c0_115 = arith.constant 0 : index
    %247 = vector.load %arg11[%c2_113, %c0_114, %c0_115] : memref<3x8x8xf32, #tpu.memory_space<vmem>>, vector<1x8x8xf32>
    %248 = vector.shape_cast %247 : vector<1x8x8xf32> to vector<8x8xf32>
    %249 = vector.shape_cast %246 : vector<8x8xf32> to vector<1x8x8xf32>
    tpu.vector_store %arg11[%c2_113, %c0_114, %c0_115], %249 {strides = array<i32>} : memref<3x8x8xf32, #tpu.memory_space<vmem>>, vector<1x8x8xf32>,
    return
  }
}

</mosaic_0001>

<llo_original>
// kernel: penn_forward.1
$region0: #{penn_forward.1}
  #allocation0 [shape = 'u32[]', space=smem, size = 0x4, offset = 0x4, fixed_abs, tag = 'smem constant byte address 0x4 - core index']
  #allocation1 [shape = 'u32[72,128]{1,0:T(1,128)}', space=vmem, size = 0x9000, scoped, tag = 'internal scratch']
  %s0 = inlined_call_operand.hbm [shape: f32[8,6], index: 0, kind: input, shape index: {}]
  %s1 = inlined_call_operand.hbm [shape: bf16[3,6,400], index: 1, kind: input, shape index: {}]
  %s2 = inlined_call_operand.vmem [shape: bf16[3,1,400], index: 2, kind: input, shape index: {}]
  %s3 = inlined_call_operand.hbm [shape: bf16[3,400,400], index: 3, kind: input, shape index: {}]
  %s4 = inlined_call_operand.vmem [shape: bf16[3,1,400], index: 4, kind: input, shape index: {}]
  %s5 = inlined_call_operand.hbm [shape: bf16[3,400,400], index: 5, kind: input, shape index: {}]
  %s6 = inlined_call_operand.vmem [shape: bf16[3,1,400], index: 6, kind: input, shape index: {}]
  %s7 = inlined_call_operand.vmem [shape: bf16[3,400,8], index: 7, kind: input, shape index: {}]
  %s8 = inlined_call_operand.vmem [shape: bf16[3,1,8], index: 8, kind: input, shape index: {}]
  %s9 = inlined_call_operand.vmem [shape: f32[1,8], index: 9, kind: input, shape index: {}]
  %s10 = inlined_call_operand.vmem [shape: f32[1,8], index: 10, kind: input, shape index: {}]
  %s11 = inlined_call_operand.vmem [shape: f32[3,8,8], index: 11, kind: output, shape index: {}]
  %s12 = sld [smem:[#allocation0]]
  $region70: #{penn_forward.1} parent=0
    _
  %s14 = ssub.s32 1, %s12
  %s15 = scalar_select 0, %s14, %s12
  $region1: #{penn_forward.1} parent=0
    #allocation2 [shape = 'u8[4096]{0}', space=vmem, size = 0x1000, scoped, tag = 'input window, operand 0, single buffered']
    #allocation3 [shape = 's32[1]{0}', space=sflag, size = 0x4, scoped, tag = 'scoped memory for penn_forward.1']
    #allocation4 [shape = 'u8[24576]{0}', space=vmem, size = 0x6000, scoped, tag = 'input window, operand 1, single buffered']
    #allocation5 [shape = 's32[1]{0}', space=sflag, size = 0x4, scoped, tag = 'scoped memory for penn_forward.1']
    #allocation6 [shape = 'u8[1228800]{0}', space=vmem, size = 0x12c000, scoped, tag = 'input window, operand 3, single buffered']
    #allocation7 [shape = 'u8[1228800]{0}', space=vmem, size = 0x12c000, scoped, tag = 'input window, operand 5, single buffered']
    #allocation8 [shape = 's32[1]{0}', space=sflag, size = 0x4, scoped, tag = 'scoped memory for penn_forward.1']
    %16 = vsyncpa [#allocation3], 0
    %17 = vsyncpa [#allocation5], 0
    %18 = vsyncpa [#allocation8], 0
    // Predicated region
    $region2: #{penn_forward.1} parent=1 // pred_check
      _
    $region3: #{penn_forward.1} parent=1 // pred_check_branch
      %20 = sbr.rel (0) target = $region5
    $region4: #{penn_forward.1} parent=1 // pred_region
      %22 = vsyncadd [#allocation3], 0
      %s24 = sshll.u32 %s0, 4
      %s25 = int_to_ptr.hbm [resolvable:$true] %s24
      %s26 = sshll.u32 [#allocation2], 4
      %s27 = int_to_ptr.vmem [resolvable:$true] %s26
      %29 = dma.hbm_to_vmem [thread:$0]  %s25, 128, %s27, [#allocation3]
    $region5: #{penn_forward.1} parent=1 // pred_fallthru
      _
    // Predicated region
    $region6: #{penn_forward.1} parent=1 // pred_check
      _
    $region7: #{penn_forward.1} parent=1 // pred_check_branch
      %31 = sbr.rel (0) target = $region9
    $region8: #{penn_forward.1} parent=1 // pred_region
      %33 = vsyncadd [#allocation5], 0
      %s34 = sshll.u32 %s1, 4
      %s35 = int_to_ptr.hbm [resolvable:$true] %s34
      %s36 = sshll.u32 [#allocation4], 4
      %s37 = int_to_ptr.vmem [resolvable:$true] %s36
      %42 = dma.hbm_to_vmem [thread:$0]  %s35, 768, %s37, [#allocation5], 256, 256, 16
    $region9: #{penn_forward.1} parent=1 // pred_fallthru
      _
    // Predicated region
    $region10: #{penn_forward.1} parent=1 // pred_check
      _
    $region11: #{penn_forward.1} parent=1 // pred_check_branch
      %44 = sbr.rel (0) target = $region13
    $region12: #{penn_forward.1} parent=1 // pred_region
      _
    $region13: #{penn_forward.1} parent=1 // pred_fallthru
      _
    // Predicated region
    $region14: #{penn_forward.1} parent=1 // pred_check
      _
    $region15: #{penn_forward.1} parent=1 // pred_check_branch
      %46 = sbr.rel (0) target = $region17
    $region16: #{penn_forward.1} parent=1 // pred_region
      %48 = vsyncadd [#allocation5], 0
      %s49 = sshll.u32 %s3, 4
      %s50 = int_to_ptr.hbm [resolvable:$true] %s49
      %s51 = sshll.u32 [#allocation6], 4
      %s52 = int_to_ptr.vmem [resolvable:$true] %s51
      %57 = dma.hbm_to_vmem [thread:$0]  %s50, 38400, %s52, [#allocation5], 256, 256, 16
    $region17: #{penn_forward.1} parent=1 // pred_fallthru
      _
    // Predicated region
    $region18: #{penn_forward.1} parent=1 // pred_check
      _
    $region19: #{penn_forward.1} parent=1 // pred_check_branch
      %59 = sbr.rel (0) target = $region21
    $region20: #{penn_forward.1} parent=1 // pred_region
      _
    $region21: #{penn_forward.1} parent=1 // pred_fallthru
      _
    // Predicated region
    $region22: #{penn_forward.1} parent=1 // pred_check
      _
    $region23: #{penn_forward.1} parent=1 // pred_check_branch
      %61 = sbr.rel (0) target = $region25
    $region24: #{penn_forward.1} parent=1 // pred_region
      %63 = vsyncadd [#allocation8], 0
      %s64 = sshll.u32 %s5, 4
      %s65 = int_to_ptr.hbm [resolvable:$true] %s64
      %s66 = sshll.u32 [#allocation7], 4
      %s67 = int_to_ptr.vmem [resolvable:$true] %s66
      %72 = dma.hbm_to_vmem [thread:$0]  %s65, 38400, %s67, [#allocation8], 256, 256, 16
    $region25: #{penn_forward.1} parent=1 // pred_fallthru
      _
    // Predicated region
    $region26: #{penn_forward.1} parent=1 // pred_check
      _
    $region27: #{penn_forward.1} parent=1 // pred_check_branch
      %74 = sbr.rel (0) target = $region29
    $region28: #{penn_forward.1} parent=1 // pred_region
      _
    $region29: #{penn_forward.1} parent=1 // pred_fallthru
      _
    // Predicated region
    $region30: #{penn_forward.1} parent=1 // pred_check
      _
    $region31: #{penn_forward.1} parent=1 // pred_check_branch
      %76 = sbr.rel (0) target = $region33
    $region32: #{penn_forward.1} parent=1 // pred_region
      _
    $region33: #{penn_forward.1} parent=1 // pred_fallthru
      _
    // Predicated region
    $region34: #{penn_forward.1} parent=1 // pred_check
      _
    $region35: #{penn_forward.1} parent=1 // pred_check_branch
      %78 = sbr.rel (0) target = $region37
    $region36: #{penn_forward.1} parent=1 // pred_region
      _
    $region37: #{penn_forward.1} parent=1 // pred_fallthru
      _
    // Predicated region
    $region38: #{penn_forward.1} parent=1 // pred_check
      _
    $region39: #{penn_forward.1} parent=1 // pred_check_branch
      %80 = sbr.rel (0) target = $region41
    $region40: #{penn_forward.1} parent=1 // pred_region
      _
    $region41: #{penn_forward.1} parent=1 // pred_fallthru
      _
    // Predicated region
    $region42: #{penn_forward.1} parent=1 // pred_check
      _
    $region43: #{penn_forward.1} parent=1 // pred_check_branch
      %82 = sbr.rel (0) target = $region45
    $region44: #{penn_forward.1} parent=1 // pred_region
      _
    $region45: #{penn_forward.1} parent=1 // pred_fallthru
      _
    // Predicated region
    $region46: #{penn_forward.1} parent=1 // pred_check
      _
    $region47: #{penn_forward.1} parent=1 // pred_check_branch
      %84 = sbr.rel (0) target = $region49
    $region48: #{penn_forward.1} parent=1 // pred_region
      %86 = dma.done [#allocation3], 128
    $region49: #{penn_forward.1} parent=1 // pred_fallthru
      _
    // Predicated region
    $region50: #{penn_forward.1} parent=1 // pred_check
      _
    $region51: #{penn_forward.1} parent=1 // pred_check_branch
      %88 = sbr.rel (0) target = $region53
    $region52: #{penn_forward.1} parent=1 // pred_region
      %90 = dma.done [#allocation5], 768
    $region53: #{penn_forward.1} parent=1 // pred_fallthru
      _
    // Predicated region
    $region54: #{penn_forward.1} parent=1 // pred_check
      _
    $region55: #{penn_forward.1} parent=1 // pred_check_branch
      %92 = sbr.rel (0) target = $region57
    $region56: #{penn_forward.1} parent=1 // pred_region
      %94 = dma.done [#allocation5], 38400
    $region57: #{penn_forward.1} parent=1 // pred_fallthru
      _
    // Predicated region
    $region58: #{penn_forward.1} parent=1 // pred_check
      _
    $region59: #{penn_forward.1} parent=1 // pred_check_branch
      %96 = sbr.rel (0) target = $region61
    $region60: #{penn_forward.1} parent=1 // pred_region
      %98 = dma.done [#allocation8], 38400
    $region61: #{penn_forward.1} parent=1 // pred_fallthru
      _
    %v100 = vld [vmem:[#allocation2] sm:$0xff]
    %v101 = vpack.c.bf16 %v100, %v100
    %v102 = vld [vmem:[%s9] sm:$0x1]
    %v103 = vld [vmem:[%s10] sm:$0x1]
    %v104 = vlaneseq
    %v105 = vand.u32 %v104, 127
    %vm106 = vcmp.ge.s32.totalorder %v105, 4
    %v107 = vld [vmem:[#allocation4] sm:$0x77]
    %v108 = vld [vmem:[#allocation4 + $0x8] sm:$0x77]
    %v109 = vld [vmem:[%s2] sm:$0xf]
    %v110 = vunpack.c.l.bf16 %v109
    %v112 = vperm.slane %v110, 0
    %v113 = vperm.slane %v110, 2
    %v114 = vperm.slane %v110, 4
    %v115 = vperm.slane %v110, 6
    %v120 = vperm.slane %v112, 0
    %v121 = vperm.slane %v113, 0
    %v122 = vperm.slane %v114, 0
    %v123 = vperm.slane %v115, 0
    %v126 = vunpack.c.l.b16 %v107
    %v127 = vunpack.c.h.b16 %v107
    %v128 = vunpack.c.l.b16 %v108
    %v129 = vunpack.c.h.b16 %v108
    %v130 = vpack.c.b16 %v126, %v126
    %v131 = vpack.c.b16 %v127, %v127
    %v132 = vpack.c.b16 %v128, %v128
    %v133 = vpack.c.b16 %v129, %v129
    %vm134 = vcmask 48128
    %v136 = vsel %vm134, %v101, 0
    %vm138 = vcmask 1042432
    %v140 = vsel %vm138, %v130, 0
    %v143 = vsel %vm138, %v131, 0
    %v146 = vsel %vm138, %v132, 0
    %v149 = vsel %vm138, %v133, 0
    %151 = vmatpush.bf16.msra.mxu0 0
    %152 = vmatpush.bf16.msra.mxu0 0
    %153 = vmatpush.bf16.msra.mxu0 0
    %154 = vmatpush.bf16.msra.mxu0 0
    %155 = vmatpush.bf16.msra.mxu0 0
    %156 = vmatpush.bf16.msra.mxu0 0
    %157 = vmatpush.bf16.msra.mxu0 0
    %158 = vmatpush.bf16.msra.mxu0 %v140
    %159 = vmatmul.bf16.gmra.mxu0 %v136
    %v160 = vpop.f32.mrf.mxu0
    %v161 = vadd.f32 %v120, %v160
    %v162 = vpop.f32.mrf.mxu0
    %163 = vdwg.mxu0
    %164 = vmatpush.bf16.msra.mxu0 0
    %165 = vmatpush.bf16.msra.mxu0 0
    %166 = vmatpush.bf16.msra.mxu0 0
    %167 = vmatpush.bf16.msra.mxu0 0
    %168 = vmatpush.bf16.msra.mxu0 0
    %169 = vmatpush.bf16.msra.mxu0 0
    %170 = vmatpush.bf16.msra.mxu0 0
    %171 = vmatpush.bf16.msra.mxu0 %v143
    %172 = vmatmul.bf16.gmra.mxu0 %v136
    %v173 = vpop.f32.mrf.mxu0
    %v174 = vadd.f32 %v121, %v173
    %v175 = vpop.f32.mrf.mxu0
    %176 = vdwg.mxu0
    %177 = vmatpush.bf16.msra.mxu0 0
    %178 = vmatpush.bf16.msra.mxu0 0
    %179 = vmatpush.bf16.msra.mxu0 0
    %180 = vmatpush.bf16.msra.mxu0 0
    %181 = vmatpush.bf16.msra.mxu0 0
    %182 = vmatpush.bf16.msra.mxu0 0
    %183 = vmatpush.bf16.msra.mxu0 0
    %184 = vmatpush.bf16.msra.mxu0 %v146
    %185 = vmatmul.bf16.gmra.mxu0 %v136
    %v186 = vpop.f32.mrf.mxu0
    %v187 = vadd.f32 %v122, %v186
    %v188 = vpop.f32.mrf.mxu0
    %189 = vdwg.mxu0
    %190 = vmatpush.bf16.msra.mxu0 0
    %191 = vmatpush.bf16.msra.mxu0 0
    %192 = vmatpush.bf16.msra.mxu0 0
    %193 = vmatpush.bf16.msra.mxu0 0
    %194 = vmatpush.bf16.msra.mxu0 0
    %195 = vmatpush.bf16.msra.mxu0 0
    %196 = vmatpush.bf16.msra.mxu0 0
    %197 = vmatpush.bf16.msra.mxu0 %v149
    %198 = vmatmul.bf16.gmra.mxu0 %v136
    %v199 = vpop.f32.mrf.mxu0
    %v200 = vadd.f32 %v123, %v199
    %v201 = vpop.f32.mrf.mxu0
    %202 = vdwg.mxu0
    %v203 = vmax.f32 %v161, 0.0
    %v204 = vmax.f32 %v174, 0.0
    %v205 = vmax.f32 %v187, 0.0
    %v206 = vmax.f32 %v200, 0.0
    %v207 = vpack.c.bf16 %v203, %v203
    %v208 = vpack.c.bf16 %v204, %v204
    %v209 = vpack.c.bf16 %v205, %v205
    %v210 = vpack.c.bf16 %v206, %v206
    %v211 = vld [vmem:[#allocation6] sm:$0xff]
    %v212 = vld [vmem:[#allocation6 + $0x8] sm:$0xff]
    %v213 = vld [vmem:[#allocation6 + $0x10] sm:$0xff]
    %v214 = vld [vmem:[#allocation6 + $0x18] sm:$0xff]
    %v215 = vld [vmem:[#allocation6 + $0x20] sm:$0xff]
    %v216 = vld [vmem:[#allocation6 + $0x28] sm:$0xff]
    %v217 = vld [vmem:[#allocation6 + $0x30] sm:$0xff]
    %v218 = vld [vmem:[#allocation6 + $0x38] sm:$0xff]
    %v219 = vld [vmem:[#allocation6 + $0x40] sm:$0xff]
    %v220 = vld [vmem:[#allocation6 + $0x48] sm:$0xff]
    %v221 = vld [vmem:[#allocation6 + $0x50] sm:$0xff]
    %v222 = vld [vmem:[#allocation6 + $0x58] sm:$0xff]
    %v223 = vld [vmem:[#allocation6 + $0x60] sm:$0xff]
    %v224 = vld [vmem:[#allocation6 + $0x68] sm:$0xff]
    %v225 = vld [vmem:[#allocation6 + $0x70] sm:$0xff]
    %v226 = vld [vmem:[#allocation6 + $0x78] sm:$0xff]
    %v227 = vld [vmem:[#allocation6 + $0x80] sm:$0xff]
    %v228 = vld [vmem:[#allocation6 + $0x88] sm:$0xff]
    %v229 = vld [vmem:[#allocation6 + $0x90] sm:$0xff]
    %v230 = vld [vmem:[#allocation6 + $0x98] sm:$0xff]
    %v231 = vld [vmem:[#allocation6 + $0xa0] sm:$0xff]
    %v232 = vld [vmem:[#allocation6 + $0xa8] sm:$0xff]
    %v233 = vld [vmem:[#allocation6 + $0xb0] sm:$0xff]
    %v234 = vld [vmem:[#allocation6 + $0xb8] sm:$0xff]
    %v235 = vld [vmem:[#allocation6 + $0xc0] sm:$0xff]
    %v236 = vld [vmem:[#allocation6 + $0xc8] sm:$0xff]
    %v237 = vld [vmem:[#allocation6 + $0xd0] sm:$0xff]
    %v238 = vld [vmem:[#allocation6 + $0xd8] sm:$0xff]
    %v239 = vld [vmem:[#allocation6 + $0xe0] sm:$0xff]
    %v240 = vld [vmem:[#allocation6 + $0xe8] sm:$0xff]
    %v241 = vld [vmem:[#allocation6 + $0xf0] sm:$0xff]
    %v242 = vld [vmem:[#allocation6 + $0xf8] sm:$0xff]
    %v243 = vld [vmem:[#allocation6 + $0x100] sm:$0xff]
    %v244 = vld [vmem:[#allocation6 + $0x108] sm:$0xff]
    %v245 = vld [vmem:[#allocation6 + $0x110] sm:$0xff]
    %v246 = vld [vmem:[#allocation6 + $0x118] sm:$0xff]
    %v247 = vld [vmem:[#allocation6 + $0x120] sm:$0xff]
    %v248 = vld [vmem:[#allocation6 + $0x128] sm:$0xff]
    %v249 = vld [vmem:[#allocation6 + $0x130] sm:$0xff]
    %v250 = vld [vmem:[#allocation6 + $0x138] sm:$0xff]
    %v251 = vld [vmem:[#allocation6 + $0x140] sm:$0xff]
    %v252 = vld [vmem:[#allocation6 + $0x148] sm:$0xff]
    %v253 = vld [vmem:[#allocation6 + $0x150] sm:$0xff]
    %v254 = vld [vmem:[#allocation6 + $0x158] sm:$0xff]
    %v255 = vld [vmem:[#allocation6 + $0x160] sm:$0xff]
    %v256 = vld [vmem:[#allocation6 + $0x168] sm:$0xff]
    %v257 = vld [vmem:[#allocation6 + $0x170] sm:$0xff]
    %v258 = vld [vmem:[#allocation6 + $0x178] sm:$0xff]
    %v259 = vld [vmem:[#allocation6 + $0x180] sm:$0xff]
    %v260 = vld [vmem:[#allocation6 + $0x188] sm:$0xff]
    %v261 = vld [vmem:[#allocation6 + $0x190] sm:$0xff]
    %v262 = vld [vmem:[#allocation6 + $0x198] sm:$0xff]
    %v263 = vld [vmem:[#allocation6 + $0x1a0] sm:$0xff]
    %v264 = vld [vmem:[#allocation6 + $0x1a8] sm:$0xff]
    %v265 = vld [vmem:[#allocation6 + $0x1b0] sm:$0xff]
    %v266 = vld [vmem:[#allocation6 + $0x1b8] sm:$0xff]
    %v267 = vld [vmem:[#allocation6 + $0x1c0] sm:$0xff]
    %v268 = vld [vmem:[#allocation6 + $0x1c8] sm:$0xff]
    %v269 = vld [vmem:[#allocation6 + $0x1d0] sm:$0xff]
    %v270 = vld [vmem:[#allocation6 + $0x1d8] sm:$0xff]
    %v271 = vld [vmem:[#allocation6 + $0x1e0] sm:$0xff]
    %v272 = vld [vmem:[#allocation6 + $0x1e8] sm:$0xff]
    %v273 = vld [vmem:[#allocation6 + $0x1f0] sm:$0xff]
    %v274 = vld [vmem:[#allocation6 + $0x1f8] sm:$0xff]
    %v275 = vld [vmem:[#allocation6 + $0x200] sm:$0xff]
    %v276 = vld [vmem:[#allocation6 + $0x208] sm:$0xff]
    %v277 = vld [vmem:[#allocation6 + $0x210] sm:$0xff]
    %v278 = vld [vmem:[#allocation6 + $0x218] sm:$0xff]
    %v279 = vld [vmem:[#allocation6 + $0x220] sm:$0xff]
    %v280 = vld [vmem:[#allocation6 + $0x228] sm:$0xff]
    %v281 = vld [vmem:[#allocation6 + $0x230] sm:$0xff]
    %v282 = vld [vmem:[#allocation6 + $0x238] sm:$0xff]
    %v283 = vld [vmem:[#allocation6 + $0x240] sm:$0xff]
    %v284 = vld [vmem:[#allocation6 + $0x248] sm:$0xff]
    %v285 = vld [vmem:[#allocation6 + $0x250] sm:$0xff]
    %v286 = vld [vmem:[#allocation6 + $0x258] sm:$0xff]
    %v287 = vld [vmem:[#allocation6 + $0x260] sm:$0xff]
    %v288 = vld [vmem:[#allocation6 + $0x268] sm:$0xff]
    %v289 = vld [vmem:[#allocation6 + $0x270] sm:$0xff]
    %v290 = vld [vmem:[#allocation6 + $0x278] sm:$0xff]
    %v291 = vld [vmem:[#allocation6 + $0x280] sm:$0xff]
    %v292 = vld [vmem:[#allocation6 + $0x288] sm:$0xff]
    %v293 = vld [vmem:[#allocation6 + $0x290] sm:$0xff]
    %v294 = vld [vmem:[#allocation6 + $0x298] sm:$0xff]
    %v295 = vld [vmem:[#allocation6 + $0x2a0] sm:$0xff]
    %v296 = vld [vmem:[#allocation6 + $0x2a8] sm:$0xff]
    %v297 = vld [vmem:[#allocation6 + $0x2b0] sm:$0xff]
    %v298 = vld [vmem:[#allocation6 + $0x2b8] sm:$0xff]
    %v299 = vld [vmem:[#allocation6 + $0x2c0] sm:$0xff]
    %v300 = vld [vmem:[#allocation6 + $0x2c8] sm:$0xff]
    %v301 = vld [vmem:[#allocation6 + $0x2d0] sm:$0xff]
    %v302 = vld [vmem:[#allocation6 + $0x2d8] sm:$0xff]
    %v303 = vld [vmem:[#allocation6 + $0x2e0] sm:$0xff]
    %v304 = vld [vmem:[#allocation6 + $0x2e8] sm:$0xff]
    %v305 = vld [vmem:[#allocation6 + $0x2f0] sm:$0xff]
    %v306 = vld [vmem:[#allocation6 + $0x2f8] sm:$0xff]
    %v307 = vld [vmem:[#allocation6 + $0x300] sm:$0xff]
    %v308 = vld [vmem:[#allocation6 + $0x308] sm:$0xff]
    %v309 = vld [vmem:[#allocation6 + $0x310] sm:$0xff]
    %v310 = vld [vmem:[#allocation6 + $0x318] sm:$0xff]
    %v311 = vld [vmem:[%s4] sm:$0xf]
    %v312 = vunpack.c.l.bf16 %v311
    %v314 = vperm.slane %v312, 0
    %v315 = vperm.slane %v312, 2
    %v316 = vperm.slane %v312, 4
    %v317 = vperm.slane %v312, 6
    %v322 = vperm.slane %v314, 0
    %v323 = vperm.slane %v315, 0
    %v324 = vperm.slane %v316, 0
    %v325 = vperm.slane %v317, 0
    %v426 = vunpack.c.l.b16 %v211
    %v427 = vunpack.c.h.b16 %v211
    %v428 = vunpack.c.l.b16 %v212
    %v429 = vunpack.c.h.b16 %v212
    %v430 = vunpack.c.l.b16 %v213
    %v431 = vunpack.c.h.b16 %v213
    %v432 = vunpack.c.l.b16 %v214
    %v433 = vunpack.c.h.b16 %v214
    %v434 = vunpack.c.l.b16 %v215
    %v435 = vunpack.c.h.b16 %v215
    %v436 = vunpack.c.l.b16 %v216
    %v437 = vunpack.c.h.b16 %v216
    %v438 = vunpack.c.l.b16 %v217
    %v439 = vunpack.c.h.b16 %v217
    %v440 = vunpack.c.l.b16 %v218
    %v441 = vunpack.c.h.b16 %v218
    %v442 = vunpack.c.l.b16 %v219
    %v443 = vunpack.c.h.b16 %v219
    %v444 = vunpack.c.l.b16 %v220
    %v445 = vunpack.c.h.b16 %v220
    %v446 = vunpack.c.l.b16 %v221
    %v447 = vunpack.c.h.b16 %v221
    %v448 = vunpack.c.l.b16 %v222
    %v449 = vunpack.c.h.b16 %v222
    %v450 = vunpack.c.l.b16 %v223
    %v451 = vunpack.c.h.b16 %v223
    %v452 = vunpack.c.l.b16 %v224
    %v453 = vunpack.c.h.b16 %v224
    %v454 = vunpack.c.l.b16 %v225
    %v455 = vunpack.c.h.b16 %v225
    %v456 = vunpack.c.l.b16 %v226
    %v457 = vunpack.c.h.b16 %v226
    %v458 = vunpack.c.l.b16 %v227
    %v459 = vunpack.c.h.b16 %v227
    %v460 = vunpack.c.l.b16 %v228
    %v461 = vunpack.c.h.b16 %v228
    %v462 = vunpack.c.l.b16 %v229
    %v463 = vunpack.c.h.b16 %v229
    %v464 = vunpack.c.l.b16 %v230
    %v465 = vunpack.c.h.b16 %v230
    %v466 = vunpack.c.l.b16 %v231
    %v467 = vunpack.c.h.b16 %v231
    %v468 = vunpack.c.l.b16 %v232
    %v469 = vunpack.c.h.b16 %v232
    %v470 = vunpack.c.l.b16 %v233
    %v471 = vunpack.c.h.b16 %v233
    %v472 = vunpack.c.l.b16 %v234
    %v473 = vunpack.c.h.b16 %v234
    %v474 = vunpack.c.l.b16 %v235
    %v475 = vunpack.c.h.b16 %v235
    %v476 = vunpack.c.l.b16 %v236
    %v477 = vunpack.c.h.b16 %v236
    %v478 = vunpack.c.l.b16 %v237
    %v479 = vunpack.c.h.b16 %v237
    %v480 = vunpack.c.l.b16 %v238
    %v481 = vunpack.c.h.b16 %v238
    %v482 = vunpack.c.l.b16 %v239
    %v483 = vunpack.c.h.b16 %v239
    %v484 = vunpack.c.l.b16 %v240
    %v485 = vunpack.c.h.b16 %v240
    %v486 = vunpack.c.l.b16 %v241
    %v487 = vunpack.c.h.b16 %v241
    %v488 = vunpack.c.l.b16 %v242
    %v489 = vunpack.c.h.b16 %v242
    %v490 = vunpack.c.l.b16 %v243
    %v491 = vunpack.c.h.b16 %v243
    %v492 = vunpack.c.l.b16 %v244
    %v493 = vunpack.c.h.b16 %v244
    %v494 = vunpack.c.l.b16 %v245
    %v495 = vunpack.c.h.b16 %v245
    %v496 = vunpack.c.l.b16 %v246
    %v497 = vunpack.c.h.b16 %v246
    %v498 = vunpack.c.l.b16 %v247
    %v499 = vunpack.c.h.b16 %v247
    %v500 = vunpack.c.l.b16 %v248
    %v501 = vunpack.c.h.b16 %v248
    %v502 = vunpack.c.l.b16 %v249
    %v503 = vunpack.c.h.b16 %v249
    %v504 = vunpack.c.l.b16 %v250
    %v505 = vunpack.c.h.b16 %v250
    %v506 = vunpack.c.l.b16 %v251
    %v507 = vunpack.c.h.b16 %v251
    %v508 = vunpack.c.l.b16 %v252
    %v509 = vunpack.c.h.b16 %v252
    %v510 = vunpack.c.l.b16 %v253
    %v511 = vunpack.c.h.b16 %v253
    %v512 = vunpack.c.l.b16 %v254
    %v513 = vunpack.c.h.b16 %v254
    %v514 = vunpack.c.l.b16 %v255
    %v515 = vunpack.c.h.b16 %v255
    %v516 = vunpack.c.l.b16 %v256
    %v517 = vunpack.c.h.b16 %v256
    %v518 = vunpack.c.l.b16 %v257
    %v519 = vunpack.c.h.b16 %v257
    %v520 = vunpack.c.l.b16 %v258
    %v521 = vunpack.c.h.b16 %v258
    %v522 = vunpack.c.l.b16 %v259
    %v523 = vunpack.c.h.b16 %v259
    %v524 = vunpack.c.l.b16 %v260
    %v525 = vunpack.c.h.b16 %v260
    %v526 = vunpack.c.l.b16 %v261
    %v527 = vunpack.c.h.b16 %v261
    %v528 = vunpack.c.l.b16 %v262
    %v529 = vunpack.c.h.b16 %v262
    %v530 = vunpack.c.l.b16 %v263
    %v531 = vunpack.c.h.b16 %v263
    %v532 = vunpack.c.l.b16 %v264
    %v533 = vunpack.c.h.b16 %v264
    %v534 = vunpack.c.l.b16 %v265
    %v535 = vunpack.c.h.b16 %v265
    %v536 = vunpack.c.l.b16 %v266
    %v537 = vunpack.c.h.b16 %v266
    %v538 = vunpack.c.l.b16 %v267
    %v539 = vunpack.c.h.b16 %v267
    %v540 = vunpack.c.l.b16 %v268
    %v541 = vunpack.c.h.b16 %v268
    %v542 = vunpack.c.l.b16 %v269
    %v543 = vunpack.c.h.b16 %v269
    %v544 = vunpack.c.l.b16 %v270
    %v545 = vunpack.c.h.b16 %v270
    %v546 = vunpack.c.l.b16 %v271
    %v547 = vunpack.c.h.b16 %v271
    %v548 = vunpack.c.l.b16 %v272
    %v549 = vunpack.c.h.b16 %v272
    %v550 = vunpack.c.l.b16 %v273
    %v551 = vunpack.c.h.b16 %v273
    %v552 = vunpack.c.l.b16 %v274
    %v553 = vunpack.c.h.b16 %v274
    %v554 = vunpack.c.l.b16 %v275
    %v555 = vunpack.c.h.b16 %v275
    %v556 = vunpack.c.l.b16 %v276
    %v557 = vunpack.c.h.b16 %v276
    %v558 = vunpack.c.l.b16 %v277
    %v559 = vunpack.c.h.b16 %v277
    %v560 = vunpack.c.l.b16 %v278
    %v561 = vunpack.c.h.b16 %v278
    %v562 = vunpack.c.l.b16 %v279
    %v563 = vunpack.c.h.b16 %v279
    %v564 = vunpack.c.l.b16 %v280
    %v565 = vunpack.c.h.b16 %v280
    %v566 = vunpack.c.l.b16 %v281
    %v567 = vunpack.c.h.b16 %v281
    %v568 = vunpack.c.l.b16 %v282
    %v569 = vunpack.c.h.b16 %v282
    %v570 = vunpack.c.l.b16 %v283
    %v571 = vunpack.c.h.b16 %v283
    %v572 = vunpack.c.l.b16 %v284
    %v573 = vunpack.c.h.b16 %v284
    %v574 = vunpack.c.l.b16 %v285
    %v575 = vunpack.c.h.b16 %v285
    %v576 = vunpack.c.l.b16 %v286
    %v577 = vunpack.c.h.b16 %v286
    %v578 = vunpack.c.l.b16 %v287
    %v579 = vunpack.c.h.b16 %v287
    %v580 = vunpack.c.l.b16 %v288
    %v581 = vunpack.c.h.b16 %v288
    %v582 = vunpack.c.l.b16 %v289
    %v583 = vunpack.c.h.b16 %v289
    %v584 = vunpack.c.l.b16 %v290
    %v585 = vunpack.c.h.b16 %v290
    %v586 = vunpack.c.l.b16 %v291
    %v587 = vunpack.c.h.b16 %v291
    %v588 = vunpack.c.l.b16 %v292
    %v589 = vunpack.c.h.b16 %v292
    %v590 = vunpack.c.l.b16 %v293
    %v591 = vunpack.c.h.b16 %v293
    %v592 = vunpack.c.l.b16 %v294
    %v593 = vunpack.c.h.b16 %v294
    %v594 = vunpack.c.l.b16 %v295
    %v595 = vunpack.c.h.b16 %v295
    %v596 = vunpack.c.l.b16 %v296
    %v597 = vunpack.c.h.b16 %v296
    %v598 = vunpack.c.l.b16 %v297
    %v599 = vunpack.c.h.b16 %v297
    %v600 = vunpack.c.l.b16 %v298
    %v601 = vunpack.c.h.b16 %v298
    %v602 = vunpack.c.l.b16 %v299
    %v603 = vunpack.c.h.b16 %v299
    %v604 = vunpack.c.l.b16 %v300
    %v605 = vunpack.c.h.b16 %v300
    %v606 = vunpack.c.l.b16 %v301
    %v607 = vunpack.c.h.b16 %v301
    %v608 = vunpack.c.l.b16 %v302
    %v609 = vunpack.c.h.b16 %v302
    %v610 = vunpack.c.l.b16 %v303
    %v611 = vunpack.c.h.b16 %v303
    %v612 = vunpack.c.l.b16 %v304
    %v613 = vunpack.c.h.b16 %v304
    %v614 = vunpack.c.l.b16 %v305
    %v615 = vunpack.c.h.b16 %v305
    %v616 = vunpack.c.l.b16 %v306
    %v617 = vunpack.c.h.b16 %v306
    %v618 = vunpack.c.l.b16 %v307
    %v619 = vunpack.c.h.b16 %v307
    %v620 = vunpack.c.l.b16 %v308
    %v621 = vunpack.c.h.b16 %v308
    %v622 = vunpack.c.l.b16 %v309
    %v623 = vunpack.c.h.b16 %v309
    %v624 = vunpack.c.l.b16 %v310
    %v625 = vunpack.c.h.b16 %v310
    %v626 = vpack.c.b16 %v430, %v426
    %v627 = vpack.c.b16 %v431, %v427
    %v628 = vpack.c.b16 %v432, %v428
    %v629 = vpack.c.b16 %v433, %v429
    %v630 = vpack.c.b16 %v438, %v434
    %v631 = vpack.c.b16 %v439, %v435
    %v632 = vpack.c.b16 %v440, %v436
    %v633 = vpack.c.b16 %v441, %v437
    %v634 = vpack.c.b16 %v446, %v442
    %v635 = vpack.c.b16 %v447, %v443
    %v636 = vpack.c.b16 %v448, %v444
    %v637 = vpack.c.b16 %v449, %v445
    %v638 = vpack.c.b16 %v454, %v450
    %v639 = vpack.c.b16 %v455, %v451
    %v640 = vpack.c.b16 %v456, %v452
    %v641 = vpack.c.b16 %v457, %v453
    %v642 = vpack.c.b16 %v462, %v458
    %v643 = vpack.c.b16 %v463, %v459
    %v644 = vpack.c.b16 %v464, %v460
    %v645 = vpack.c.b16 %v465, %v461
    %v646 = vpack.c.b16 %v470, %v466
    %v647 = vpack.c.b16 %v471, %v467
    %v648 = vpack.c.b16 %v472, %v468
    %v649 = vpack.c.b16 %v473, %v469
    %v650 = vpack.c.b16 %v478, %v474
    %v651 = vpack.c.b16 %v479, %v475
    %v652 = vpack.c.b16 %v480, %v476
    %v653 = vpack.c.b16 %v481, %v477
    %v654 = vpack.c.b16 %v486, %v482
    %v655 = vpack.c.b16 %v487, %v483
    %v656 = vpack.c.b16 %v488, %v484
    %v657 = vpack.c.b16 %v489, %v485
    %v658 = vpack.c.b16 %v494, %v490
    %v659 = vpack.c.b16 %v495, %v491
    %v660 = vpack.c.b16 %v496, %v492
    %v661 = vpack.c.b16 %v497, %v493
    %v662 = vpack.c.b16 %v502, %v498
    %v663 = vpack.c.b16 %v503, %v499
    %v664 = vpack.c.b16 %v504, %v500
    %v665 = vpack.c.b16 %v505, %v501
    %v666 = vpack.c.b16 %v510, %v506
    %v667 = vpack.c.b16 %v511, %v507
    %v668 = vpack.c.b16 %v512, %v508
    %v669 = vpack.c.b16 %v513, %v509
    %v670 = vpack.c.b16 %v518, %v514
    %v671 = vpack.c.b16 %v519, %v515
    %v672 = vpack.c.b16 %v520, %v516
    %v673 = vpack.c.b16 %v521, %v517
    %v674 = vpack.c.b16 %v526, %v522
    %v675 = vpack.c.b16 %v527, %v523
    %v676 = vpack.c.b16 %v528, %v524
    %v677 = vpack.c.b16 %v529, %v525
    %v678 = vpack.c.b16 %v534, %v530
    %v679 = vpack.c.b16 %v535, %v531
    %v680 = vpack.c.b16 %v536, %v532
    %v681 = vpack.c.b16 %v537, %v533
    %v682 = vpack.c.b16 %v542, %v538
    %v683 = vpack.c.b16 %v543, %v539
    %v684 = vpack.c.b16 %v544, %v540
    %v685 = vpack.c.b16 %v545, %v541
    %v686 = vpack.c.b16 %v550, %v546
    %v687 = vpack.c.b16 %v551, %v547
    %v688 = vpack.c.b16 %v552, %v548
    %v689 = vpack.c.b16 %v553, %v549
    %v690 = vpack.c.b16 %v558, %v554
    %v691 = vpack.c.b16 %v559, %v555
    %v692 = vpack.c.b16 %v560, %v556
    %v693 = vpack.c.b16 %v561, %v557
    %v694 = vpack.c.b16 %v566, %v562
    %v695 = vpack.c.b16 %v567, %v563
    %v696 = vpack.c.b16 %v568, %v564
    %v697 = vpack.c.b16 %v569, %v565
    %v698 = vpack.c.b16 %v574, %v570
    %v699 = vpack.c.b16 %v575, %v571
    %v700 = vpack.c.b16 %v576, %v572
    %v701 = vpack.c.b16 %v577, %v573
    %v702 = vpack.c.b16 %v582, %v578
    %v703 = vpack.c.b16 %v583, %v579
    %v704 = vpack.c.b16 %v584, %v580
    %v705 = vpack.c.b16 %v585, %v581
    %v706 = vpack.c.b16 %v590, %v586
    %v707 = vpack.c.b16 %v591, %v587
    %v708 = vpack.c.b16 %v592, %v588
    %v709 = vpack.c.b16 %v593, %v589
    %v710 = vpack.c.b16 %v598, %v594
    %v711 = vpack.c.b16 %v599, %v595
    %v712 = vpack.c.b16 %v600, %v596
    %v713 = vpack.c.b16 %v601, %v597
    %v714 = vpack.c.b16 %v606, %v602
    %v715 = vpack.c.b16 %v607, %v603
    %v716 = vpack.c.b16 %v608, %v604
    %v717 = vpack.c.b16 %v609, %v605
    %v718 = vpack.c.b16 %v614, %v610
    %v719 = vpack.c.b16 %v615, %v611
    %v720 = vpack.c.b16 %v616, %v612
    %v721 = vpack.c.b16 %v617, %v613
    %v722 = vpack.c.b16 %v622, %v618
    %v723 = vpack.c.b16 %v623, %v619
    %v724 = vpack.c.b16 %v624, %v620
    %v725 = vpack.c.b16 %v625, %v621
    %vm826 = vcmask 130048
    %v828 = vsel %vm826, %v210, 0
    %830 = vmatpush.bf16.msra.mxu0 %v654
    %831 = vmatpush.bf16.msra.mxu0 %v650
    %832 = vmatpush.bf16.msra.mxu0 %v646
    %833 = vmatpush.bf16.msra.mxu0 %v642
    %834 = vmatpush.bf16.msra.mxu0 %v638
    %835 = vmatpush.bf16.msra.mxu0 %v634
    %836 = vmatpush.bf16.msra.mxu0 %v630
    %837 = vmatpush.bf16.msra.mxu0 %v626
    %838 = vmatmul.bf16.gmra.mxu0 %v207
    %v839 = vpop.f32.mrf.mxu0
    %v840 = vadd.f32 %v322, %v839
    %v841 = vpop.f32.mrf.mxu0
    %842 = vdwg.mxu0
    %843 = vmatpush.bf16.msra.mxu0 %v686
    %844 = vmatpush.bf16.msra.mxu0 %v682
    %845 = vmatpush.bf16.msra.mxu0 %v678
    %846 = vmatpush.bf16.msra.mxu0 %v674
    %847 = vmatpush.bf16.msra.mxu0 %v670
    %848 = vmatpush.bf16.msra.mxu0 %v666
    %849 = vmatpush.bf16.msra.mxu0 %v662
    %850 = vmatpush.bf16.msra.mxu0 %v658
    %851 = vmatmul.bf16.gmra.mxu0 %v208
    %v852 = vpop.f32.mrf.mxu0
    %v853 = vadd.f32 %v840, %v852
    %v854 = vpop.f32.mrf.mxu0
    %855 = vdwg.mxu0
    %856 = vmatpush.bf16.msra.mxu0 %v718
    %857 = vmatpush.bf16.msra.mxu0 %v714
    %858 = vmatpush.bf16.msra.mxu0 %v710
    %859 = vmatpush.bf16.msra.mxu0 %v706
    %860 = vmatpush.bf16.msra.mxu0 %v702
    %861 = vmatpush.bf16.msra.mxu0 %v698
    %862 = vmatpush.bf16.msra.mxu0 %v694
    %863 = vmatpush.bf16.msra.mxu0 %v690
    %864 = vmatmul.bf16.gmra.mxu0 %v209
    %v865 = vpop.f32.mrf.mxu0
    %v866 = vadd.f32 %v853, %v865
    %v867 = vpop.f32.mrf.mxu0
    %868 = vdwg.mxu0
    %869 = vmatpush.bf16.msra.mxu0 0
    %870 = vmatpush.bf16.msra.mxu0 0
    %871 = vmatpush.bf16.msra.mxu0 0
    %872 = vmatpush.bf16.msra.mxu0 0
    %873 = vmatpush.bf16.msra.mxu0 0
    %874 = vmatpush.bf16.msra.mxu0 0
    %875 = vmatpush.bf16.msra.mxu0 0
    %876 = vmatpush.bf16.msra.mxu0 %v722
    %877 = vmatmul.bf16.gmra.mxu0 %v828
    %v878 = vpop.f32.mrf.mxu0
    %v879 = vadd.f32 %v866, %v878
    %v880 = vpop.f32.mrf.mxu0
    %881 = vdwg.mxu0
    %882 = vmatpush.bf16.msra.mxu0 %v655
    %883 = vmatpush.bf16.msra.mxu0 %v651
    %884 = vmatpush.bf16.msra.mxu0 %v647
    %885 = vmatpush.bf16.msra.mxu0 %v643
    %886 = vmatpush.bf16.msra.mxu0 %v639
    %887 = vmatpush.bf16.msra.mxu0 %v635
    %888 = vmatpush.bf16.msra.mxu0 %v631
    %889 = vmatpush.bf16.msra.mxu0 %v627
    %890 = vmatmul.bf16.gmra.mxu0 %v207
    %v891 = vpop.f32.mrf.mxu0
    %v892 = vadd.f32 %v323, %v891
    %v893 = vpop.f32.mrf.mxu0
    %894 = vdwg.mxu0
    %895 = vmatpush.bf16.msra.mxu0 %v687
    %896 = vmatpush.bf16.msra.mxu0 %v683
    %897 = vmatpush.bf16.msra.mxu0 %v679
    %898 = vmatpush.bf16.msra.mxu0 %v675
    %899 = vmatpush.bf16.msra.mxu0 %v671
    %900 = vmatpush.bf16.msra.mxu0 %v667
    %901 = vmatpush.bf16.msra.mxu0 %v663
    %902 = vmatpush.bf16.msra.mxu0 %v659
    %903 = vmatmul.bf16.gmra.mxu0 %v208
    %v904 = vpop.f32.mrf.mxu0
    %v905 = vadd.f32 %v892, %v904
    %v906 = vpop.f32.mrf.mxu0
    %907 = vdwg.mxu0
    %908 = vmatpush.bf16.msra.mxu0 %v719
    %909 = vmatpush.bf16.msra.mxu0 %v715
    %910 = vmatpush.bf16.msra.mxu0 %v711
    %911 = vmatpush.bf16.msra.mxu0 %v707
    %912 = vmatpush.bf16.msra.mxu0 %v703
    %913 = vmatpush.bf16.msra.mxu0 %v699
    %914 = vmatpush.bf16.msra.mxu0 %v695
    %915 = vmatpush.bf16.msra.mxu0 %v691
    %916 = vmatmul.bf16.gmra.mxu0 %v209
    %v917 = vpop.f32.mrf.mxu0
    %v918 = vadd.f32 %v905, %v917
    %v919 = vpop.f32.mrf.mxu0
    %920 = vdwg.mxu0
    %921 = vmatpush.bf16.msra.mxu0 0
    %922 = vmatpush.bf16.msra.mxu0 0
    %923 = vmatpush.bf16.msra.mxu0 0
    %924 = vmatpush.bf16.msra.mxu0 0
    %925 = vmatpush.bf16.msra.mxu0 0
    %926 = vmatpush.bf16.msra.mxu0 0
    %927 = vmatpush.bf16.msra.mxu0 0
    %928 = vmatpush.bf16.msra.mxu0 %v723
    %929 = vmatmul.bf16.gmra.mxu0 %v828
    %v930 = vpop.f32.mrf.mxu0
    %v931 = vadd.f32 %v918, %v930
    %v932 = vpop.f32.mrf.mxu0
    %933 = vdwg.mxu0
    %934 = vmatpush.bf16.msra.mxu0 %v656
    %935 = vmatpush.bf16.msra.mxu0 %v652
    %936 = vmatpush.bf16.msra.mxu0 %v648
    %937 = vmatpush.bf16.msra.mxu0 %v644
    %938 = vmatpush.bf16.msra.mxu0 %v640
    %939 = vmatpush.bf16.msra.mxu0 %v636
    %940 = vmatpush.bf16.msra.mxu0 %v632
    %941 = vmatpush.bf16.msra.mxu0 %v628
    %942 = vmatmul.bf16.gmra.mxu0 %v207
    %v943 = vpop.f32.mrf.mxu0
    %v944 = vadd.f32 %v324, %v943
    %v945 = vpop.f32.mrf.mxu0
    %946 = vdwg.mxu0
    %947 = vmatpush.bf16.msra.mxu0 %v688
    %948 = vmatpush.bf16.msra.mxu0 %v684
    %949 = vmatpush.bf16.msra.mxu0 %v680
    %950 = vmatpush.bf16.msra.mxu0 %v676
    %951 = vmatpush.bf16.msra.mxu0 %v672
    %952 = vmatpush.bf16.msra.mxu0 %v668
    %953 = vmatpush.bf16.msra.mxu0 %v664
    %954 = vmatpush.bf16.msra.mxu0 %v660
    %955 = vmatmul.bf16.gmra.mxu0 %v208
    %v956 = vpop.f32.mrf.mxu0
    %v957 = vadd.f32 %v944, %v956
    %v958 = vpop.f32.mrf.mxu0
    %959 = vdwg.mxu0
    %960 = vmatpush.bf16.msra.mxu0 %v720
    %961 = vmatpush.bf16.msra.mxu0 %v716
    %962 = vmatpush.bf16.msra.mxu0 %v712
    %963 = vmatpush.bf16.msra.mxu0 %v708
    %964 = vmatpush.bf16.msra.mxu0 %v704
    %965 = vmatpush.bf16.msra.mxu0 %v700
    %966 = vmatpush.bf16.msra.mxu0 %v696
    %967 = vmatpush.bf16.msra.mxu0 %v692
    %968 = vmatmul.bf16.gmra.mxu0 %v209
    %v969 = vpop.f32.mrf.mxu0
    %v970 = vadd.f32 %v957, %v969
    %v971 = vpop.f32.mrf.mxu0
    %972 = vdwg.mxu0
    %973 = vmatpush.bf16.msra.mxu0 0
    %974 = vmatpush.bf16.msra.mxu0 0
    %975 = vmatpush.bf16.msra.mxu0 0
    %976 = vmatpush.bf16.msra.mxu0 0
    %977 = vmatpush.bf16.msra.mxu0 0
    %978 = vmatpush.bf16.msra.mxu0 0
    %979 = vmatpush.bf16.msra.mxu0 0
    %980 = vmatpush.bf16.msra.mxu0 %v724
    %981 = vmatmul.bf16.gmra.mxu0 %v828
    %v982 = vpop.f32.mrf.mxu0
    %v983 = vadd.f32 %v970, %v982
    %v984 = vpop.f32.mrf.mxu0
    %985 = vdwg.mxu0
    %986 = vmatpush.bf16.msra.mxu0 %v657
    %987 = vmatpush.bf16.msra.mxu0 %v653
    %988 = vmatpush.bf16.msra.mxu0 %v649
    %989 = vmatpush.bf16.msra.mxu0 %v645
    %990 = vmatpush.bf16.msra.mxu0 %v641
    %991 = vmatpush.bf16.msra.mxu0 %v637
    %992 = vmatpush.bf16.msra.mxu0 %v633
    %993 = vmatpush.bf16.msra.mxu0 %v629
    %994 = vmatmul.bf16.gmra.mxu0 %v207
    %v995 = vpop.f32.mrf.mxu0
    %v996 = vadd.f32 %v325, %v995
    %v997 = vpop.f32.mrf.mxu0
    %998 = vdwg.mxu0
    %999 = vmatpush.bf16.msra.mxu0 %v689
    %1000 = vmatpush.bf16.msra.mxu0 %v685
    %1001 = vmatpush.bf16.msra.mxu0 %v681
    %1002 = vmatpush.bf16.msra.mxu0 %v677
    %1003 = vmatpush.bf16.msra.mxu0 %v673
    %1004 = vmatpush.bf16.msra.mxu0 %v669
    %1005 = vmatpush.bf16.msra.mxu0 %v665
    %1006 = vmatpush.bf16.msra.mxu0 %v661
    %1007 = vmatmul.bf16.gmra.mxu0 %v208
    %v1008 = vpop.f32.mrf.mxu0
    %v1009 = vadd.f32 %v996, %v1008
    %v1010 = vpop.f32.mrf.mxu0
    %1011 = vdwg.mxu0
    %1012 = vmatpush.bf16.msra.mxu0 %v721
    %1013 = vmatpush.bf16.msra.mxu0 %v717
    %1014 = vmatpush.bf16.msra.mxu0 %v713
    %1015 = vmatpush.bf16.msra.mxu0 %v709
    %1016 = vmatpush.bf16.msra.mxu0 %v705
    %1017 = vmatpush.bf16.msra.mxu0 %v701
    %1018 = vmatpush.bf16.msra.mxu0 %v697
    %1019 = vmatpush.bf16.msra.mxu0 %v693
    %1020 = vmatmul.bf16.gmra.mxu0 %v209
    %v1021 = vpop.f32.mrf.mxu0
    %v1022 = vadd.f32 %v1009, %v1021
    %v1023 = vpop.f32.mrf.mxu0
    %1024 = vdwg.mxu0
    %1025 = vmatpush.bf16.msra.mxu0 0
    %1026 = vmatpush.bf16.msra.mxu0 0
    %1027 = vmatpush.bf16.msra.mxu0 0
    %1028 = vmatpush.bf16.msra.mxu0 0
    %1029 = vmatpush.bf16.msra.mxu0 0
    %1030 = vmatpush.bf16.msra.mxu0 0
    %1031 = vmatpush.bf16.msra.mxu0 0
    %1032 = vmatpush.bf16.msra.mxu0 %v725
    %1033 = vmatmul.bf16.gmra.mxu0 %v828
    %v1034 = vpop.f32.mrf.mxu0
    %v1035 = vadd.f32 %v1022, %v1034
    %v1036 = vpop.f32.mrf.mxu0
    %1037 = vdwg.mxu0
    %v1038 = vmax.f32 %v879, 0.0
    %v1039 = vmax.f32 %v931, 0.0
    %v1040 = vmax.f32 %v983, 0.0
    %v1041 = vmax.f32 %v1035, 0.0
    %v1042 = vpack.c.bf16 %v1038, %v1038
    %v1043 = vpack.c.bf16 %v1039, %v1039
    %v1044 = vpack.c.bf16 %v1040, %v1040
    %v1045 = vpack.c.bf16 %v1041, %v1041
    %v1046 = vld [vmem:[#allocation7] sm:$0xff]
    %v1047 = vld [vmem:[#allocation7 + $0x8] sm:$0xff]
    %v1048 = vld [vmem:[#allocation7 + $0x10] sm:$0xff]
    %v1049 = vld [vmem:[#allocation7 + $0x18] sm:$0xff]
    %v1050 = vld [vmem:[#allocation7 + $0x20] sm:$0xff]
    %v1051 = vld [vmem:[#allocation7 + $0x28] sm:$0xff]
    %v1052 = vld [vmem:[#allocation7 + $0x30] sm:$0xff]
    %v1053 = vld [vmem:[#allocation7 + $0x38] sm:$0xff]
    %v1054 = vld [vmem:[#allocation7 + $0x40] sm:$0xff]
    %v1055 = vld [vmem:[#allocation7 + $0x48] sm:$0xff]
    %v1056 = vld [vmem:[#allocation7 + $0x50] sm:$0xff]
    %v1057 = vld [vmem:[#allocation7 + $0x58] sm:$0xff]
    %v1058 = vld [vmem:[#allocation7 + $0x60] sm:$0xff]
    %v1059 = vld [vmem:[#allocation7 + $0x68] sm:$0xff]
    %v1060 = vld [vmem:[#allocation7 + $0x70] sm:$0xff]
    %v1061 = vld [vmem:[#allocation7 + $0x78] sm:$0xff]
    %v1062 = vld [vmem:[#allocation7 + $0x80] sm:$0xff]
    %v1063 = vld [vmem:[#allocation7 + $0x88] sm:$0xff]
    %v1064 = vld [vmem:[#allocation7 + $0x90] sm:$0xff]
    %v1065 = vld [vmem:[#allocation7 + $0x98] sm:$0xff]
    %v1066 = vld [vmem:[#allocation7 + $0xa0] sm:$0xff]
    %v1067 = vld [vmem:[#allocation7 + $0xa8] sm:$0xff]
    %v1068 = vld [vmem:[#allocation7 + $0xb0] sm:$0xff]
    %v1069 = vld [vmem:[#allocation7 + $0xb8] sm:$0xff]
    %v1070 = vld [vmem:[#allocation7 + $0xc0] sm:$0xff]
    %v1071 = vld [vmem:[#allocation7 + $0xc8] sm:$0xff]
    %v1072 = vld [vmem:[#allocation7 + $0xd0] sm:$0xff]
    %v1073 = vld [vmem:[#allocation7 + $0xd8] sm:$0xff]
    %v1074 = vld [vmem:[#allocation7 + $0xe0] sm:$0xff]
    %v1075 = vld [vmem:[#allocation7 + $0xe8] sm:$0xff]
    %v1076 = vld [vmem:[#allocation7 + $0xf0] sm:$0xff]
    %v1077 = vld [vmem:[#allocation7 + $0xf8] sm:$0xff]
    %v1078 = vld [vmem:[#allocation7 + $0x100] sm:$0xff]
    %v1079 = vld [vmem:[#allocation7 + $0x108] sm:$0xff]
    %v1080 = vld [vmem:[#allocation7 + $0x110] sm:$0xff]
    %v1081 = vld [vmem:[#allocation7 + $0x118] sm:$0xff]
    %v1082 = vld [vmem:[#allocation7 + $0x120] sm:$0xff]
    %v1083 = vld [vmem:[#allocation7 + $0x128] sm:$0xff]
    %v1084 = vld [vmem:[#allocation7 + $0x130] sm:$0xff]
    %v1085 = vld [vmem:[#allocation7 + $0x138] sm:$0xff]
    %v1086 = vld [vmem:[#allocation7 + $0x140] sm:$0xff]
    %v1087 = vld [vmem:[#allocation7 + $0x148] sm:$0xff]
    %v1088 = vld [vmem:[#allocation7 + $0x150] sm:$0xff]
    %v1089 = vld [vmem:[#allocation7 + $0x158] sm:$0xff]
    %v1090 = vld [vmem:[#allocation7 + $0x160] sm:$0xff]
    %v1091 = vld [vmem:[#allocation7 + $0x168] sm:$0xff]
    %v1092 = vld [vmem:[#allocation7 + $0x170] sm:$0xff]
    %v1093 = vld [vmem:[#allocation7 + $0x178] sm:$0xff]
    %v1094 = vld [vmem:[#allocation7 + $0x180] sm:$0xff]
    %v1095 = vld [vmem:[#allocation7 + $0x188] sm:$0xff]
    %v1096 = vld [vmem:[#allocation7 + $0x190] sm:$0xff]
    %v1097 = vld [vmem:[#allocation7 + $0x198] sm:$0xff]
    %v1098 = vld [vmem:[#allocation7 + $0x1a0] sm:$0xff]
    %v1099 = vld [vmem:[#allocation7 + $0x1a8] sm:$0xff]
    %v1100 = vld [vmem:[#allocation7 + $0x1b0] sm:$0xff]
    %v1101 = vld [vmem:[#allocation7 + $0x1b8] sm:$0xff]
    %v1102 = vld [vmem:[#allocation7 + $0x1c0] sm:$0xff]
    %v1103 = vld [vmem:[#allocation7 + $0x1c8] sm:$0xff]
    %v1104 = vld [vmem:[#allocation7 + $0x1d0] sm:$0xff]
    %v1105 = vld [vmem:[#allocation7 + $0x1d8] sm:$0xff]
    %v1106 = vld [vmem:[#allocation7 + $0x1e0] sm:$0xff]
    %v1107 = vld [vmem:[#allocation7 + $0x1e8] sm:$0xff]
    %v1108 = vld [vmem:[#allocation7 + $0x1f0] sm:$0xff]
    %v1109 = vld [vmem:[#allocation7 + $0x1f8] sm:$0xff]
    %v1110 = vld [vmem:[#allocation7 + $0x200] sm:$0xff]
    %v1111 = vld [vmem:[#allocation7 + $0x208] sm:$0xff]
    %v1112 = vld [vmem:[#allocation7 + $0x210] sm:$0xff]
    %v1113 = vld [vmem:[#allocation7 + $0x218] sm:$0xff]
    %v1114 = vld [vmem:[#allocation7 + $0x220] sm:$0xff]
    %v1115 = vld [vmem:[#allocation7 + $0x228] sm:$0xff]
    %v1116 = vld [vmem:[#allocation7 + $0x230] sm:$0xff]
    %v1117 = vld [vmem:[#allocation7 + $0x238] sm:$0xff]
    %v1118 = vld [vmem:[#allocation7 + $0x240] sm:$0xff]
    %v1119 = vld [vmem:[#allocation7 + $0x248] sm:$0xff]
    %v1120 = vld [vmem:[#allocation7 + $0x250] sm:$0xff]
    %v1121 = vld [vmem:[#allocation7 + $0x258] sm:$0xff]
    %v1122 = vld [vmem:[#allocation7 + $0x260] sm:$0xff]
    %v1123 = vld [vmem:[#allocation7 + $0x268] sm:$0xff]
    %v1124 = vld [vmem:[#allocation7 + $0x270] sm:$0xff]
    %v1125 = vld [vmem:[#allocation7 + $0x278] sm:$0xff]
    %v1126 = vld [vmem:[#allocation7 + $0x280] sm:$0xff]
    %v1127 = vld [vmem:[#allocation7 + $0x288] sm:$0xff]
    %v1128 = vld [vmem:[#allocation7 + $0x290] sm:$0xff]
    %v1129 = vld [vmem:[#allocation7 + $0x298] sm:$0xff]
    %v1130 = vld [vmem:[#allocation7 + $0x2a0] sm:$0xff]
    %v1131 = vld [vmem:[#allocation7 + $0x2a8] sm:$0xff]
    %v1132 = vld [vmem:[#allocation7 + $0x2b0] sm:$0xff]
    %v1133 = vld [vmem:[#allocation7 + $0x2b8] sm:$0xff]
    %v1134 = vld [vmem:[#allocation7 + $0x2c0] sm:$0xff]
    %v1135 = vld [vmem:[#allocation7 + $0x2c8] sm:$0xff]
    %v1136 = vld [vmem:[#allocation7 + $0x2d0] sm:$0xff]
    %v1137 = vld [vmem:[#allocation7 + $0x2d8] sm:$0xff]
    %v1138 = vld [vmem:[#allocation7 + $0x2e0] sm:$0xff]
    %v1139 = vld [vmem:[#allocation7 + $0x2e8] sm:$0xff]
    %v1140 = vld [vmem:[#allocation7 + $0x2f0] sm:$0xff]
    %v1141 = vld [vmem:[#allocation7 + $0x2f8] sm:$0xff]
    %v1142 = vld [vmem:[#allocation7 + $0x300] sm:$0xff]
    %v1143 = vld [vmem:[#allocation7 + $0x308] sm:$0xff]
    %v1144 = vld [vmem:[#allocation7 + $0x310] sm:$0xff]
    %v1145 = vld [vmem:[#allocation7 + $0x318] sm:$0xff]
    %v1146 = vld [vmem:[%s6] sm:$0xf]
    %v1147 = vunpack.c.l.bf16 %v1146
    %v1149 = vperm.slane %v1147, 0
    %v1150 = vperm.slane %v1147, 2
    %v1151 = vperm.slane %v1147, 4
    %v1152 = vperm.slane %v1147, 6
    %v1157 = vperm.slane %v1149, 0
    %v1158 = vperm.slane %v1150, 0
    %v1159 = vperm.slane %v1151, 0
    %v1160 = vperm.slane %v1152, 0
    %v1261 = vunpack.c.l.b16 %v1046
    %v1262 = vunpack.c.h.b16 %v1046
    %v1263 = vunpack.c.l.b16 %v1047
    %v1264 = vunpack.c.h.b16 %v1047
    %v1265 = vunpack.c.l.b16 %v1048
    %v1266 = vunpack.c.h.b16 %v1048
    %v1267 = vunpack.c.l.b16 %v1049
    %v1268 = vunpack.c.h.b16 %v1049
    %v1269 = vunpack.c.l.b16 %v1050
    %v1270 = vunpack.c.h.b16 %v1050
    %v1271 = vunpack.c.l.b16 %v1051
    %v1272 = vunpack.c.h.b16 %v1051
    %v1273 = vunpack.c.l.b16 %v1052
    %v1274 = vunpack.c.h.b16 %v1052
    %v1275 = vunpack.c.l.b16 %v1053
    %v1276 = vunpack.c.h.b16 %v1053
    %v1277 = vunpack.c.l.b16 %v1054
    %v1278 = vunpack.c.h.b16 %v1054
    %v1279 = vunpack.c.l.b16 %v1055
    %v1280 = vunpack.c.h.b16 %v1055
    %v1281 = vunpack.c.l.b16 %v1056
    %v1282 = vunpack.c.h.b16 %v1056
    %v1283 = vunpack.c.l.b16 %v1057
    %v1284 = vunpack.c.h.b16 %v1057
    %v1285 = vunpack.c.l.b16 %v1058
    %v1286 = vunpack.c.h.b16 %v1058
    %v1287 = vunpack.c.l.b16 %v1059
    %v1288 = vunpack.c.h.b16 %v1059
    %v1289 = vunpack.c.l.b16 %v1060
    %v1290 = vunpack.c.h.b16 %v1060
    %v1291 = vunpack.c.l.b16 %v1061
    %v1292 = vunpack.c.h.b16 %v1061
    %v1293 = vunpack.c.l.b16 %v1062
    %v1294 = vunpack.c.h.b16 %v1062
    %v1295 = vunpack.c.l.b16 %v1063
    %v1296 = vunpack.c.h.b16 %v1063
    %v1297 = vunpack.c.l.b16 %v1064
    %v1298 = vunpack.c.h.b16 %v1064
    %v1299 = vunpack.c.l.b16 %v1065
    %v1300 = vunpack.c.h.b16 %v1065
    %v1301 = vunpack.c.l.b16 %v1066
    %v1302 = vunpack.c.h.b16 %v1066
    %v1303 = vunpack.c.l.b16 %v1067
    %v1304 = vunpack.c.h.b16 %v1067
    %v1305 = vunpack.c.l.b16 %v1068
    %v1306 = vunpack.c.h.b16 %v1068
    %v1307 = vunpack.c.l.b16 %v1069
    %v1308 = vunpack.c.h.b16 %v1069
    %v1309 = vunpack.c.l.b16 %v1070
    %v1310 = vunpack.c.h.b16 %v1070
    %v1311 = vunpack.c.l.b16 %v1071
    %v1312 = vunpack.c.h.b16 %v1071
    %v1313 = vunpack.c.l.b16 %v1072
    %v1314 = vunpack.c.h.b16 %v1072
    %v1315 = vunpack.c.l.b16 %v1073
    %v1316 = vunpack.c.h.b16 %v1073
    %v1317 = vunpack.c.l.b16 %v1074
    %v1318 = vunpack.c.h.b16 %v1074
    %v1319 = vunpack.c.l.b16 %v1075
    %v1320 = vunpack.c.h.b16 %v1075
    %v1321 = vunpack.c.l.b16 %v1076
    %v1322 = vunpack.c.h.b16 %v1076
    %v1323 = vunpack.c.l.b16 %v1077
    %v1324 = vunpack.c.h.b16 %v1077
    %v1325 = vunpack.c.l.b16 %v1078
    %v1326 = vunpack.c.h.b16 %v1078
    %v1327 = vunpack.c.l.b16 %v1079
    %v1328 = vunpack.c.h.b16 %v1079
    %v1329 = vunpack.c.l.b16 %v1080
    %v1330 = vunpack.c.h.b16 %v1080
    %v1331 = vunpack.c.l.b16 %v1081
    %v1332 = vunpack.c.h.b16 %v1081
    %v1333 = vunpack.c.l.b16 %v1082
    %v1334 = vunpack.c.h.b16 %v1082
    %v1335 = vunpack.c.l.b16 %v1083
    %v1336 = vunpack.c.h.b16 %v1083
    %v1337 = vunpack.c.l.b16 %v1084
    %v1338 = vunpack.c.h.b16 %v1084
    %v1339 = vunpack.c.l.b16 %v1085
    %v1340 = vunpack.c.h.b16 %v1085
    %v1341 = vunpack.c.l.b16 %v1086
    %v1342 = vunpack.c.h.b16 %v1086
    %v1343 = vunpack.c.l.b16 %v1087
    %v1344 = vunpack.c.h.b16 %v1087
    %v1345 = vunpack.c.l.b16 %v1088
    %v1346 = vunpack.c.h.b16 %v1088
    %v1347 = vunpack.c.l.b16 %v1089
    %v1348 = vunpack.c.h.b16 %v1089
    %v1349 = vunpack.c.l.b16 %v1090
    %v1350 = vunpack.c.h.b16 %v1090
    %v1351 = vunpack.c.l.b16 %v1091
    %v1352 = vunpack.c.h.b16 %v1091
    %v1353 = vunpack.c.l.b16 %v1092
    %v1354 = vunpack.c.h.b16 %v1092
    %v1355 = vunpack.c.l.b16 %v1093
    %v1356 = vunpack.c.h.b16 %v1093
    %v1357 = vunpack.c.l.b16 %v1094
    %v1358 = vunpack.c.h.b16 %v1094
    %v1359 = vunpack.c.l.b16 %v1095
    %v1360 = vunpack.c.h.b16 %v1095
    %v1361 = vunpack.c.l.b16 %v1096
    %v1362 = vunpack.c.h.b16 %v1096
    %v1363 = vunpack.c.l.b16 %v1097
    %v1364 = vunpack.c.h.b16 %v1097
    %v1365 = vunpack.c.l.b16 %v1098
    %v1366 = vunpack.c.h.b16 %v1098
    %v1367 = vunpack.c.l.b16 %v1099
    %v1368 = vunpack.c.h.b16 %v1099
    %v1369 = vunpack.c.l.b16 %v1100
    %v1370 = vunpack.c.h.b16 %v1100
    %v1371 = vunpack.c.l.b16 %v1101
    %v1372 = vunpack.c.h.b16 %v1101
    %v1373 = vunpack.c.l.b16 %v1102
    %v1374 = vunpack.c.h.b16 %v1102
    %v1375 = vunpack.c.l.b16 %v1103
    %v1376 = vunpack.c.h.b16 %v1103
    %v1377 = vunpack.c.l.b16 %v1104
    %v1378 = vunpack.c.h.b16 %v1104
    %v1379 = vunpack.c.l.b16 %v1105
    %v1380 = vunpack.c.h.b16 %v1105
    %v1381 = vunpack.c.l.b16 %v1106
    %v1382 = vunpack.c.h.b16 %v1106
    %v1383 = vunpack.c.l.b16 %v1107
    %v1384 = vunpack.c.h.b16 %v1107
    %v1385 = vunpack.c.l.b16 %v1108
    %v1386 = vunpack.c.h.b16 %v1108
    %v1387 = vunpack.c.l.b16 %v1109
    %v1388 = vunpack.c.h.b16 %v1109
    %v1389 = vunpack.c.l.b16 %v1110
    %v1390 = vunpack.c.h.b16 %v1110
    %v1391 = vunpack.c.l.b16 %v1111
    %v1392 = vunpack.c.h.b16 %v1111
    %v1393 = vunpack.c.l.b16 %v1112
    %v1394 = vunpack.c.h.b16 %v1112
    %v1395 = vunpack.c.l.b16 %v1113
    %v1396 = vunpack.c.h.b16 %v1113
    %v1397 = vunpack.c.l.b16 %v1114
    %v1398 = vunpack.c.h.b16 %v1114
    %v1399 = vunpack.c.l.b16 %v1115
    %v1400 = vunpack.c.h.b16 %v1115
    %v1401 = vunpack.c.l.b16 %v1116
    %v1402 = vunpack.c.h.b16 %v1116
    %v1403 = vunpack.c.l.b16 %v1117
    %v1404 = vunpack.c.h.b16 %v1117
    %v1405 = vunpack.c.l.b16 %v1118
    %v1406 = vunpack.c.h.b16 %v1118
    %v1407 = vunpack.c.l.b16 %v1119
    %v1408 = vunpack.c.h.b16 %v1119
    %v1409 = vunpack.c.l.b16 %v1120
    %v1410 = vunpack.c.h.b16 %v1120
    %v1411 = vunpack.c.l.b16 %v1121
    %v1412 = vunpack.c.h.b16 %v1121
    %v1413 = vunpack.c.l.b16 %v1122
    %v1414 = vunpack.c.h.b16 %v1122
    %v1415 = vunpack.c.l.b16 %v1123
    %v1416 = vunpack.c.h.b16 %v1123
    %v1417 = vunpack.c.l.b16 %v1124
    %v1418 = vunpack.c.h.b16 %v1124
    %v1419 = vunpack.c.l.b16 %v1125
    %v1420 = vunpack.c.h.b16 %v1125
    %v1421 = vunpack.c.l.b16 %v1126
    %v1422 = vunpack.c.h.b16 %v1126
    %v1423 = vunpack.c.l.b16 %v1127
    %v1424 = vunpack.c.h.b16 %v1127
    %v1425 = vunpack.c.l.b16 %v1128
    %v1426 = vunpack.c.h.b16 %v1128
    %v1427 = vunpack.c.l.b16 %v1129
    %v1428 = vunpack.c.h.b16 %v1129
    %v1429 = vunpack.c.l.b16 %v1130
    %v1430 = vunpack.c.h.b16 %v1130
    %v1431 = vunpack.c.l.b16 %v1131
    %v1432 = vunpack.c.h.b16 %v1131
    %v1433 = vunpack.c.l.b16 %v1132
    %v1434 = vunpack.c.h.b16 %v1132
    %v1435 = vunpack.c.l.b16 %v1133
    %v1436 = vunpack.c.h.b16 %v1133
    %v1437 = vunpack.c.l.b16 %v1134
    %v1438 = vunpack.c.h.b16 %v1134
    %v1439 = vunpack.c.l.b16 %v1135
    %v1440 = vunpack.c.h.b16 %v1135
    %v1441 = vunpack.c.l.b16 %v1136
    %v1442 = vunpack.c.h.b16 %v1136
    %v1443 = vunpack.c.l.b16 %v1137
    %v1444 = vunpack.c.h.b16 %v1137
    %v1445 = vunpack.c.l.b16 %v1138
    %v1446 = vunpack.c.h.b16 %v1138
    %v1447 = vunpack.c.l.b16 %v1139
    %v1448 = vunpack.c.h.b16 %v1139
    %v1449 = vunpack.c.l.b16 %v1140
    %v1450 = vunpack.c.h.b16 %v1140
    %v1451 = vunpack.c.l.b16 %v1141
    %v1452 = vunpack.c.h.b16 %v1141
    %v1453 = vunpack.c.l.b16 %v1142
    %v1454 = vunpack.c.h.b16 %v1142
    %v1455 = vunpack.c.l.b16 %v1143
    %v1456 = vunpack.c.h.b16 %v1143
    %v1457 = vunpack.c.l.b16 %v1144
    %v1458 = vunpack.c.h.b16 %v1144
    %v1459 = vunpack.c.l.b16 %v1145
    %v1460 = vunpack.c.h.b16 %v1145
    %v1461 = vpack.c.b16 %v1265, %v1261
    %v1462 = vpack.c.b16 %v1266, %v1262
    %v1463 = vpack.c.b16 %v1267, %v1263
    %v1464 = vpack.c.b16 %v1268, %v1264
    %v1465 = vpack.c.b16 %v1273, %v1269
    %v1466 = vpack.c.b16 %v1274, %v1270
    %v1467 = vpack.c.b16 %v1275, %v1271
    %v1468 = vpack.c.b16 %v1276, %v1272
    %v1469 = vpack.c.b16 %v1281, %v1277
    %v1470 = vpack.c.b16 %v1282, %v1278
    %v1471 = vpack.c.b16 %v1283, %v1279
    %v1472 = vpack.c.b16 %v1284, %v1280
    %v1473 = vpack.c.b16 %v1289, %v1285
    %v1474 = vpack.c.b16 %v1290, %v1286
    %v1475 = vpack.c.b16 %v1291, %v1287
    %v1476 = vpack.c.b16 %v1292, %v1288
    %v1477 = vpack.c.b16 %v1297, %v1293
    %v1478 = vpack.c.b16 %v1298, %v1294
    %v1479 = vpack.c.b16 %v1299, %v1295
    %v1480 = vpack.c.b16 %v1300, %v1296
    %v1481 = vpack.c.b16 %v1305, %v1301
    %v1482 = vpack.c.b16 %v1306, %v1302
    %v1483 = vpack.c.b16 %v1307, %v1303
    %v1484 = vpack.c.b16 %v1308, %v1304
    %v1485 = vpack.c.b16 %v1313, %v1309
    %v1486 = vpack.c.b16 %v1314, %v1310
    %v1487 = vpack.c.b16 %v1315, %v1311
    %v1488 = vpack.c.b16 %v1316, %v1312
    %v1489 = vpack.c.b16 %v1321, %v1317
    %v1490 = vpack.c.b16 %v1322, %v1318
    %v1491 = vpack.c.b16 %v1323, %v1319
    %v1492 = vpack.c.b16 %v1324, %v1320
    %v1493 = vpack.c.b16 %v1329, %v1325
    %v1494 = vpack.c.b16 %v1330, %v1326
    %v1495 = vpack.c.b16 %v1331, %v1327
    %v1496 = vpack.c.b16 %v1332, %v1328
    %v1497 = vpack.c.b16 %v1337, %v1333
    %v1498 = vpack.c.b16 %v1338, %v1334
    %v1499 = vpack.c.b16 %v1339, %v1335
    %v1500 = vpack.c.b16 %v1340, %v1336
    %v1501 = vpack.c.b16 %v1345, %v1341
    %v1502 = vpack.c.b16 %v1346, %v1342
    %v1503 = vpack.c.b16 %v1347, %v1343
    %v1504 = vpack.c.b16 %v1348, %v1344
    %v1505 = vpack.c.b16 %v1353, %v1349
    %v1506 = vpack.c.b16 %v1354, %v1350
    %v1507 = vpack.c.b16 %v1355, %v1351
    %v1508 = vpack.c.b16 %v1356, %v1352
    %v1509 = vpack.c.b16 %v1361, %v1357
    %v1510 = vpack.c.b16 %v1362, %v1358
    %v1511 = vpack.c.b16 %v1363, %v1359
    %v1512 = vpack.c.b16 %v1364, %v1360
    %v1513 = vpack.c.b16 %v1369, %v1365
    %v1514 = vpack.c.b16 %v1370, %v1366
    %v1515 = vpack.c.b16 %v1371, %v1367
    %v1516 = vpack.c.b16 %v1372, %v1368
    %v1517 = vpack.c.b16 %v1377, %v1373
    %v1518 = vpack.c.b16 %v1378, %v1374
    %v1519 = vpack.c.b16 %v1379, %v1375
    %v1520 = vpack.c.b16 %v1380, %v1376
    %v1521 = vpack.c.b16 %v1385, %v1381
    %v1522 = vpack.c.b16 %v1386, %v1382
    %v1523 = vpack.c.b16 %v1387, %v1383
    %v1524 = vpack.c.b16 %v1388, %v1384
    %v1525 = vpack.c.b16 %v1393, %v1389
    %v1526 = vpack.c.b16 %v1394, %v1390
    %v1527 = vpack.c.b16 %v1395, %v1391
    %v1528 = vpack.c.b16 %v1396, %v1392
    %v1529 = vpack.c.b16 %v1401, %v1397
    %v1530 = vpack.c.b16 %v1402, %v1398
    %v1531 = vpack.c.b16 %v1403, %v1399
    %v1532 = vpack.c.b16 %v1404, %v1400
    %v1533 = vpack.c.b16 %v1409, %v1405
    %v1534 = vpack.c.b16 %v1410, %v1406
    %v1535 = vpack.c.b16 %v1411, %v1407
    %v1536 = vpack.c.b16 %v1412, %v1408
    %v1537 = vpack.c.b16 %v1417, %v1413
    %v1538 = vpack.c.b16 %v1418, %v1414
    %v1539 = vpack.c.b16 %v1419, %v1415
    %v1540 = vpack.c.b16 %v1420, %v1416
    %v1541 = vpack.c.b16 %v1425, %v1421
    %v1542 = vpack.c.b16 %v1426, %v1422
    %v1543 = vpack.c.b16 %v1427, %v1423
    %v1544 = vpack.c.b16 %v1428, %v1424
    %v1545 = vpack.c.b16 %v1433, %v1429
    %v1546 = vpack.c.b16 %v1434, %v1430
    %v1547 = vpack.c.b16 %v1435, %v1431
    %v1548 = vpack.c.b16 %v1436, %v1432
    %v1549 = vpack.c.b16 %v1441, %v1437
    %v1550 = vpack.c.b16 %v1442, %v1438
    %v1551 = vpack.c.b16 %v1443, %v1439
    %v1552 = vpack.c.b16 %v1444, %v1440
    %v1553 = vpack.c.b16 %v1449, %v1445
    %v1554 = vpack.c.b16 %v1450, %v1446
    %v1555 = vpack.c.b16 %v1451, %v1447
    %v1556 = vpack.c.b16 %v1452, %v1448
    %v1557 = vpack.c.b16 %v1457, %v1453
    %v1558 = vpack.c.b16 %v1458, %v1454
    %v1559 = vpack.c.b16 %v1459, %v1455
    %v1560 = vpack.c.b16 %v1460, %v1456
    %v1662 = vsel %vm826, %v1045, 0
    %1664 = vmatpush.bf16.msra.mxu0 %v1489
    %1665 = vmatpush.bf16.msra.mxu0 %v1485
    %1666 = vmatpush.bf16.msra.mxu0 %v1481
    %1667 = vmatpush.bf16.msra.mxu0 %v1477
    %1668 = vmatpush.bf16.msra.mxu0 %v1473
    %1669 = vmatpush.bf16.msra.mxu0 %v1469
    %1670 = vmatpush.bf16.msra.mxu0 %v1465
    %1671 = vmatpush.bf16.msra.mxu0 %v1461
    %1672 = vmatmul.bf16.gmra.mxu0 %v1042
    %v1673 = vpop.f32.mrf.mxu0
    %v1674 = vadd.f32 %v1157, %v1673
    %v1675 = vpop.f32.mrf.mxu0
    %1676 = vdwg.mxu0
    %1677 = vmatpush.bf16.msra.mxu0 %v1521
    %1678 = vmatpush.bf16.msra.mxu0 %v1517
    %1679 = vmatpush.bf16.msra.mxu0 %v1513
    %1680 = vmatpush.bf16.msra.mxu0 %v1509
    %1681 = vmatpush.bf16.msra.mxu0 %v1505
    %1682 = vmatpush.bf16.msra.mxu0 %v1501
    %1683 = vmatpush.bf16.msra.mxu0 %v1497
    %1684 = vmatpush.bf16.msra.mxu0 %v1493
    %1685 = vmatmul.bf16.gmra.mxu0 %v1043
    %v1686 = vpop.f32.mrf.mxu0
    %v1687 = vadd.f32 %v1674, %v1686
    %v1688 = vpop.f32.mrf.mxu0
    %1689 = vdwg.mxu0
    %1690 = vmatpush.bf16.msra.mxu0 %v1553
    %1691 = vmatpush.bf16.msra.mxu0 %v1549
    %1692 = vmatpush.bf16.msra.mxu0 %v1545
    %1693 = vmatpush.bf16.msra.mxu0 %v1541
    %1694 = vmatpush.bf16.msra.mxu0 %v1537
    %1695 = vmatpush.bf16.msra.mxu0 %v1533
    %1696 = vmatpush.bf16.msra.mxu0 %v1529
    %1697 = vmatpush.bf16.msra.mxu0 %v1525
    %1698 = vmatmul.bf16.gmra.mxu0 %v1044
    %v1699 = vpop.f32.mrf.mxu0
    %v1700 = vadd.f32 %v1687, %v1699
    %v1701 = vpop.f32.mrf.mxu0
    %1702 = vdwg.mxu0
    %1703 = vmatpush.bf16.msra.mxu0 0
    %1704 = vmatpush.bf16.msra.mxu0 0
    %1705 = vmatpush.bf16.msra.mxu0 0
    %1706 = vmatpush.bf16.msra.mxu0 0
    %1707 = vmatpush.bf16.msra.mxu0 0
    %1708 = vmatpush.bf16.msra.mxu0 0
    %1709 = vmatpush.bf16.msra.mxu0 0
    %1710 = vmatpush.bf16.msra.mxu0 %v1557
    %1711 = vmatmul.bf16.gmra.mxu0 %v1662
    %v1712 = vpop.f32.mrf.mxu0
    %v1713 = vadd.f32 %v1700, %v1712
    %v1714 = vpop.f32.mrf.mxu0
    %1715 = vdwg.mxu0
    %1716 = vmatpush.bf16.msra.mxu0 %v1490
    %1717 = vmatpush.bf16.msra.mxu0 %v1486
    %1718 = vmatpush.bf16.msra.mxu0 %v1482
    %1719 = vmatpush.bf16.msra.mxu0 %v1478
    %1720 = vmatpush.bf16.msra.mxu0 %v1474
    %1721 = vmatpush.bf16.msra.mxu0 %v1470
    %1722 = vmatpush.bf16.msra.mxu0 %v1466
    %1723 = vmatpush.bf16.msra.mxu0 %v1462
    %1724 = vmatmul.bf16.gmra.mxu0 %v1042
    %v1725 = vpop.f32.mrf.mxu0
    %v1726 = vadd.f32 %v1158, %v1725
    %v1727 = vpop.f32.mrf.mxu0
    %1728 = vdwg.mxu0
    %1729 = vmatpush.bf16.msra.mxu0 %v1522
    %1730 = vmatpush.bf16.msra.mxu0 %v1518
    %1731 = vmatpush.bf16.msra.mxu0 %v1514
    %1732 = vmatpush.bf16.msra.mxu0 %v1510
    %1733 = vmatpush.bf16.msra.mxu0 %v1506
    %1734 = vmatpush.bf16.msra.mxu0 %v1502
    %1735 = vmatpush.bf16.msra.mxu0 %v1498
    %1736 = vmatpush.bf16.msra.mxu0 %v1494
    %1737 = vmatmul.bf16.gmra.mxu0 %v1043
    %v1738 = vpop.f32.mrf.mxu0
    %v1739 = vadd.f32 %v1726, %v1738
    %v1740 = vpop.f32.mrf.mxu0
    %1741 = vdwg.mxu0
    %1742 = vmatpush.bf16.msra.mxu0 %v1554
    %1743 = vmatpush.bf16.msra.mxu0 %v1550
    %1744 = vmatpush.bf16.msra.mxu0 %v1546
    %1745 = vmatpush.bf16.msra.mxu0 %v1542
    %1746 = vmatpush.bf16.msra.mxu0 %v1538
    %1747 = vmatpush.bf16.msra.mxu0 %v1534
    %1748 = vmatpush.bf16.msra.mxu0 %v1530
    %1749 = vmatpush.bf16.msra.mxu0 %v1526
    %1750 = vmatmul.bf16.gmra.mxu0 %v1044
    %v1751 = vpop.f32.mrf.mxu0
    %v1752 = vadd.f32 %v1739, %v1751
    %v1753 = vpop.f32.mrf.mxu0
    %1754 = vdwg.mxu0
    %1755 = vmatpush.bf16.msra.mxu0 0
    %1756 = vmatpush.bf16.msra.mxu0 0
    %1757 = vmatpush.bf16.msra.mxu0 0
    %1758 = vmatpush.bf16.msra.mxu0 0
    %1759 = vmatpush.bf16.msra.mxu0 0
    %1760 = vmatpush.bf16.msra.mxu0 0
    %1761 = vmatpush.bf16.msra.mxu0 0
    %1762 = vmatpush.bf16.msra.mxu0 %v1558
    %1763 = vmatmul.bf16.gmra.mxu0 %v1662
    %v1764 = vpop.f32.mrf.mxu0
    %v1765 = vadd.f32 %v1752, %v1764
    %v1766 = vpop.f32.mrf.mxu0
    %1767 = vdwg.mxu0
    %1768 = vmatpush.bf16.msra.mxu0 %v1491
    %1769 = vmatpush.bf16.msra.mxu0 %v1487
    %1770 = vmatpush.bf16.msra.mxu0 %v1483
    %1771 = vmatpush.bf16.msra.mxu0 %v1479
    %1772 = vmatpush.bf16.msra.mxu0 %v1475
    %1773 = vmatpush.bf16.msra.mxu0 %v1471
    %1774 = vmatpush.bf16.msra.mxu0 %v1467
    %1775 = vmatpush.bf16.msra.mxu0 %v1463
    %1776 = vmatmul.bf16.gmra.mxu0 %v1042
    %v1777 = vpop.f32.mrf.mxu0
    %v1778 = vadd.f32 %v1159, %v1777
    %v1779 = vpop.f32.mrf.mxu0
    %1780 = vdwg.mxu0
    %1781 = vmatpush.bf16.msra.mxu0 %v1523
    %1782 = vmatpush.bf16.msra.mxu0 %v1519
    %1783 = vmatpush.bf16.msra.mxu0 %v1515
    %1784 = vmatpush.bf16.msra.mxu0 %v1511
    %1785 = vmatpush.bf16.msra.mxu0 %v1507
    %1786 = vmatpush.bf16.msra.mxu0 %v1503
    %1787 = vmatpush.bf16.msra.mxu0 %v1499
    %1788 = vmatpush.bf16.msra.mxu0 %v1495
    %1789 = vmatmul.bf16.gmra.mxu0 %v1043
    %v1790 = vpop.f32.mrf.mxu0
    %v1791 = vadd.f32 %v1778, %v1790
    %v1792 = vpop.f32.mrf.mxu0
    %1793 = vdwg.mxu0
    %1794 = vmatpush.bf16.msra.mxu0 %v1555
    %1795 = vmatpush.bf16.msra.mxu0 %v1551
    %1796 = vmatpush.bf16.msra.mxu0 %v1547
    %1797 = vmatpush.bf16.msra.mxu0 %v1543
    %1798 = vmatpush.bf16.msra.mxu0 %v1539
    %1799 = vmatpush.bf16.msra.mxu0 %v1535
    %1800 = vmatpush.bf16.msra.mxu0 %v1531
    %1801 = vmatpush.bf16.msra.mxu0 %v1527
    %1802 = vmatmul.bf16.gmra.mxu0 %v1044
    %v1803 = vpop.f32.mrf.mxu0
    %v1804 = vadd.f32 %v1791, %v1803
    %v1805 = vpop.f32.mrf.mxu0
    %1806 = vdwg.mxu0
    %1807 = vmatpush.bf16.msra.mxu0 0
    %1808 = vmatpush.bf16.msra.mxu0 0
    %1809 = vmatpush.bf16.msra.mxu0 0
    %1810 = vmatpush.bf16.msra.mxu0 0
    %1811 = vmatpush.bf16.msra.mxu0 0
    %1812 = vmatpush.bf16.msra.mxu0 0
    %1813 = vmatpush.bf16.msra.mxu0 0
    %1814 = vmatpush.bf16.msra.mxu0 %v1559
    %1815 = vmatmul.bf16.gmra.mxu0 %v1662
    %v1816 = vpop.f32.mrf.mxu0
    %v1817 = vadd.f32 %v1804, %v1816
    %v1818 = vpop.f32.mrf.mxu0
    %1819 = vdwg.mxu0
    %1820 = vmatpush.bf16.msra.mxu0 %v1492
    %1821 = vmatpush.bf16.msra.mxu0 %v1488
    %1822 = vmatpush.bf16.msra.mxu0 %v1484
    %1823 = vmatpush.bf16.msra.mxu0 %v1480
    %1824 = vmatpush.bf16.msra.mxu0 %v1476
    %1825 = vmatpush.bf16.msra.mxu0 %v1472
    %1826 = vmatpush.bf16.msra.mxu0 %v1468
    %1827 = vmatpush.bf16.msra.mxu0 %v1464
    %1828 = vmatmul.bf16.gmra.mxu0 %v1042
    %v1829 = vpop.f32.mrf.mxu0
    %v1830 = vadd.f32 %v1160, %v1829
    %v1831 = vpop.f32.mrf.mxu0
    %1832 = vdwg.mxu0
    %1833 = vmatpush.bf16.msra.mxu0 %v1524
    %1834 = vmatpush.bf16.msra.mxu0 %v1520
    %1835 = vmatpush.bf16.msra.mxu0 %v1516
    %1836 = vmatpush.bf16.msra.mxu0 %v1512
    %1837 = vmatpush.bf16.msra.mxu0 %v1508
    %1838 = vmatpush.bf16.msra.mxu0 %v1504
    %1839 = vmatpush.bf16.msra.mxu0 %v1500
    %1840 = vmatpush.bf16.msra.mxu0 %v1496
    %1841 = vmatmul.bf16.gmra.mxu0 %v1043
    %v1842 = vpop.f32.mrf.mxu0
    %v1843 = vadd.f32 %v1830, %v1842
    %v1844 = vpop.f32.mrf.mxu0
    %1845 = vdwg.mxu0
    %1846 = vmatpush.bf16.msra.mxu0 %v1556
    %1847 = vmatpush.bf16.msra.mxu0 %v1552
    %1848 = vmatpush.bf16.msra.mxu0 %v1548
    %1849 = vmatpush.bf16.msra.mxu0 %v1544
    %1850 = vmatpush.bf16.msra.mxu0 %v1540
    %1851 = vmatpush.bf16.msra.mxu0 %v1536
    %1852 = vmatpush.bf16.msra.mxu0 %v1532
    %1853 = vmatpush.bf16.msra.mxu0 %v1528
    %1854 = vmatmul.bf16.gmra.mxu0 %v1044
    %v1855 = vpop.f32.mrf.mxu0
    %v1856 = vadd.f32 %v1843, %v1855
    %v1857 = vpop.f32.mrf.mxu0
    %1858 = vdwg.mxu0
    %1859 = vmatpush.bf16.msra.mxu0 0
    %1860 = vmatpush.bf16.msra.mxu0 0
    %1861 = vmatpush.bf16.msra.mxu0 0
    %1862 = vmatpush.bf16.msra.mxu0 0
    %1863 = vmatpush.bf16.msra.mxu0 0
    %1864 = vmatpush.bf16.msra.mxu0 0
    %1865 = vmatpush.bf16.msra.mxu0 0
    %1866 = vmatpush.bf16.msra.mxu0 %v1560
    %1867 = vmatmul.bf16.gmra.mxu0 %v1662
    %v1868 = vpop.f32.mrf.mxu0
    %v1869 = vadd.f32 %v1856, %v1868
    %v1870 = vpop.f32.mrf.mxu0
    %1871 = vdwg.mxu0
    %v1872 = vmax.f32 %v1713, 0.0
    %v1873 = vmax.f32 %v1765, 0.0
    %v1874 = vmax.f32 %v1817, 0.0
    %v1875 = vmax.f32 %v1869, 0.0
    %v1876 = vpack.c.bf16 %v1872, %v1872
    %v1877 = vpack.c.bf16 %v1873, %v1873
    %v1878 = vpack.c.bf16 %v1874, %v1874
    %v1879 = vpack.c.bf16 %v1875, %v1875
    %v1880 = vld [vmem:[%s7] sm:$0xf]
    %v1881 = vld [vmem:[%s7 + $0x4] sm:$0xf]
    %v1882 = vld [vmem:[%s7 + $0x8] sm:$0xf]
    %v1883 = vld [vmem:[%s7 + $0xc] sm:$0xf]
    %v1884 = vld [vmem:[%s7 + $0x10] sm:$0xf]
    %v1885 = vld [vmem:[%s7 + $0x14] sm:$0xf]
    %v1886 = vld [vmem:[%s7 + $0x18] sm:$0xf]
    %v1887 = vld [vmem:[%s7 + $0x1c] sm:$0xf]
    %v1888 = vld [vmem:[%s7 + $0x20] sm:$0xf]
    %v1889 = vld [vmem:[%s7 + $0x24] sm:$0xf]
    %v1890 = vld [vmem:[%s7 + $0x28] sm:$0xf]
    %v1891 = vld [vmem:[%s7 + $0x2c] sm:$0xf]
    %v1892 = vld [vmem:[%s7 + $0x30] sm:$0xf]
    %v1893 = vld [vmem:[%s7 + $0x34] sm:$0xf]
    %v1894 = vld [vmem:[%s7 + $0x38] sm:$0xf]
    %v1895 = vld [vmem:[%s7 + $0x3c] sm:$0xf]
    %v1896 = vld [vmem:[%s7 + $0x40] sm:$0xf]
    %v1897 = vld [vmem:[%s7 + $0x44] sm:$0xf]
    %v1898 = vld [vmem:[%s7 + $0x48] sm:$0xf]
    %v1899 = vld [vmem:[%s7 + $0x4c] sm:$0xf]
    %v1900 = vld [vmem:[%s7 + $0x50] sm:$0xf]
    %v1901 = vld [vmem:[%s7 + $0x54] sm:$0xf]
    %v1902 = vld [vmem:[%s7 + $0x58] sm:$0xf]
    %v1903 = vld [vmem:[%s7 + $0x5c] sm:$0xf]
    %v1904 = vld [vmem:[%s7 + $0x60] sm:$0xf]
    %v1905 = vld [vmem:[%s7 + $0x64] sm:$0xf]
    %v1906 = vld [vmem:[%s7 + $0x68] sm:$0xf]
    %v1907 = vld [vmem:[%s7 + $0x6c] sm:$0xf]
    %v1908 = vld [vmem:[%s7 + $0x70] sm:$0xf]
    %v1909 = vld [vmem:[%s7 + $0x74] sm:$0xf]
    %v1910 = vld [vmem:[%s7 + $0x78] sm:$0xf]
    %v1911 = vld [vmem:[%s7 + $0x7c] sm:$0xf]
    %v1912 = vld [vmem:[%s7 + $0x80] sm:$0xf]
    %v1913 = vld [vmem:[%s7 + $0x84] sm:$0xf]
    %v1914 = vld [vmem:[%s7 + $0x88] sm:$0xf]
    %v1915 = vld [vmem:[%s7 + $0x8c] sm:$0xf]
    %v1916 = vld [vmem:[%s7 + $0x90] sm:$0xf]
    %v1917 = vld [vmem:[%s7 + $0x94] sm:$0xf]
    %v1918 = vld [vmem:[%s7 + $0x98] sm:$0xf]
    %v1919 = vld [vmem:[%s7 + $0x9c] sm:$0xf]
    %v1920 = vld [vmem:[%s7 + $0xa0] sm:$0xf]
    %v1921 = vld [vmem:[%s7 + $0xa4] sm:$0xf]
    %v1922 = vld [vmem:[%s7 + $0xa8] sm:$0xf]
    %v1923 = vld [vmem:[%s7 + $0xac] sm:$0xf]
    %v1924 = vld [vmem:[%s7 + $0xb0] sm:$0xf]
    %v1925 = vld [vmem:[%s7 + $0xb4] sm:$0xf]
    %v1926 = vld [vmem:[%s7 + $0xb8] sm:$0xf]
    %v1927 = vld [vmem:[%s7 + $0xbc] sm:$0xf]
    %v1928 = vld [vmem:[%s7 + $0xc0] sm:$0xf]
    %v1929 = vld [vmem:[%s7 + $0xc4] sm:$0xf]
    %v1930 = vld [vmem:[%s8] sm:$0x1]
    %v1931 = vunpack.c.l.bf16 %v1930
    %v1932 = vperm.slane %v1931, 0
    %v1983 = vunpack.c.l.b16 %v1880
    %v1984 = vunpack.c.l.b16 %v1881
    %v1985 = vunpack.c.l.b16 %v1882
    %v1986 = vunpack.c.l.b16 %v1883
    %v1987 = vunpack.c.l.b16 %v1884
    %v1988 = vunpack.c.l.b16 %v1885
    %v1989 = vunpack.c.l.b16 %v1886
    %v1990 = vunpack.c.l.b16 %v1887
    %v1991 = vunpack.c.l.b16 %v1888
    %v1992 = vunpack.c.l.b16 %v1889
    %v1993 = vunpack.c.l.b16 %v1890
    %v1994 = vunpack.c.l.b16 %v1891
    %v1995 = vunpack.c.l.b16 %v1892
    %v1996 = vunpack.c.l.b16 %v1893
    %v1997 = vunpack.c.l.b16 %v1894
    %v1998 = vunpack.c.l.b16 %v1895
    %v1999 = vunpack.c.l.b16 %v1896
    %v2000 = vunpack.c.l.b16 %v1897
    %v2001 = vunpack.c.l.b16 %v1898
    %v2002 = vunpack.c.l.b16 %v1899
    %v2003 = vunpack.c.l.b16 %v1900
    %v2004 = vunpack.c.l.b16 %v1901
    %v2005 = vunpack.c.l.b16 %v1902
    %v2006 = vunpack.c.l.b16 %v1903
    %v2007 = vunpack.c.l.b16 %v1904
    %v2008 = vunpack.c.l.b16 %v1905
    %v2009 = vunpack.c.l.b16 %v1906
    %v2010 = vunpack.c.l.b16 %v1907
    %v2011 = vunpack.c.l.b16 %v1908
    %v2012 = vunpack.c.l.b16 %v1909
    %v2013 = vunpack.c.l.b16 %v1910
    %v2014 = vunpack.c.l.b16 %v1911
    %v2015 = vunpack.c.l.b16 %v1912
    %v2016 = vunpack.c.l.b16 %v1913
    %v2017 = vunpack.c.l.b16 %v1914
    %v2018 = vunpack.c.l.b16 %v1915
    %v2019 = vunpack.c.l.b16 %v1916
    %v2020 = vunpack.c.l.b16 %v1917
    %v2021 = vunpack.c.l.b16 %v1918
    %v2022 = vunpack.c.l.b16 %v1919
    %v2023 = vunpack.c.l.b16 %v1920
    %v2024 = vunpack.c.l.b16 %v1921
    %v2025 = vunpack.c.l.b16 %v1922
    %v2026 = vunpack.c.l.b16 %v1923
    %v2027 = vunpack.c.l.b16 %v1924
    %v2028 = vunpack.c.l.b16 %v1925
    %v2029 = vunpack.c.l.b16 %v1926
    %v2030 = vunpack.c.l.b16 %v1927
    %v2031 = vunpack.c.l.b16 %v1928
    %v2032 = vunpack.c.l.b16 %v1929
    %v2033 = vpack.c.b16 %v1984, %v1983
    %v2034 = vpack.c.b16 %v1986, %v1985
    %v2035 = vpack.c.b16 %v1988, %v1987
    %v2036 = vpack.c.b16 %v1990, %v1989
    %v2037 = vpack.c.b16 %v1992, %v1991
    %v2038 = vpack.c.b16 %v1994, %v1993
    %v2039 = vpack.c.b16 %v1996, %v1995
    %v2040 = vpack.c.b16 %v1998, %v1997
    %v2041 = vpack.c.b16 %v2000, %v1999
    %v2042 = vpack.c.b16 %v2002, %v2001
    %v2043 = vpack.c.b16 %v2004, %v2003
    %v2044 = vpack.c.b16 %v2006, %v2005
    %v2045 = vpack.c.b16 %v2008, %v2007
    %v2046 = vpack.c.b16 %v2010, %v2009
    %v2047 = vpack.c.b16 %v2012, %v2011
    %v2048 = vpack.c.b16 %v2014, %v2013
    %v2049 = vpack.c.b16 %v2016, %v2015
    %v2050 = vpack.c.b16 %v2018, %v2017
    %v2051 = vpack.c.b16 %v2020, %v2019
    %v2052 = vpack.c.b16 %v2022, %v2021
    %v2053 = vpack.c.b16 %v2024, %v2023
    %v2054 = vpack.c.b16 %v2026, %v2025
    %v2055 = vpack.c.b16 %v2028, %v2027
    %v2056 = vpack.c.b16 %v2030, %v2029
    %v2057 = vpack.c.b16 %v2032, %v2031
    %v2084 = vsel %vm826, %v1879, 0
    %2086 = vmatpush.bf16.msra.mxu0 %v2040
    %2087 = vmatpush.bf16.msra.mxu0 %v2039
    %2088 = vmatpush.bf16.msra.mxu0 %v2038
    %2089 = vmatpush.bf16.msra.mxu0 %v2037
    %2090 = vmatpush.bf16.msra.mxu0 %v2036
    %2091 = vmatpush.bf16.msra.mxu0 %v2035
    %2092 = vmatpush.bf16.msra.mxu0 %v2034
    %2093 = vmatpush.bf16.msra.mxu0 %v2033
    %2094 = vmatmul.bf16.gmra.mxu0 %v1876
    %v2095 = vpop.f32.mrf.mxu0
    %v2096 = vadd.f32 %v1932, %v2095
    %v2097 = vpop.f32.mrf.mxu0
    %2098 = vdwg.mxu0
    %2099 = vmatpush.bf16.msra.mxu0 %v2048
    %2100 = vmatpush.bf16.msra.mxu0 %v2047
    %2101 = vmatpush.bf16.msra.mxu0 %v2046
    %2102 = vmatpush.bf16.msra.mxu0 %v2045
    %2103 = vmatpush.bf16.msra.mxu0 %v2044
    %2104 = vmatpush.bf16.msra.mxu0 %v2043
    %2105 = vmatpush.bf16.msra.mxu0 %v2042
    %2106 = vmatpush.bf16.msra.mxu0 %v2041
    %2107 = vmatmul.bf16.gmra.mxu0 %v1877
    %v2108 = vpop.f32.mrf.mxu0
    %v2109 = vadd.f32 %v2096, %v2108
    %v2110 = vpop.f32.mrf.mxu0
    %2111 = vdwg.mxu0
    %2112 = vmatpush.bf16.msra.mxu0 %v2056
    %2113 = vmatpush.bf16.msra.mxu0 %v2055
    %2114 = vmatpush.bf16.msra.mxu0 %v2054
    %2115 = vmatpush.bf16.msra.mxu0 %v2053
    %2116 = vmatpush.bf16.msra.mxu0 %v2052
    %2117 = vmatpush.bf16.msra.mxu0 %v2051
    %2118 = vmatpush.bf16.msra.mxu0 %v2050
    %2119 = vmatpush.bf16.msra.mxu0 %v2049
    %2120 = vmatmul.bf16.gmra.mxu0 %v1878
    %v2121 = vpop.f32.mrf.mxu0
    %v2122 = vadd.f32 %v2109, %v2121
    %v2123 = vpop.f32.mrf.mxu0
    %2124 = vdwg.mxu0
    %2125 = vmatpush.bf16.msra.mxu0 0
    %2126 = vmatpush.bf16.msra.mxu0 0
    %2127 = vmatpush.bf16.msra.mxu0 0
    %2128 = vmatpush.bf16.msra.mxu0 0
    %2129 = vmatpush.bf16.msra.mxu0 0
    %2130 = vmatpush.bf16.msra.mxu0 0
    %2131 = vmatpush.bf16.msra.mxu0 0
    %2132 = vmatpush.bf16.msra.mxu0 %v2057
    %2133 = vmatmul.bf16.gmra.mxu0 %v2084
    %v2134 = vpop.f32.mrf.mxu0
    %v2135 = vadd.f32 %v2122, %v2134
    %v2136 = vpop.f32.mrf.mxu0
    %2137 = vdwg.mxu0
    %v2139 = vperm.slane %v102, 0
    %v2141 = vsub.f32 %v2139, %v2135
    %v2142 = vmax.f32 %v2141, 0.0
    %vm2143 = vcmp.ne.f32.partialorder %v2141, %v2141
    %v2144 = vadd.f32 %v2141, 0.0
    %v2145 = vand.u32 2147483647, %v2141
    %v2146 = vsub.f32 0.0, %v2145
    %v2147 = vmul.f32 %v2146, 1.442695
    %v2148 = vpow.pop %v2147
    %v2149 = vadd.f32 %v2148, 1.0
    %v2150 = vlog2.pop %v2149
    %v2151 = vmul.f32 %v2150, 0.6931472
    %v2152 = vmul.f32 -0.5, %v2148
    %v2153 = vadd.f32 %v2152, 1.0
    %v2154 = vmul.f32 %v2153, %v2148
    %v2155 = vand.u32 2147483647, %v2148
    %vm2156 = vcmp.lt.f32.partialorder %v2155, 0.0004427343
    %v2157 = vsel %vm2156, %v2154, %v2151
    %v2158 = vadd.f32 %v2142, %v2157
    %v2159 = vsel %vm2143, %v2144, %v2158
    %v2160 = vsub.f32 %v2139, %v2159
    %v2162 = vperm.slane %v103, 0
    %v2164 = vsub.f32 %v2160, %v2162
    %v2165 = vmax.f32 %v2164, 0.0
    %vm2166 = vcmp.ne.f32.partialorder %v2164, %v2164
    %v2167 = vadd.f32 %v2164, 0.0
    %v2168 = vand.u32 2147483647, %v2164
    %v2169 = vsub.f32 0.0, %v2168
    %v2170 = vmul.f32 %v2169, 1.442695
    %v2171 = vpow.pop %v2170
    %v2172 = vadd.f32 %v2171, 1.0
    %v2173 = vlog2.pop %v2172
    %v2174 = vmul.f32 %v2173, 0.6931472
    %v2175 = vmul.f32 -0.5, %v2171
    %v2176 = vadd.f32 %v2175, 1.0
    %v2177 = vmul.f32 %v2176, %v2171
    %v2178 = vand.u32 2147483647, %v2171
    %vm2179 = vcmp.lt.f32.partialorder %v2178, 0.0004427343
    %v2180 = vsel %vm2179, %v2177, %v2174
    %v2181 = vadd.f32 %v2165, %v2180
    %v2182 = vsel %vm2166, %v2167, %v2181
    %v2183 = vadd.f32 %v2162, %v2182
    %v2184 = vsel %vm106, %v2183, %v2135
    %vm2185 = vcmask 64512
    %2186 = vst.msk [vmem:[%s11] sm:$0xff] %vm2185, %v2184
    %s2187 = scalar_lea.vmem [#allocation4], 16
    %v2188 = vld [vmem:[%s2187] sm:$0x77]
    %v2189 = vld [vmem:[%s2187 + $0x8] sm:$0x77]
    %s2190 = scalar_lea.vmem %s2, 4
    %v2191 = vld [vmem:[%s2190] sm:$0xf]
    %v2192 = vunpack.c.l.bf16 %v2191
    %v2194 = vperm.slane %v2192, 0
    %v2195 = vperm.slane %v2192, 2
    %v2196 = vperm.slane %v2192, 4
    %v2197 = vperm.slane %v2192, 6
    %v2202 = vperm.slane %v2194, 0
    %v2203 = vperm.slane %v2195, 0
    %v2204 = vperm.slane %v2196, 0
    %v2205 = vperm.slane %v2197, 0
    %v2208 = vunpack.c.l.b16 %v2188
    %v2209 = vunpack.c.h.b16 %v2188
    %v2210 = vunpack.c.l.b16 %v2189
    %v2211 = vunpack.c.h.b16 %v2189
    %v2212 = vpack.c.b16 %v2208, %v2208
    %v2213 = vpack.c.b16 %v2209, %v2209
    %v2214 = vpack.c.b16 %v2210, %v2210
    %v2215 = vpack.c.b16 %v2211, %v2211
    %v2217 = vsel %vm138, %v2212, 0
    %v2220 = vsel %vm138, %v2213, 0
    %v2223 = vsel %vm138, %v2214, 0
    %v2226 = vsel %vm138, %v2215, 0
    %2228 = vmatpush.bf16.msra.mxu0 0
    %2229 = vmatpush.bf16.msra.mxu0 0
    %2230 = vmatpush.bf16.msra.mxu0 0
    %2231 = vmatpush.bf16.msra.mxu0 0
    %2232 = vmatpush.bf16.msra.mxu0 0
    %2233 = vmatpush.bf16.msra.mxu0 0
    %2234 = vmatpush.bf16.msra.mxu0 0
    %2235 = vmatpush.bf16.msra.mxu0 %v2217
    %2236 = vmatmul.bf16.gmra.mxu0 %v136
    %v2237 = vpop.f32.mrf.mxu0
    %v2238 = vadd.f32 %v2202, %v2237
    %v2239 = vpop.f32.mrf.mxu0
    %2240 = vdwg.mxu0
    %2241 = vmatpush.bf16.msra.mxu0 0
    %2242 = vmatpush.bf16.msra.mxu0 0
    %2243 = vmatpush.bf16.msra.mxu0 0
    %2244 = vmatpush.bf16.msra.mxu0 0
    %2245 = vmatpush.bf16.msra.mxu0 0
    %2246 = vmatpush.bf16.msra.mxu0 0
    %2247 = vmatpush.bf16.msra.mxu0 0
    %2248 = vmatpush.bf16.msra.mxu0 %v2220
    %2249 = vmatmul.bf16.gmra.mxu0 %v136
    %v2250 = vpop.f32.mrf.mxu0
    %v2251 = vadd.f32 %v2203, %v2250
    %v2252 = vpop.f32.mrf.mxu0
    %2253 = vdwg.mxu0
    %2254 = vmatpush.bf16.msra.mxu0 0
    %2255 = vmatpush.bf16.msra.mxu0 0
    %2256 = vmatpush.bf16.msra.mxu0 0
    %2257 = vmatpush.bf16.msra.mxu0 0
    %2258 = vmatpush.bf16.msra.mxu0 0
    %2259 = vmatpush.bf16.msra.mxu0 0
    %2260 = vmatpush.bf16.msra.mxu0 0
    %2261 = vmatpush.bf16.msra.mxu0 %v2223
    %2262 = vmatmul.bf16.gmra.mxu0 %v136
    %v2263 = vpop.f32.mrf.mxu0
    %v2264 = vadd.f32 %v2204, %v2263
    %v2265 = vpop.f32.mrf.mxu0
    %2266 = vdwg.mxu0
    %2267 = vmatpush.bf16.msra.mxu0 0
    %2268 = vmatpush.bf16.msra.mxu0 0
    %2269 = vmatpush.bf16.msra.mxu0 0
    %2270 = vmatpush.bf16.msra.mxu0 0
    %2271 = vmatpush.bf16.msra.mxu0 0
    %2272 = vmatpush.bf16.msra.mxu0 0
    %2273 = vmatpush.bf16.msra.mxu0 0
    %2274 = vmatpush.bf16.msra.mxu0 %v2226
    %2275 = vmatmul.bf16.gmra.mxu0 %v136
    %v2276 = vpop.f32.mrf.mxu0
    %v2277 = vadd.f32 %v2205, %v2276
    %v2278 = vpop.f32.mrf.mxu0
    %2279 = vdwg.mxu0
    %v2280 = vmax.f32 %v2238, 0.0
    %v2281 = vmax.f32 %v2251, 0.0
    %v2282 = vmax.f32 %v2264, 0.0
    %v2283 = vmax.f32 %v2277, 0.0
    %v2284 = vpack.c.bf16 %v2280, %v2280
    %v2285 = vpack.c.bf16 %v2281, %v2281
    %v2286 = vpack.c.bf16 %v2282, %v2282
    %v2287 = vpack.c.bf16 %v2283, %v2283
    %s2288 = scalar_lea.vmem [#allocation6], 800
    %v2289 = vld [vmem:[%s2288] sm:$0xff]
    %v2290 = vld [vmem:[%s2288 + $0x8] sm:$0xff]
    %v2291 = vld [vmem:[%s2288 + $0x10] sm:$0xff]
    %v2292 = vld [vmem:[%s2288 + $0x18] sm:$0xff]
    %v2293 = vld [vmem:[%s2288 + $0x20] sm:$0xff]
    %v2294 = vld [vmem:[%s2288 + $0x28] sm:$0xff]
    %v2295 = vld [vmem:[%s2288 + $0x30] sm:$0xff]
    %v2296 = vld [vmem:[%s2288 + $0x38] sm:$0xff]
    %v2297 = vld [vmem:[%s2288 + $0x40] sm:$0xff]
    %v2298 = vld [vmem:[%s2288 + $0x48] sm:$0xff]
    %v2299 = vld [vmem:[%s2288 + $0x50] sm:$0xff]
    %v2300 = vld [vmem:[%s2288 + $0x58] sm:$0xff]
    %v2301 = vld [vmem:[%s2288 + $0x60] sm:$0xff]
    %v2302 = vld [vmem:[%s2288 + $0x68] sm:$0xff]
    %v2303 = vld [vmem:[%s2288 + $0x70] sm:$0xff]
    %v2304 = vld [vmem:[%s2288 + $0x78] sm:$0xff]
    %v2305 = vld [vmem:[%s2288 + $0x80] sm:$0xff]
    %v2306 = vld [vmem:[%s2288 + $0x88] sm:$0xff]
    %v2307 = vld [vmem:[%s2288 + $0x90] sm:$0xff]
    %v2308 = vld [vmem:[%s2288 + $0x98] sm:$0xff]
    %v2309 = vld [vmem:[%s2288 + $0xa0] sm:$0xff]
    %v2310 = vld [vmem:[%s2288 + $0xa8] sm:$0xff]
    %v2311 = vld [vmem:[%s2288 + $0xb0] sm:$0xff]
    %v2312 = vld [vmem:[%s2288 + $0xb8] sm:$0xff]
    %v2313 = vld [vmem:[%s2288 + $0xc0] sm:$0xff]
    %v2314 = vld [vmem:[%s2288 + $0xc8] sm:$0xff]
    %v2315 = vld [vmem:[%s2288 + $0xd0] sm:$0xff]
    %v2316 = vld [vmem:[%s2288 + $0xd8] sm:$0xff]
    %v2317 = vld [vmem:[%s2288 + $0xe0] sm:$0xff]
    %v2318 = vld [vmem:[%s2288 + $0xe8] sm:$0xff]
    %v2319 = vld [vmem:[%s2288 + $0xf0] sm:$0xff]
    %v2320 = vld [vmem:[%s2288 + $0xf8] sm:$0xff]
    %v2321 = vld [vmem:[%s2288 + $0x100] sm:$0xff]
    %v2322 = vld [vmem:[%s2288 + $0x108] sm:$0xff]
    %v2323 = vld [vmem:[%s2288 + $0x110] sm:$0xff]
    %v2324 = vld [vmem:[%s2288 + $0x118] sm:$0xff]
    %v2325 = vld [vmem:[%s2288 + $0x120] sm:$0xff]
    %v2326 = vld [vmem:[%s2288 + $0x128] sm:$0xff]
    %v2327 = vld [vmem:[%s2288 + $0x130] sm:$0xff]
    %v2328 = vld [vmem:[%s2288 + $0x138] sm:$0xff]
    %v2329 = vld [vmem:[%s2288 + $0x140] sm:$0xff]
    %v2330 = vld [vmem:[%s2288 + $0x148] sm:$0xff]
    %v2331 = vld [vmem:[%s2288 + $0x150] sm:$0xff]
    %v2332 = vld [vmem:[%s2288 + $0x158] sm:$0xff]
    %v2333 = vld [vmem:[%s2288 + $0x160] sm:$0xff]
    %v2334 = vld [vmem:[%s2288 + $0x168] sm:$0xff]
    %v2335 = vld [vmem:[%s2288 + $0x170] sm:$0xff]
    %v2336 = vld [vmem:[%s2288 + $0x178] sm:$0xff]
    %v2337 = vld [vmem:[%s2288 + $0x180] sm:$0xff]
    %v2338 = vld [vmem:[%s2288 + $0x188] sm:$0xff]
    %v2339 = vld [vmem:[%s2288 + $0x190] sm:$0xff]
    %v2340 = vld [vmem:[%s2288 + $0x198] sm:$0xff]
    %v2341 = vld [vmem:[%s2288 + $0x1a0] sm:$0xff]
    %v2342 = vld [vmem:[%s2288 + $0x1a8] sm:$0xff]
    %v2343 = vld [vmem:[%s2288 + $0x1b0] sm:$0xff]
    %v2344 = vld [vmem:[%s2288 + $0x1b8] sm:$0xff]
    %v2345 = vld [vmem:[%s2288 + $0x1c0] sm:$0xff]
    %v2346 = vld [vmem:[%s2288 + $0x1c8] sm:$0xff]
    %v2347 = vld [vmem:[%s2288 + $0x1d0] sm:$0xff]
    %v2348 = vld [vmem:[%s2288 + $0x1d8] sm:$0xff]
    %v2349 = vld [vmem:[%s2288 + $0x1e0] sm:$0xff]
    %v2350 = vld [vmem:[%s2288 + $0x1e8] sm:$0xff]
    %v2351 = vld [vmem:[%s2288 + $0x1f0] sm:$0xff]
    %v2352 = vld [vmem:[%s2288 + $0x1f8] sm:$0xff]
    %v2353 = vld [vmem:[%s2288 + $0x200] sm:$0xff]
    %v2354 = vld [vmem:[%s2288 + $0x208] sm:$0xff]
    %v2355 = vld [vmem:[%s2288 + $0x210] sm:$0xff]
    %v2356 = vld [vmem:[%s2288 + $0x218] sm:$0xff]
    %v2357 = vld [vmem:[%s2288 + $0x220] sm:$0xff]
    %v2358 = vld [vmem:[%s2288 + $0x228] sm:$0xff]
    %v2359 = vld [vmem:[%s2288 + $0x230] sm:$0xff]
    %v2360 = vld [vmem:[%s2288 + $0x238] sm:$0xff]
    %v2361 = vld [vmem:[%s2288 + $0x240] sm:$0xff]
    %v2362 = vld [vmem:[%s2288 + $0x248] sm:$0xff]
    %v2363 = vld [vmem:[%s2288 + $0x250] sm:$0xff]
    %v2364 = vld [vmem:[%s2288 + $0x258] sm:$0xff]
    %v2365 = vld [vmem:[%s2288 + $0x260] sm:$0xff]
    %v2366 = vld [vmem:[%s2288 + $0x268] sm:$0xff]
    %v2367 = vld [vmem:[%s2288 + $0x270] sm:$0xff]
    %v2368 = vld [vmem:[%s2288 + $0x278] sm:$0xff]
    %v2369 = vld [vmem:[%s2288 + $0x280] sm:$0xff]
    %v2370 = vld [vmem:[%s2288 + $0x288] sm:$0xff]
    %v2371 = vld [vmem:[%s2288 + $0x290] sm:$0xff]
    %v2372 = vld [vmem:[%s2288 + $0x298] sm:$0xff]
    %v2373 = vld [vmem:[%s2288 + $0x2a0] sm:$0xff]
    %v2374 = vld [vmem:[%s2288 + $0x2a8] sm:$0xff]
    %v2375 = vld [vmem:[%s2288 + $0x2b0] sm:$0xff]
    %v2376 = vld [vmem:[%s2288 + $0x2b8] sm:$0xff]
    %v2377 = vld [vmem:[%s2288 + $0x2c0] sm:$0xff]
    %v2378 = vld [vmem:[%s2288 + $0x2c8] sm:$0xff]
    %v2379 = vld [vmem:[%s2288 + $0x2d0] sm:$0xff]
    %v2380 = vld [vmem:[%s2288 + $0x2d8] sm:$0xff]
    %v2381 = vld [vmem:[%s2288 + $0x2e0] sm:$0xff]
    %v2382 = vld [vmem:[%s2288 + $0x2e8] sm:$0xff]
    %v2383 = vld [vmem:[%s2288 + $0x2f0] sm:$0xff]
    %v2384 = vld [vmem:[%s2288 + $0x2f8] sm:$0xff]
    %v2385 = vld [vmem:[%s2288 + $0x300] sm:$0xff]
    %v2386 = vld [vmem:[%s2288 + $0x308] sm:$0xff]
    %v2387 = vld [vmem:[%s2288 + $0x310] sm:$0xff]
    %v2388 = vld [vmem:[%s2288 + $0x318] sm:$0xff]
    %s2389 = scalar_lea.vmem %s4, 4
    %v2390 = vld [vmem:[%s2389] sm:$0xf]
    %v2391 = vunpack.c.l.bf16 %v2390
    %v2393 = vperm.slane %v2391, 0
    %v2394 = vperm.slane %v2391, 2
    %v2395 = vperm.slane %v2391, 4
    %v2396 = vperm.slane %v2391, 6
    %v2401 = vperm.slane %v2393, 0
    %v2402 = vperm.slane %v2394, 0
    %v2403 = vperm.slane %v2395, 0
    %v2404 = vperm.slane %v2396, 0
    %v2505 = vunpack.c.l.b16 %v2289
    %v2506 = vunpack.c.h.b16 %v2289
    %v2507 = vunpack.c.l.b16 %v2290
    %v2508 = vunpack.c.h.b16 %v2290
    %v2509 = vunpack.c.l.b16 %v2291
    %v2510 = vunpack.c.h.b16 %v2291
    %v2511 = vunpack.c.l.b16 %v2292
    %v2512 = vunpack.c.h.b16 %v2292
    %v2513 = vunpack.c.l.b16 %v2293
    %v2514 = vunpack.c.h.b16 %v2293
    %v2515 = vunpack.c.l.b16 %v2294
    %v2516 = vunpack.c.h.b16 %v2294
    %v2517 = vunpack.c.l.b16 %v2295
    %v2518 = vunpack.c.h.b16 %v2295
    %v2519 = vunpack.c.l.b16 %v2296
    %v2520 = vunpack.c.h.b16 %v2296
    %v2521 = vunpack.c.l.b16 %v2297
    %v2522 = vunpack.c.h.b16 %v2297
    %v2523 = vunpack.c.l.b16 %v2298
    %v2524 = vunpack.c.h.b16 %v2298
    %v2525 = vunpack.c.l.b16 %v2299
    %v2526 = vunpack.c.h.b16 %v2299
    %v2527 = vunpack.c.l.b16 %v2300
    %v2528 = vunpack.c.h.b16 %v2300
    %v2529 = vunpack.c.l.b16 %v2301
    %v2530 = vunpack.c.h.b16 %v2301
    %v2531 = vunpack.c.l.b16 %v2302
    %v2532 = vunpack.c.h.b16 %v2302
    %v2533 = vunpack.c.l.b16 %v2303
    %v2534 = vunpack.c.h.b16 %v2303
    %v2535 = vunpack.c.l.b16 %v2304
    %v2536 = vunpack.c.h.b16 %v2304
    %v2537 = vunpack.c.l.b16 %v2305
    %v2538 = vunpack.c.h.b16 %v2305
    %v2539 = vunpack.c.l.b16 %v2306
    %v2540 = vunpack.c.h.b16 %v2306
    %v2541 = vunpack.c.l.b16 %v2307
    %v2542 = vunpack.c.h.b16 %v2307
    %v2543 = vunpack.c.l.b16 %v2308
    %v2544 = vunpack.c.h.b16 %v2308
    %v2545 = vunpack.c.l.b16 %v2309
    %v2546 = vunpack.c.h.b16 %v2309
    %v2547 = vunpack.c.l.b16 %v2310
    %v2548 = vunpack.c.h.b16 %v2310
    %v2549 = vunpack.c.l.b16 %v2311
    %v2550 = vunpack.c.h.b16 %v2311
    %v2551 = vunpack.c.l.b16 %v2312
    %v2552 = vunpack.c.h.b16 %v2312
    %v2553 = vunpack.c.l.b16 %v2313
    %v2554 = vunpack.c.h.b16 %v2313
    %v2555 = vunpack.c.l.b16 %v2314
    %v2556 = vunpack.c.h.b16 %v2314
    %v2557 = vunpack.c.l.b16 %v2315
    %v2558 = vunpack.c.h.b16 %v2315
    %v2559 = vunpack.c.l.b16 %v2316
    %v2560 = vunpack.c.h.b16 %v2316
    %v2561 = vunpack.c.l.b16 %v2317
    %v2562 = vunpack.c.h.b16 %v2317
    %v2563 = vunpack.c.l.b16 %v2318
    %v2564 = vunpack.c.h.b16 %v2318
    %v2565 = vunpack.c.l.b16 %v2319
    %v2566 = vunpack.c.h.b16 %v2319
    %v2567 = vunpack.c.l.b16 %v2320
    %v2568 = vunpack.c.h.b16 %v2320
    %v2569 = vunpack.c.l.b16 %v2321
    %v2570 = vunpack.c.h.b16 %v2321
    %v2571 = vunpack.c.l.b16 %v2322
    %v2572 = vunpack.c.h.b16 %v2322
    %v2573 = vunpack.c.l.b16 %v2323
    %v2574 = vunpack.c.h.b16 %v2323
    %v2575 = vunpack.c.l.b16 %v2324
    %v2576 = vunpack.c.h.b16 %v2324
    %v2577 = vunpack.c.l.b16 %v2325
    %v2578 = vunpack.c.h.b16 %v2325
    %v2579 = vunpack.c.l.b16 %v2326
    %v2580 = vunpack.c.h.b16 %v2326
    %v2581 = vunpack.c.l.b16 %v2327
    %v2582 = vunpack.c.h.b16 %v2327
    %v2583 = vunpack.c.l.b16 %v2328
    %v2584 = vunpack.c.h.b16 %v2328
    %v2585 = vunpack.c.l.b16 %v2329
    %v2586 = vunpack.c.h.b16 %v2329
    %v2587 = vunpack.c.l.b16 %v2330
    %v2588 = vunpack.c.h.b16 %v2330
    %v2589 = vunpack.c.l.b16 %v2331
    %v2590 = vunpack.c.h.b16 %v2331
    %v2591 = vunpack.c.l.b16 %v2332
    %v2592 = vunpack.c.h.b16 %v2332
    %v2593 = vunpack.c.l.b16 %v2333
    %v2594 = vunpack.c.h.b16 %v2333
    %v2595 = vunpack.c.l.b16 %v2334
    %v2596 = vunpack.c.h.b16 %v2334
    %v2597 = vunpack.c.l.b16 %v2335
    %v2598 = vunpack.c.h.b16 %v2335
    %v2599 = vunpack.c.l.b16 %v2336
    %v2600 = vunpack.c.h.b16 %v2336
    %v2601 = vunpack.c.l.b16 %v2337
    %v2602 = vunpack.c.h.b16 %v2337
    %v2603 = vunpack.c.l.b16 %v2338
    %v2604 = vunpack.c.h.b16 %v2338
    %v2605 = vunpack.c.l.b16 %v2339
    %v2606 = vunpack.c.h.b16 %v2339
    %v2607 = vunpack.c.l.b16 %v2340
    %v2608 = vunpack.c.h.b16 %v2340
    %v2609 = vunpack.c.l.b16 %v2341
    %v2610 = vunpack.c.h.b16 %v2341
    %v2611 = vunpack.c.l.b16 %v2342
    %v2612 = vunpack.c.h.b16 %v2342
    %v2613 = vunpack.c.l.b16 %v2343
    %v2614 = vunpack.c.h.b16 %v2343
    %v2615 = vunpack.c.l.b16 %v2344
    %v2616 = vunpack.c.h.b16 %v2344
    %v2617 = vunpack.c.l.b16 %v2345
    %v2618 = vunpack.c.h.b16 %v2345
    %v2619 = vunpack.c.l.b16 %v2346
    %v2620 = vunpack.c.h.b16 %v2346
    %v2621 = vunpack.c.l.b16 %v2347
    %v2622 = vunpack.c.h.b16 %v2347
    %v2623 = vunpack.c.l.b16 %v2348
    %v2624 = vunpack.c.h.b16 %v2348
    %v2625 = vunpack.c.l.b16 %v2349
    %v2626 = vunpack.c.h.b16 %v2349
    %v2627 = vunpack.c.l.b16 %v2350
    %v2628 = vunpack.c.h.b16 %v2350
    %v2629 = vunpack.c.l.b16 %v2351
    %v2630 = vunpack.c.h.b16 %v2351
    %v2631 = vunpack.c.l.b16 %v2352
    %v2632 = vunpack.c.h.b16 %v2352
    %v2633 = vunpack.c.l.b16 %v2353
    %v2634 = vunpack.c.h.b16 %v2353
    %v2635 = vunpack.c.l.b16 %v2354
    %v2636 = vunpack.c.h.b16 %v2354
    %v2637 = vunpack.c.l.b16 %v2355
    %v2638 = vunpack.c.h.b16 %v2355
    %v2639 = vunpack.c.l.b16 %v2356
    %v2640 = vunpack.c.h.b16 %v2356
    %v2641 = vunpack.c.l.b16 %v2357
    %v2642 = vunpack.c.h.b16 %v2357
    %v2643 = vunpack.c.l.b16 %v2358
    %v2644 = vunpack.c.h.b16 %v2358
    %v2645 = vunpack.c.l.b16 %v2359
    %v2646 = vunpack.c.h.b16 %v2359
    %v2647 = vunpack.c.l.b16 %v2360
    %v2648 = vunpack.c.h.b16 %v2360
    %v2649 = vunpack.c.l.b16 %v2361
    %v2650 = vunpack.c.h.b16 %v2361
    %v2651 = vunpack.c.l.b16 %v2362
    %v2652 = vunpack.c.h.b16 %v2362
    %v2653 = vunpack.c.l.b16 %v2363
    %v2654 = vunpack.c.h.b16 %v2363
    %v2655 = vunpack.c.l.b16 %v2364
    %v2656 = vunpack.c.h.b16 %v2364
    %v2657 = vunpack.c.l.b16 %v2365
    %v2658 = vunpack.c.h.b16 %v2365
    %v2659 = vunpack.c.l.b16 %v2366
    %v2660 = vunpack.c.h.b16 %v2366
    %v2661 = vunpack.c.l.b16 %v2367
    %v2662 = vunpack.c.h.b16 %v2367
    %v2663 = vunpack.c.l.b16 %v2368
    %v2664 = vunpack.c.h.b16 %v2368
    %v2665 = vunpack.c.l.b16 %v2369
    %v2666 = vunpack.c.h.b16 %v2369
    %v2667 = vunpack.c.l.b16 %v2370
    %v2668 = vunpack.c.h.b16 %v2370
    %v2669 = vunpack.c.l.b16 %v2371
    %v2670 = vunpack.c.h.b16 %v2371
    %v2671 = vunpack.c.l.b16 %v2372
    %v2672 = vunpack.c.h.b16 %v2372
    %v2673 = vunpack.c.l.b16 %v2373
    %v2674 = vunpack.c.h.b16 %v2373
    %v2675 = vunpack.c.l.b16 %v2374
    %v2676 = vunpack.c.h.b16 %v2374
    %v2677 = vunpack.c.l.b16 %v2375
    %v2678 = vunpack.c.h.b16 %v2375
    %v2679 = vunpack.c.l.b16 %v2376
    %v2680 = vunpack.c.h.b16 %v2376
    %v2681 = vunpack.c.l.b16 %v2377
    %v2682 = vunpack.c.h.b16 %v2377
    %v2683 = vunpack.c.l.b16 %v2378
    %v2684 = vunpack.c.h.b16 %v2378
    %v2685 = vunpack.c.l.b16 %v2379
    %v2686 = vunpack.c.h.b16 %v2379
    %v2687 = vunpack.c.l.b16 %v2380
    %v2688 = vunpack.c.h.b16 %v2380
    %v2689 = vunpack.c.l.b16 %v2381
    %v2690 = vunpack.c.h.b16 %v2381
    %v2691 = vunpack.c.l.b16 %v2382
    %v2692 = vunpack.c.h.b16 %v2382
    %v2693 = vunpack.c.l.b16 %v2383
    %v2694 = vunpack.c.h.b16 %v2383
    %v2695 = vunpack.c.l.b16 %v2384
    %v2696 = vunpack.c.h.b16 %v2384
    %v2697 = vunpack.c.l.b16 %v2385
    %v2698 = vunpack.c.h.b16 %v2385
    %v2699 = vunpack.c.l.b16 %v2386
    %v2700 = vunpack.c.h.b16 %v2386
    %v2701 = vunpack.c.l.b16 %v2387
    %v2702 = vunpack.c.h.b16 %v2387
    %v2703 = vunpack.c.l.b16 %v2388
    %v2704 = vunpack.c.h.b16 %v2388
    %v2705 = vpack.c.b16 %v2509, %v2505
    %v2706 = vpack.c.b16 %v2510, %v2506
    %v2707 = vpack.c.b16 %v2511, %v2507
    %v2708 = vpack.c.b16 %v2512, %v2508
    %v2709 = vpack.c.b16 %v2517, %v2513
    %v2710 = vpack.c.b16 %v2518, %v2514
    %v2711 = vpack.c.b16 %v2519, %v2515
    %v2712 = vpack.c.b16 %v2520, %v2516
    %v2713 = vpack.c.b16 %v2525, %v2521
    %v2714 = vpack.c.b16 %v2526, %v2522
    %v2715 = vpack.c.b16 %v2527, %v2523
    %v2716 = vpack.c.b16 %v2528, %v2524
    %v2717 = vpack.c.b16 %v2533, %v2529
    %v2718 = vpack.c.b16 %v2534, %v2530
    %v2719 = vpack.c.b16 %v2535, %v2531
    %v2720 = vpack.c.b16 %v2536, %v2532
    %v2721 = vpack.c.b16 %v2541, %v2537
    %v2722 = vpack.c.b16 %v2542, %v2538
    %v2723 = vpack.c.b16 %v2543, %v2539
    %v2724 = vpack.c.b16 %v2544, %v2540
    %v2725 = vpack.c.b16 %v2549, %v2545
    %v2726 = vpack.c.b16 %v2550, %v2546
    %v2727 = vpack.c.b16 %v2551, %v2547
    %v2728 = vpack.c.b16 %v2552, %v2548
    %v2729 = vpack.c.b16 %v2557, %v2553
    %v2730 = vpack.c.b16 %v2558, %v2554
    %v2731 = vpack.c.b16 %v2559, %v2555
    %v2732 = vpack.c.b16 %v2560, %v2556
    %v2733 = vpack.c.b16 %v2565, %v2561
    %v2734 = vpack.c.b16 %v2566, %v2562
    %v2735 = vpack.c.b16 %v2567, %v2563
    %v2736 = vpack.c.b16 %v2568, %v2564
    %v2737 = vpack.c.b16 %v2573, %v2569
    %v2738 = vpack.c.b16 %v2574, %v2570
    %v2739 = vpack.c.b16 %v2575, %v2571
    %v2740 = vpack.c.b16 %v2576, %v2572
    %v2741 = vpack.c.b16 %v2581, %v2577
    %v2742 = vpack.c.b16 %v2582, %v2578
    %v2743 = vpack.c.b16 %v2583, %v2579
    %v2744 = vpack.c.b16 %v2584, %v2580
    %v2745 = vpack.c.b16 %v2589, %v2585
    %v2746 = vpack.c.b16 %v2590, %v2586
    %v2747 = vpack.c.b16 %v2591, %v2587
    %v2748 = vpack.c.b16 %v2592, %v2588
    %v2749 = vpack.c.b16 %v2597, %v2593
    %v2750 = vpack.c.b16 %v2598, %v2594
    %v2751 = vpack.c.b16 %v2599, %v2595
    %v2752 = vpack.c.b16 %v2600, %v2596
    %v2753 = vpack.c.b16 %v2605, %v2601
    %v2754 = vpack.c.b16 %v2606, %v2602
    %v2755 = vpack.c.b16 %v2607, %v2603
    %v2756 = vpack.c.b16 %v2608, %v2604
    %v2757 = vpack.c.b16 %v2613, %v2609
    %v2758 = vpack.c.b16 %v2614, %v2610
    %v2759 = vpack.c.b16 %v2615, %v2611
    %v2760 = vpack.c.b16 %v2616, %v2612
    %v2761 = vpack.c.b16 %v2621, %v2617
    %v2762 = vpack.c.b16 %v2622, %v2618
    %v2763 = vpack.c.b16 %v2623, %v2619
    %v2764 = vpack.c.b16 %v2624, %v2620
    %v2765 = vpack.c.b16 %v2629, %v2625
    %v2766 = vpack.c.b16 %v2630, %v2626
    %v2767 = vpack.c.b16 %v2631, %v2627
    %v2768 = vpack.c.b16 %v2632, %v2628
    %v2769 = vpack.c.b16 %v2637, %v2633
    %v2770 = vpack.c.b16 %v2638, %v2634
    %v2771 = vpack.c.b16 %v2639, %v2635
    %v2772 = vpack.c.b16 %v2640, %v2636
    %v2773 = vpack.c.b16 %v2645, %v2641
    %v2774 = vpack.c.b16 %v2646, %v2642
    %v2775 = vpack.c.b16 %v2647, %v2643
    %v2776 = vpack.c.b16 %v2648, %v2644
    %v2777 = vpack.c.b16 %v2653, %v2649
    %v2778 = vpack.c.b16 %v2654, %v2650
    %v2779 = vpack.c.b16 %v2655, %v2651
    %v2780 = vpack.c.b16 %v2656, %v2652
    %v2781 = vpack.c.b16 %v2661, %v2657
    %v2782 = vpack.c.b16 %v2662, %v2658
    %v2783 = vpack.c.b16 %v2663, %v2659
    %v2784 = vpack.c.b16 %v2664, %v2660
    %v2785 = vpack.c.b16 %v2669, %v2665
    %v2786 = vpack.c.b16 %v2670, %v2666
    %v2787 = vpack.c.b16 %v2671, %v2667
    %v2788 = vpack.c.b16 %v2672, %v2668
    %v2789 = vpack.c.b16 %v2677, %v2673
    %v2790 = vpack.c.b16 %v2678, %v2674
    %v2791 = vpack.c.b16 %v2679, %v2675
    %v2792 = vpack.c.b16 %v2680, %v2676
    %v2793 = vpack.c.b16 %v2685, %v2681
    %v2794 = vpack.c.b16 %v2686, %v2682
    %v2795 = vpack.c.b16 %v2687, %v2683
    %v2796 = vpack.c.b16 %v2688, %v2684
    %v2797 = vpack.c.b16 %v2693, %v2689
    %v2798 = vpack.c.b16 %v2694, %v2690
    %v2799 = vpack.c.b16 %v2695, %v2691
    %v2800 = vpack.c.b16 %v2696, %v2692
    %v2801 = vpack.c.b16 %v2701, %v2697
    %v2802 = vpack.c.b16 %v2702, %v2698
    %v2803 = vpack.c.b16 %v2703, %v2699
    %v2804 = vpack.c.b16 %v2704, %v2700
    %v2906 = vsel %vm826, %v2287, 0
    %2908 = vmatpush.bf16.msra.mxu0 %v2733
    %2909 = vmatpush.bf16.msra.mxu0 %v2729
    %2910 = vmatpush.bf16.msra.mxu0 %v2725
    %2911 = vmatpush.bf16.msra.mxu0 %v2721
    %2912 = vmatpush.bf16.msra.mxu0 %v2717
    %2913 = vmatpush.bf16.msra.mxu0 %v2713
    %2914 = vmatpush.bf16.msra.mxu0 %v2709
    %2915 = vmatpush.bf16.msra.mxu0 %v2705
    %2916 = vmatmul.bf16.gmra.mxu0 %v2284
    %v2917 = vpop.f32.mrf.mxu0
    %v2918 = vadd.f32 %v2401, %v2917
    %v2919 = vpop.f32.mrf.mxu0
    %2920 = vdwg.mxu0
    %2921 = vmatpush.bf16.msra.mxu0 %v2765
    %2922 = vmatpush.bf16.msra.mxu0 %v2761
    %2923 = vmatpush.bf16.msra.mxu0 %v2757
    %2924 = vmatpush.bf16.msra.mxu0 %v2753
    %2925 = vmatpush.bf16.msra.mxu0 %v2749
    %2926 = vmatpush.bf16.msra.mxu0 %v2745
    %2927 = vmatpush.bf16.msra.mxu0 %v2741
    %2928 = vmatpush.bf16.msra.mxu0 %v2737
    %2929 = vmatmul.bf16.gmra.mxu0 %v2285
    %v2930 = vpop.f32.mrf.mxu0
    %v2931 = vadd.f32 %v2918, %v2930
    %v2932 = vpop.f32.mrf.mxu0
    %2933 = vdwg.mxu0
    %2934 = vmatpush.bf16.msra.mxu0 %v2797
    %2935 = vmatpush.bf16.msra.mxu0 %v2793
    %2936 = vmatpush.bf16.msra.mxu0 %v2789
    %2937 = vmatpush.bf16.msra.mxu0 %v2785
    %2938 = vmatpush.bf16.msra.mxu0 %v2781
    %2939 = vmatpush.bf16.msra.mxu0 %v2777
    %2940 = vmatpush.bf16.msra.mxu0 %v2773
    %2941 = vmatpush.bf16.msra.mxu0 %v2769
    %2942 = vmatmul.bf16.gmra.mxu0 %v2286
    %v2943 = vpop.f32.mrf.mxu0
    %v2944 = vadd.f32 %v2931, %v2943
    %v2945 = vpop.f32.mrf.mxu0
    %2946 = vdwg.mxu0
    %2947 = vmatpush.bf16.msra.mxu0 0
    %2948 = vmatpush.bf16.msra.mxu0 0
    %2949 = vmatpush.bf16.msra.mxu0 0
    %2950 = vmatpush.bf16.msra.mxu0 0
    %2951 = vmatpush.bf16.msra.mxu0 0
    %2952 = vmatpush.bf16.msra.mxu0 0
    %2953 = vmatpush.bf16.msra.mxu0 0
    %2954 = vmatpush.bf16.msra.mxu0 %v2801
    %2955 = vmatmul.bf16.gmra.mxu0 %v2906
    %v2956 = vpop.f32.mrf.mxu0
    %v2957 = vadd.f32 %v2944, %v2956
    %v2958 = vpop.f32.mrf.mxu0
    %2959 = vdwg.mxu0
    %2960 = vmatpush.bf16.msra.mxu0 %v2734
    %2961 = vmatpush.bf16.msra.mxu0 %v2730
    %2962 = vmatpush.bf16.msra.mxu0 %v2726
    %2963 = vmatpush.bf16.msra.mxu0 %v2722
    %2964 = vmatpush.bf16.msra.mxu0 %v2718
    %2965 = vmatpush.bf16.msra.mxu0 %v2714
    %2966 = vmatpush.bf16.msra.mxu0 %v2710
    %2967 = vmatpush.bf16.msra.mxu0 %v2706
    %2968 = vmatmul.bf16.gmra.mxu0 %v2284
    %v2969 = vpop.f32.mrf.mxu0
    %v2970 = vadd.f32 %v2402, %v2969
    %v2971 = vpop.f32.mrf.mxu0
    %2972 = vdwg.mxu0
    %2973 = vmatpush.bf16.msra.mxu0 %v2766
    %2974 = vmatpush.bf16.msra.mxu0 %v2762
    %2975 = vmatpush.bf16.msra.mxu0 %v2758
    %2976 = vmatpush.bf16.msra.mxu0 %v2754
    %2977 = vmatpush.bf16.msra.mxu0 %v2750
    %2978 = vmatpush.bf16.msra.mxu0 %v2746
    %2979 = vmatpush.bf16.msra.mxu0 %v2742
    %2980 = vmatpush.bf16.msra.mxu0 %v2738
    %2981 = vmatmul.bf16.gmra.mxu0 %v2285
    %v2982 = vpop.f32.mrf.mxu0
    %v2983 = vadd.f32 %v2970, %v2982
    %v2984 = vpop.f32.mrf.mxu0
    %2985 = vdwg.mxu0
    %2986 = vmatpush.bf16.msra.mxu0 %v2798
    %2987 = vmatpush.bf16.msra.mxu0 %v2794
    %2988 = vmatpush.bf16.msra.mxu0 %v2790
    %2989 = vmatpush.bf16.msra.mxu0 %v2786
    %2990 = vmatpush.bf16.msra.mxu0 %v2782
    %2991 = vmatpush.bf16.msra.mxu0 %v2778
    %2992 = vmatpush.bf16.msra.mxu0 %v2774
    %2993 = vmatpush.bf16.msra.mxu0 %v2770
    %2994 = vmatmul.bf16.gmra.mxu0 %v2286
    %v2995 = vpop.f32.mrf.mxu0
    %v2996 = vadd.f32 %v2983, %v2995
    %v2997 = vpop.f32.mrf.mxu0
    %2998 = vdwg.mxu0
    %2999 = vmatpush.bf16.msra.mxu0 0
    %3000 = vmatpush.bf16.msra.mxu0 0
    %3001 = vmatpush.bf16.msra.mxu0 0
    %3002 = vmatpush.bf16.msra.mxu0 0
    %3003 = vmatpush.bf16.msra.mxu0 0
    %3004 = vmatpush.bf16.msra.mxu0 0
    %3005 = vmatpush.bf16.msra.mxu0 0
    %3006 = vmatpush.bf16.msra.mxu0 %v2802
    %3007 = vmatmul.bf16.gmra.mxu0 %v2906
    %v3008 = vpop.f32.mrf.mxu0
    %v3009 = vadd.f32 %v2996, %v3008
    %v3010 = vpop.f32.mrf.mxu0
    %3011 = vdwg.mxu0
    %3012 = vmatpush.bf16.msra.mxu0 %v2735
    %3013 = vmatpush.bf16.msra.mxu0 %v2731
    %3014 = vmatpush.bf16.msra.mxu0 %v2727
    %3015 = vmatpush.bf16.msra.mxu0 %v2723
    %3016 = vmatpush.bf16.msra.mxu0 %v2719
    %3017 = vmatpush.bf16.msra.mxu0 %v2715
    %3018 = vmatpush.bf16.msra.mxu0 %v2711
    %3019 = vmatpush.bf16.msra.mxu0 %v2707
    %3020 = vmatmul.bf16.gmra.mxu0 %v2284
    %v3021 = vpop.f32.mrf.mxu0
    %v3022 = vadd.f32 %v2403, %v3021
    %v3023 = vpop.f32.mrf.mxu0
    %3024 = vdwg.mxu0
    %3025 = vmatpush.bf16.msra.mxu0 %v2767
    %3026 = vmatpush.bf16.msra.mxu0 %v2763
    %3027 = vmatpush.bf16.msra.mxu0 %v2759
    %3028 = vmatpush.bf16.msra.mxu0 %v2755
    %3029 = vmatpush.bf16.msra.mxu0 %v2751
    %3030 = vmatpush.bf16.msra.mxu0 %v2747
    %3031 = vmatpush.bf16.msra.mxu0 %v2743
    %3032 = vmatpush.bf16.msra.mxu0 %v2739
    %3033 = vmatmul.bf16.gmra.mxu0 %v2285
    %v3034 = vpop.f32.mrf.mxu0
    %v3035 = vadd.f32 %v3022, %v3034
    %v3036 = vpop.f32.mrf.mxu0
    %3037 = vdwg.mxu0
    %3038 = vmatpush.bf16.msra.mxu0 %v2799
    %3039 = vmatpush.bf16.msra.mxu0 %v2795
    %3040 = vmatpush.bf16.msra.mxu0 %v2791
    %3041 = vmatpush.bf16.msra.mxu0 %v2787
    %3042 = vmatpush.bf16.msra.mxu0 %v2783
    %3043 = vmatpush.bf16.msra.mxu0 %v2779
    %3044 = vmatpush.bf16.msra.mxu0 %v2775
    %3045 = vmatpush.bf16.msra.mxu0 %v2771
    %3046 = vmatmul.bf16.gmra.mxu0 %v2286
    %v3047 = vpop.f32.mrf.mxu0
    %v3048 = vadd.f32 %v3035, %v3047
    %v3049 = vpop.f32.mrf.mxu0
    %3050 = vdwg.mxu0
    %3051 = vmatpush.bf16.msra.mxu0 0
    %3052 = vmatpush.bf16.msra.mxu0 0
    %3053 = vmatpush.bf16.msra.mxu0 0
    %3054 = vmatpush.bf16.msra.mxu0 0
    %3055 = vmatpush.bf16.msra.mxu0 0
    %3056 = vmatpush.bf16.msra.mxu0 0
    %3057 = vmatpush.bf16.msra.mxu0 0
    %3058 = vmatpush.bf16.msra.mxu0 %v2803
    %3059 = vmatmul.bf16.gmra.mxu0 %v2906
    %v3060 = vpop.f32.mrf.mxu0
    %v3061 = vadd.f32 %v3048, %v3060
    %v3062 = vpop.f32.mrf.mxu0
    %3063 = vdwg.mxu0
    %3064 = vmatpush.bf16.msra.mxu0 %v2736
    %3065 = vmatpush.bf16.msra.mxu0 %v2732
    %3066 = vmatpush.bf16.msra.mxu0 %v2728
    %3067 = vmatpush.bf16.msra.mxu0 %v2724
    %3068 = vmatpush.bf16.msra.mxu0 %v2720
    %3069 = vmatpush.bf16.msra.mxu0 %v2716
    %3070 = vmatpush.bf16.msra.mxu0 %v2712
    %3071 = vmatpush.bf16.msra.mxu0 %v2708
    %3072 = vmatmul.bf16.gmra.mxu0 %v2284
    %v3073 = vpop.f32.mrf.mxu0
    %v3074 = vadd.f32 %v2404, %v3073
    %v3075 = vpop.f32.mrf.mxu0
    %3076 = vdwg.mxu0
    %3077 = vmatpush.bf16.msra.mxu0 %v2768
    %3078 = vmatpush.bf16.msra.mxu0 %v2764
    %3079 = vmatpush.bf16.msra.mxu0 %v2760
    %3080 = vmatpush.bf16.msra.mxu0 %v2756
    %3081 = vmatpush.bf16.msra.mxu0 %v2752
    %3082 = vmatpush.bf16.msra.mxu0 %v2748
    %3083 = vmatpush.bf16.msra.mxu0 %v2744
    %3084 = vmatpush.bf16.msra.mxu0 %v2740
    %3085 = vmatmul.bf16.gmra.mxu0 %v2285
    %v3086 = vpop.f32.mrf.mxu0
    %v3087 = vadd.f32 %v3074, %v3086
    %v3088 = vpop.f32.mrf.mxu0
    %3089 = vdwg.mxu0
    %3090 = vmatpush.bf16.msra.mxu0 %v2800
    %3091 = vmatpush.bf16.msra.mxu0 %v2796
    %3092 = vmatpush.bf16.msra.mxu0 %v2792
    %3093 = vmatpush.bf16.msra.mxu0 %v2788
    %3094 = vmatpush.bf16.msra.mxu0 %v2784
    %3095 = vmatpush.bf16.msra.mxu0 %v2780
    %3096 = vmatpush.bf16.msra.mxu0 %v2776
    %3097 = vmatpush.bf16.msra.mxu0 %v2772
    %3098 = vmatmul.bf16.gmra.mxu0 %v2286
    %v3099 = vpop.f32.mrf.mxu0
    %v3100 = vadd.f32 %v3087, %v3099
    %v3101 = vpop.f32.mrf.mxu0
    %3102 = vdwg.mxu0
    %3103 = vmatpush.bf16.msra.mxu0 0
    %3104 = vmatpush.bf16.msra.mxu0 0
    %3105 = vmatpush.bf16.msra.mxu0 0
    %3106 = vmatpush.bf16.msra.mxu0 0
    %3107 = vmatpush.bf16.msra.mxu0 0
    %3108 = vmatpush.bf16.msra.mxu0 0
    %3109 = vmatpush.bf16.msra.mxu0 0
    %3110 = vmatpush.bf16.msra.mxu0 %v2804
    %3111 = vmatmul.bf16.gmra.mxu0 %v2906
    %v3112 = vpop.f32.mrf.mxu0
    %v3113 = vadd.f32 %v3100, %v3112
    %v3114 = vpop.f32.mrf.mxu0
    %3115 = vdwg.mxu0
    %v3116 = vmax.f32 %v2957, 0.0
    %v3117 = vmax.f32 %v3009, 0.0
    %v3118 = vmax.f32 %v3061, 0.0
    %v3119 = vmax.f32 %v3113, 0.0
    %v3120 = vpack.c.bf16 %v3116, %v3116
    %v3121 = vpack.c.bf16 %v3117, %v3117
    %v3122 = vpack.c.bf16 %v3118, %v3118
    %v3123 = vpack.c.bf16 %v3119, %v3119
    %s3124 = scalar_lea.vmem [#allocation7], 800
    %v3125 = vld [vmem:[%s3124] sm:$0xff]
    %v3126 = vld [vmem:[%s3124 + $0x8] sm:$0xff]
    %v3127 = vld [vmem:[%s3124 + $0x10] sm:$0xff]
    %v3128 = vld [vmem:[%s3124 + $0x18] sm:$0xff]
    %v3129 = vld [vmem:[%s3124 + $0x20] sm:$0xff]
    %v3130 = vld [vmem:[%s3124 + $0x28] sm:$0xff]
    %v3131 = vld [vmem:[%s3124 + $0x30] sm:$0xff]
    %v3132 = vld [vmem:[%s3124 + $0x38] sm:$0xff]
    %v3133 = vld [vmem:[%s3124 + $0x40] sm:$0xff]
    %v3134 = vld [vmem:[%s3124 + $0x48] sm:$0xff]
    %v3135 = vld [vmem:[%s3124 + $0x50] sm:$0xff]
    %v3136 = vld [vmem:[%s3124 + $0x58] sm:$0xff]
    %v3137 = vld [vmem:[%s3124 + $0x60] sm:$0xff]
    %v3138 = vld [vmem:[%s3124 + $0x68] sm:$0xff]
    %v3139 = vld [vmem:[%s3124 + $0x70] sm:$0xff]
    %v3140 = vld [vmem:[%s3124 + $0x78] sm:$0xff]
    %v3141 = vld [vmem:[%s3124 + $0x80] sm:$0xff]
    %v3142 = vld [vmem:[%s3124 + $0x88] sm:$0xff]
    %v3143 = vld [vmem:[%s3124 + $0x90] sm:$0xff]
    %v3144 = vld [vmem:[%s3124 + $0x98] sm:$0xff]
    %v3145 = vld [vmem:[%s3124 + $0xa0] sm:$0xff]
    %v3146 = vld [vmem:[%s3124 + $0xa8] sm:$0xff]
    %v3147 = vld [vmem:[%s3124 + $0xb0] sm:$0xff]
    %v3148 = vld [vmem:[%s3124 + $0xb8] sm:$0xff]
    %v3149 = vld [vmem:[%s3124 + $0xc0] sm:$0xff]
    %v3150 = vld [vmem:[%s3124 + $0xc8] sm:$0xff]
    %v3151 = vld [vmem:[%s3124 + $0xd0] sm:$0xff]
    %v3152 = vld [vmem:[%s3124 + $0xd8] sm:$0xff]
    %v3153 = vld [vmem:[%s3124 + $0xe0] sm:$0xff]
    %v3154 = vld [vmem:[%s3124 + $0xe8] sm:$0xff]
    %v3155 = vld [vmem:[%s3124 + $0xf0] sm:$0xff]
    %v3156 = vld [vmem:[%s3124 + $0xf8] sm:$0xff]
    %v3157 = vld [vmem:[%s3124 + $0x100] sm:$0xff]
    %v3158 = vld [vmem:[%s3124 + $0x108] sm:$0xff]
    %v3159 = vld [vmem:[%s3124 + $0x110] sm:$0xff]
    %v3160 = vld [vmem:[%s3124 + $0x118] sm:$0xff]
    %v3161 = vld [vmem:[%s3124 + $0x120] sm:$0xff]
    %v3162 = vld [vmem:[%s3124 + $0x128] sm:$0xff]
    %v3163 = vld [vmem:[%s3124 + $0x130] sm:$0xff]
    %v3164 = vld [vmem:[%s3124 + $0x138] sm:$0xff]
    %v3165 = vld [vmem:[%s3124 + $0x140] sm:$0xff]
    %v3166 = vld [vmem:[%s3124 + $0x148] sm:$0xff]
    %v3167 = vld [vmem:[%s3124 + $0x150] sm:$0xff]
    %v3168 = vld [vmem:[%s3124 + $0x158] sm:$0xff]
    %v3169 = vld [vmem:[%s3124 + $0x160] sm:$0xff]
    %v3170 = vld [vmem:[%s3124 + $0x168] sm:$0xff]
    %v3171 = vld [vmem:[%s3124 + $0x170] sm:$0xff]
    %v3172 = vld [vmem:[%s3124 + $0x178] sm:$0xff]
    %v3173 = vld [vmem:[%s3124 + $0x180] sm:$0xff]
    %v3174 = vld [vmem:[%s3124 + $0x188] sm:$0xff]
    %v3175 = vld [vmem:[%s3124 + $0x190] sm:$0xff]
    %v3176 = vld [vmem:[%s3124 + $0x198] sm:$0xff]
    %v3177 = vld [vmem:[%s3124 + $0x1a0] sm:$0xff]
    %v3178 = vld [vmem:[%s3124 + $0x1a8] sm:$0xff]
    %v3179 = vld [vmem:[%s3124 + $0x1b0] sm:$0xff]
    %v3180 = vld [vmem:[%s3124 + $0x1b8] sm:$0xff]
    %v3181 = vld [vmem:[%s3124 + $0x1c0] sm:$0xff]
    %v3182 = vld [vmem:[%s3124 + $0x1c8] sm:$0xff]
    %v3183 = vld [vmem:[%s3124 + $0x1d0] sm:$0xff]
    %v3184 = vld [vmem:[%s3124 + $0x1d8] sm:$0xff]
    %v3185 = vld [vmem:[%s3124 + $0x1e0] sm:$0xff]
    %v3186 = vld [vmem:[%s3124 + $0x1e8] sm:$0xff]
    %v3187 = vld [vmem:[%s3124 + $0x1f0] sm:$0xff]
    %v3188 = vld [vmem:[%s3124 + $0x1f8] sm:$0xff]
    %v3189 = vld [vmem:[%s3124 + $0x200] sm:$0xff]
    %v3190 = vld [vmem:[%s3124 + $0x208] sm:$0xff]
    %v3191 = vld [vmem:[%s3124 + $0x210] sm:$0xff]
    %v3192 = vld [vmem:[%s3124 + $0x218] sm:$0xff]
    %v3193 = vld [vmem:[%s3124 + $0x220] sm:$0xff]
    %v3194 = vld [vmem:[%s3124 + $0x228] sm:$0xff]
    %v3195 = vld [vmem:[%s3124 + $0x230] sm:$0xff]
    %v3196 = vld [vmem:[%s3124 + $0x238] sm:$0xff]
    %v3197 = vld [vmem:[%s3124 + $0x240] sm:$0xff]
    %v3198 = vld [vmem:[%s3124 + $0x248] sm:$0xff]
    %v3199 = vld [vmem:[%s3124 + $0x250] sm:$0xff]
    %v3200 = vld [vmem:[%s3124 + $0x258] sm:$0xff]
    %v3201 = vld [vmem:[%s3124 + $0x260] sm:$0xff]
    %v3202 = vld [vmem:[%s3124 + $0x268] sm:$0xff]
    %v3203 = vld [vmem:[%s3124 + $0x270] sm:$0xff]
    %v3204 = vld [vmem:[%s3124 + $0x278] sm:$0xff]
    %v3205 = vld [vmem:[%s3124 + $0x280] sm:$0xff]
    %v3206 = vld [vmem:[%s3124 + $0x288] sm:$0xff]
    %v3207 = vld [vmem:[%s3124 + $0x290] sm:$0xff]
    %v3208 = vld [vmem:[%s3124 + $0x298] sm:$0xff]
    %v3209 = vld [vmem:[%s3124 + $0x2a0] sm:$0xff]
    %v3210 = vld [vmem:[%s3124 + $0x2a8] sm:$0xff]
    %v3211 = vld [vmem:[%s3124 + $0x2b0] sm:$0xff]
    %v3212 = vld [vmem:[%s3124 + $0x2b8] sm:$0xff]
    %v3213 = vld [vmem:[%s3124 + $0x2c0] sm:$0xff]
    %v3214 = vld [vmem:[%s3124 + $0x2c8] sm:$0xff]
    %v3215 = vld [vmem:[%s3124 + $0x2d0] sm:$0xff]
    %v3216 = vld [vmem:[%s3124 + $0x2d8] sm:$0xff]
    %v3217 = vld [vmem:[%s3124 + $0x2e0] sm:$0xff]
    %v3218 = vld [vmem:[%s3124 + $0x2e8] sm:$0xff]
    %v3219 = vld [vmem:[%s3124 + $0x2f0] sm:$0xff]
    %v3220 = vld [vmem:[%s3124 + $0x2f8] sm:$0xff]
    %v3221 = vld [vmem:[%s3124 + $0x300] sm:$0xff]
    %v3222 = vld [vmem:[%s3124 + $0x308] sm:$0xff]
    %v3223 = vld [vmem:[%s3124 + $0x310] sm:$0xff]
    %v3224 = vld [vmem:[%s3124 + $0x318] sm:$0xff]
    %s3225 = scalar_lea.vmem %s6, 4
    %v3226 = vld [vmem:[%s3225] sm:$0xf]
    %v3227 = vunpack.c.l.bf16 %v3226
    %v3229 = vperm.slane %v3227, 0
    %v3230 = vperm.slane %v3227, 2
    %v3231 = vperm.slane %v3227, 4
    %v3232 = vperm.slane %v3227, 6
    %v3237 = vperm.slane %v3229, 0
    %v3238 = vperm.slane %v3230, 0
    %v3239 = vperm.slane %v3231, 0
    %v3240 = vperm.slane %v3232, 0
    %v3341 = vunpack.c.l.b16 %v3125
    %v3342 = vunpack.c.h.b16 %v3125
    %v3343 = vunpack.c.l.b16 %v3126
    %v3344 = vunpack.c.h.b16 %v3126
    %v3345 = vunpack.c.l.b16 %v3127
    %v3346 = vunpack.c.h.b16 %v3127
    %v3347 = vunpack.c.l.b16 %v3128
    %v3348 = vunpack.c.h.b16 %v3128
    %v3349 = vunpack.c.l.b16 %v3129
    %v3350 = vunpack.c.h.b16 %v3129
    %v3351 = vunpack.c.l.b16 %v3130
    %v3352 = vunpack.c.h.b16 %v3130
    %v3353 = vunpack.c.l.b16 %v3131
    %v3354 = vunpack.c.h.b16 %v3131
    %v3355 = vunpack.c.l.b16 %v3132
    %v3356 = vunpack.c.h.b16 %v3132
    %v3357 = vunpack.c.l.b16 %v3133
    %v3358 = vunpack.c.h.b16 %v3133
    %v3359 = vunpack.c.l.b16 %v3134
    %v3360 = vunpack.c.h.b16 %v3134
    %v3361 = vunpack.c.l.b16 %v3135
    %v3362 = vunpack.c.h.b16 %v3135
    %v3363 = vunpack.c.l.b16 %v3136
    %v3364 = vunpack.c.h.b16 %v3136
    %v3365 = vunpack.c.l.b16 %v3137
    %v3366 = vunpack.c.h.b16 %v3137
    %v3367 = vunpack.c.l.b16 %v3138
    %v3368 = vunpack.c.h.b16 %v3138
    %v3369 = vunpack.c.l.b16 %v3139
    %v3370 = vunpack.c.h.b16 %v3139
    %v3371 = vunpack.c.l.b16 %v3140
    %v3372 = vunpack.c.h.b16 %v3140
    %v3373 = vunpack.c.l.b16 %v3141
    %v3374 = vunpack.c.h.b16 %v3141
    %v3375 = vunpack.c.l.b16 %v3142
    %v3376 = vunpack.c.h.b16 %v3142
    %v3377 = vunpack.c.l.b16 %v3143
    %v3378 = vunpack.c.h.b16 %v3143
    %v3379 = vunpack.c.l.b16 %v3144
    %v3380 = vunpack.c.h.b16 %v3144
    %v3381 = vunpack.c.l.b16 %v3145
    %v3382 = vunpack.c.h.b16 %v3145
    %v3383 = vunpack.c.l.b16 %v3146
    %v3384 = vunpack.c.h.b16 %v3146
    %v3385 = vunpack.c.l.b16 %v3147
    %v3386 = vunpack.c.h.b16 %v3147
    %v3387 = vunpack.c.l.b16 %v3148
    %v3388 = vunpack.c.h.b16 %v3148
    %v3389 = vunpack.c.l.b16 %v3149
    %v3390 = vunpack.c.h.b16 %v3149
    %v3391 = vunpack.c.l.b16 %v3150
    %v3392 = vunpack.c.h.b16 %v3150
    %v3393 = vunpack.c.l.b16 %v3151
    %v3394 = vunpack.c.h.b16 %v3151
    %v3395 = vunpack.c.l.b16 %v3152
    %v3396 = vunpack.c.h.b16 %v3152
    %v3397 = vunpack.c.l.b16 %v3153
    %v3398 = vunpack.c.h.b16 %v3153
    %v3399 = vunpack.c.l.b16 %v3154
    %v3400 = vunpack.c.h.b16 %v3154
    %v3401 = vunpack.c.l.b16 %v3155
    %v3402 = vunpack.c.h.b16 %v3155
    %v3403 = vunpack.c.l.b16 %v3156
    %v3404 = vunpack.c.h.b16 %v3156
    %v3405 = vunpack.c.l.b16 %v3157
    %v3406 = vunpack.c.h.b16 %v3157
    %v3407 = vunpack.c.l.b16 %v3158
    %v3408 = vunpack.c.h.b16 %v3158
    %v3409 = vunpack.c.l.b16 %v3159
    %v3410 = vunpack.c.h.b16 %v3159
    %v3411 = vunpack.c.l.b16 %v3160
    %v3412 = vunpack.c.h.b16 %v3160
    %v3413 = vunpack.c.l.b16 %v3161
    %v3414 = vunpack.c.h.b16 %v3161
    %v3415 = vunpack.c.l.b16 %v3162
    %v3416 = vunpack.c.h.b16 %v3162
    %v3417 = vunpack.c.l.b16 %v3163
    %v3418 = vunpack.c.h.b16 %v3163
    %v3419 = vunpack.c.l.b16 %v3164
    %v3420 = vunpack.c.h.b16 %v3164
    %v3421 = vunpack.c.l.b16 %v3165
    %v3422 = vunpack.c.h.b16 %v3165
    %v3423 = vunpack.c.l.b16 %v3166
    %v3424 = vunpack.c.h.b16 %v3166
    %v3425 = vunpack.c.l.b16 %v3167
    %v3426 = vunpack.c.h.b16 %v3167
    %v3427 = vunpack.c.l.b16 %v3168
    %v3428 = vunpack.c.h.b16 %v3168
    %v3429 = vunpack.c.l.b16 %v3169
    %v3430 = vunpack.c.h.b16 %v3169
    %v3431 = vunpack.c.l.b16 %v3170
    %v3432 = vunpack.c.h.b16 %v3170
    %v3433 = vunpack.c.l.b16 %v3171
    %v3434 = vunpack.c.h.b16 %v3171
    %v3435 = vunpack.c.l.b16 %v3172
    %v3436 = vunpack.c.h.b16 %v3172
    %v3437 = vunpack.c.l.b16 %v3173
    %v3438 = vunpack.c.h.b16 %v3173
    %v3439 = vunpack.c.l.b16 %v3174
    %v3440 = vunpack.c.h.b16 %v3174
    %v3441 = vunpack.c.l.b16 %v3175
    %v3442 = vunpack.c.h.b16 %v3175
    %v3443 = vunpack.c.l.b16 %v3176
    %v3444 = vunpack.c.h.b16 %v3176
    %v3445 = vunpack.c.l.b16 %v3177
    %v3446 = vunpack.c.h.b16 %v3177
    %v3447 = vunpack.c.l.b16 %v3178
    %v3448 = vunpack.c.h.b16 %v3178
    %v3449 = vunpack.c.l.b16 %v3179
    %v3450 = vunpack.c.h.b16 %v3179
    %v3451 = vunpack.c.l.b16 %v3180
    %v3452 = vunpack.c.h.b16 %v3180
    %v3453 = vunpack.c.l.b16 %v3181
    %v3454 = vunpack.c.h.b16 %v3181
    %v3455 = vunpack.c.l.b16 %v3182
    %v3456 = vunpack.c.h.b16 %v3182
    %v3457 = vunpack.c.l.b16 %v3183
    %v3458 = vunpack.c.h.b16 %v3183
    %v3459 = vunpack.c.l.b16 %v3184
    %v3460 = vunpack.c.h.b16 %v3184
    %v3461 = vunpack.c.l.b16 %v3185
    %v3462 = vunpack.c.h.b16 %v3185
    %v3463 = vunpack.c.l.b16 %v3186
    %v3464 = vunpack.c.h.b16 %v3186
    %v3465 = vunpack.c.l.b16 %v3187
    %v3466 = vunpack.c.h.b16 %v3187
    %v3467 = vunpack.c.l.b16 %v3188
    %v3468 = vunpack.c.h.b16 %v3188
    %v3469 = vunpack.c.l.b16 %v3189
    %v3470 = vunpack.c.h.b16 %v3189
    %v3471 = vunpack.c.l.b16 %v3190
    %v3472 = vunpack.c.h.b16 %v3190
    %v3473 = vunpack.c.l.b16 %v3191
    %v3474 = vunpack.c.h.b16 %v3191
    %v3475 = vunpack.c.l.b16 %v3192
    %v3476 = vunpack.c.h.b16 %v3192
    %v3477 = vunpack.c.l.b16 %v3193
    %v3478 = vunpack.c.h.b16 %v3193
    %v3479 = vunpack.c.l.b16 %v3194
    %v3480 = vunpack.c.h.b16 %v3194
    %v3481 = vunpack.c.l.b16 %v3195
    %v3482 = vunpack.c.h.b16 %v3195
    %v3483 = vunpack.c.l.b16 %v3196
    %v3484 = vunpack.c.h.b16 %v3196
    %v3485 = vunpack.c.l.b16 %v3197
    %v3486 = vunpack.c.h.b16 %v3197
    %v3487 = vunpack.c.l.b16 %v3198
    %v3488 = vunpack.c.h.b16 %v3198
    %v3489 = vunpack.c.l.b16 %v3199
    %v3490 = vunpack.c.h.b16 %v3199
    %v3491 = vunpack.c.l.b16 %v3200
    %v3492 = vunpack.c.h.b16 %v3200
    %v3493 = vunpack.c.l.b16 %v3201
    %v3494 = vunpack.c.h.b16 %v3201
    %v3495 = vunpack.c.l.b16 %v3202
    %v3496 = vunpack.c.h.b16 %v3202
    %v3497 = vunpack.c.l.b16 %v3203
    %v3498 = vunpack.c.h.b16 %v3203
    %v3499 = vunpack.c.l.b16 %v3204
    %v3500 = vunpack.c.h.b16 %v3204
    %v3501 = vunpack.c.l.b16 %v3205
    %v3502 = vunpack.c.h.b16 %v3205
    %v3503 = vunpack.c.l.b16 %v3206
    %v3504 = vunpack.c.h.b16 %v3206
    %v3505 = vunpack.c.l.b16 %v3207
    %v3506 = vunpack.c.h.b16 %v3207
    %v3507 = vunpack.c.l.b16 %v3208
    %v3508 = vunpack.c.h.b16 %v3208
    %v3509 = vunpack.c.l.b16 %v3209
    %v3510 = vunpack.c.h.b16 %v3209
    %v3511 = vunpack.c.l.b16 %v3210
    %v3512 = vunpack.c.h.b16 %v3210
    %v3513 = vunpack.c.l.b16 %v3211
    %v3514 = vunpack.c.h.b16 %v3211
    %v3515 = vunpack.c.l.b16 %v3212
    %v3516 = vunpack.c.h.b16 %v3212
    %v3517 = vunpack.c.l.b16 %v3213
    %v3518 = vunpack.c.h.b16 %v3213
    %v3519 = vunpack.c.l.b16 %v3214
    %v3520 = vunpack.c.h.b16 %v3214
    %v3521 = vunpack.c.l.b16 %v3215
    %v3522 = vunpack.c.h.b16 %v3215
    %v3523 = vunpack.c.l.b16 %v3216
    %v3524 = vunpack.c.h.b16 %v3216
    %v3525 = vunpack.c.l.b16 %v3217
    %v3526 = vunpack.c.h.b16 %v3217
    %v3527 = vunpack.c.l.b16 %v3218
    %v3528 = vunpack.c.h.b16 %v3218
    %v3529 = vunpack.c.l.b16 %v3219
    %v3530 = vunpack.c.h.b16 %v3219
    %v3531 = vunpack.c.l.b16 %v3220
    %v3532 = vunpack.c.h.b16 %v3220
    %v3533 = vunpack.c.l.b16 %v3221
    %v3534 = vunpack.c.h.b16 %v3221
    %v3535 = vunpack.c.l.b16 %v3222
    %v3536 = vunpack.c.h.b16 %v3222
    %v3537 = vunpack.c.l.b16 %v3223
    %v3538 = vunpack.c.h.b16 %v3223
    %v3539 = vunpack.c.l.b16 %v3224
    %v3540 = vunpack.c.h.b16 %v3224
    %v3541 = vpack.c.b16 %v3345, %v3341
    %v3542 = vpack.c.b16 %v3346, %v3342
    %v3543 = vpack.c.b16 %v3347, %v3343
    %v3544 = vpack.c.b16 %v3348, %v3344
    %v3545 = vpack.c.b16 %v3353, %v3349
    %v3546 = vpack.c.b16 %v3354, %v3350
    %v3547 = vpack.c.b16 %v3355, %v3351
    %v3548 = vpack.c.b16 %v3356, %v3352
    %v3549 = vpack.c.b16 %v3361, %v3357
    %v3550 = vpack.c.b16 %v3362, %v3358
    %v3551 = vpack.c.b16 %v3363, %v3359
    %v3552 = vpack.c.b16 %v3364, %v3360
    %v3553 = vpack.c.b16 %v3369, %v3365
    %v3554 = vpack.c.b16 %v3370, %v3366
    %v3555 = vpack.c.b16 %v3371, %v3367
    %v3556 = vpack.c.b16 %v3372, %v3368
    %v3557 = vpack.c.b16 %v3377, %v3373
    %v3558 = vpack.c.b16 %v3378, %v3374
    %v3559 = vpack.c.b16 %v3379, %v3375
    %v3560 = vpack.c.b16 %v3380, %v3376
    %v3561 = vpack.c.b16 %v3385, %v3381
    %v3562 = vpack.c.b16 %v3386, %v3382
    %v3563 = vpack.c.b16 %v3387, %v3383
    %v3564 = vpack.c.b16 %v3388, %v3384
    %v3565 = vpack.c.b16 %v3393, %v3389
    %v3566 = vpack.c.b16 %v3394, %v3390
    %v3567 = vpack.c.b16 %v3395, %v3391
    %v3568 = vpack.c.b16 %v3396, %v3392
    %v3569 = vpack.c.b16 %v3401, %v3397
    %v3570 = vpack.c.b16 %v3402, %v3398
    %v3571 = vpack.c.b16 %v3403, %v3399
    %v3572 = vpack.c.b16 %v3404, %v3400
    %v3573 = vpack.c.b16 %v3409, %v3405
    %v3574 = vpack.c.b16 %v3410, %v3406
    %v3575 = vpack.c.b16 %v3411, %v3407
    %v3576 = vpack.c.b16 %v3412, %v3408
    %v3577 = vpack.c.b16 %v3417, %v3413
    %v3578 = vpack.c.b16 %v3418, %v3414
    %v3579 = vpack.c.b16 %v3419, %v3415
    %v3580 = vpack.c.b16 %v3420, %v3416
    %v3581 = vpack.c.b16 %v3425, %v3421
    %v3582 = vpack.c.b16 %v3426, %v3422
    %v3583 = vpack.c.b16 %v3427, %v3423
    %v3584 = vpack.c.b16 %v3428, %v3424
    %v3585 = vpack.c.b16 %v3433, %v3429
    %v3586 = vpack.c.b16 %v3434, %v3430
    %v3587 = vpack.c.b16 %v3435, %v3431
    %v3588 = vpack.c.b16 %v3436, %v3432
    %v3589 = vpack.c.b16 %v3441, %v3437
    %v3590 = vpack.c.b16 %v3442, %v3438
    %v3591 = vpack.c.b16 %v3443, %v3439
    %v3592 = vpack.c.b16 %v3444, %v3440
    %v3593 = vpack.c.b16 %v3449, %v3445
    %v3594 = vpack.c.b16 %v3450, %v3446
    %v3595 = vpack.c.b16 %v3451, %v3447
    %v3596 = vpack.c.b16 %v3452, %v3448
    %v3597 = vpack.c.b16 %v3457, %v3453
    %v3598 = vpack.c.b16 %v3458, %v3454
    %v3599 = vpack.c.b16 %v3459, %v3455
    %v3600 = vpack.c.b16 %v3460, %v3456
    %v3601 = vpack.c.b16 %v3465, %v3461
    %v3602 = vpack.c.b16 %v3466, %v3462
    %v3603 = vpack.c.b16 %v3467, %v3463
    %v3604 = vpack.c.b16 %v3468, %v3464
    %v3605 = vpack.c.b16 %v3473, %v3469
    %v3606 = vpack.c.b16 %v3474, %v3470
    %v3607 = vpack.c.b16 %v3475, %v3471
    %v3608 = vpack.c.b16 %v3476, %v3472
    %v3609 = vpack.c.b16 %v3481, %v3477
    %v3610 = vpack.c.b16 %v3482, %v3478
    %v3611 = vpack.c.b16 %v3483, %v3479
    %v3612 = vpack.c.b16 %v3484, %v3480
    %v3613 = vpack.c.b16 %v3489, %v3485
    %v3614 = vpack.c.b16 %v3490, %v3486
    %v3615 = vpack.c.b16 %v3491, %v3487
    %v3616 = vpack.c.b16 %v3492, %v3488
    %v3617 = vpack.c.b16 %v3497, %v3493
    %v3618 = vpack.c.b16 %v3498, %v3494
    %v3619 = vpack.c.b16 %v3499, %v3495
    %v3620 = vpack.c.b16 %v3500, %v3496
    %v3621 = vpack.c.b16 %v3505, %v3501
    %v3622 = vpack.c.b16 %v3506, %v3502
    %v3623 = vpack.c.b16 %v3507, %v3503
    %v3624 = vpack.c.b16 %v3508, %v3504
    %v3625 = vpack.c.b16 %v3513, %v3509
    %v3626 = vpack.c.b16 %v3514, %v3510
    %v3627 = vpack.c.b16 %v3515, %v3511
    %v3628 = vpack.c.b16 %v3516, %v3512
    %v3629 = vpack.c.b16 %v3521, %v3517
    %v3630 = vpack.c.b16 %v3522, %v3518
    %v3631 = vpack.c.b16 %v3523, %v3519
    %v3632 = vpack.c.b16 %v3524, %v3520
    %v3633 = vpack.c.b16 %v3529, %v3525
    %v3634 = vpack.c.b16 %v3530, %v3526
    %v3635 = vpack.c.b16 %v3531, %v3527
    %v3636 = vpack.c.b16 %v3532, %v3528
    %v3637 = vpack.c.b16 %v3537, %v3533
    %v3638 = vpack.c.b16 %v3538, %v3534
    %v3639 = vpack.c.b16 %v3539, %v3535
    %v3640 = vpack.c.b16 %v3540, %v3536
    %v3742 = vsel %vm826, %v3123, 0
    %3744 = vmatpush.bf16.msra.mxu0 %v3569
    %3745 = vmatpush.bf16.msra.mxu0 %v3565
    %3746 = vmatpush.bf16.msra.mxu0 %v3561
    %3747 = vmatpush.bf16.msra.mxu0 %v3557
    %3748 = vmatpush.bf16.msra.mxu0 %v3553
    %3749 = vmatpush.bf16.msra.mxu0 %v3549
    %3750 = vmatpush.bf16.msra.mxu0 %v3545
    %3751 = vmatpush.bf16.msra.mxu0 %v3541
    %3752 = vmatmul.bf16.gmra.mxu0 %v3120
    %v3753 = vpop.f32.mrf.mxu0
    %v3754 = vadd.f32 %v3237, %v3753
    %v3755 = vpop.f32.mrf.mxu0
    %3756 = vdwg.mxu0
    %3757 = vmatpush.bf16.msra.mxu0 %v3601
    %3758 = vmatpush.bf16.msra.mxu0 %v3597
    %3759 = vmatpush.bf16.msra.mxu0 %v3593
    %3760 = vmatpush.bf16.msra.mxu0 %v3589
    %3761 = vmatpush.bf16.msra.mxu0 %v3585
    %3762 = vmatpush.bf16.msra.mxu0 %v3581
    %3763 = vmatpush.bf16.msra.mxu0 %v3577
    %3764 = vmatpush.bf16.msra.mxu0 %v3573
    %3765 = vmatmul.bf16.gmra.mxu0 %v3121
    %v3766 = vpop.f32.mrf.mxu0
    %v3767 = vadd.f32 %v3754, %v3766
    %v3768 = vpop.f32.mrf.mxu0
    %3769 = vdwg.mxu0
    %3770 = vmatpush.bf16.msra.mxu0 %v3633
    %3771 = vmatpush.bf16.msra.mxu0 %v3629
    %3772 = vmatpush.bf16.msra.mxu0 %v3625
    %3773 = vmatpush.bf16.msra.mxu0 %v3621
    %3774 = vmatpush.bf16.msra.mxu0 %v3617
    %3775 = vmatpush.bf16.msra.mxu0 %v3613
    %3776 = vmatpush.bf16.msra.mxu0 %v3609
    %3777 = vmatpush.bf16.msra.mxu0 %v3605
    %3778 = vmatmul.bf16.gmra.mxu0 %v3122
    %v3779 = vpop.f32.mrf.mxu0
    %v3780 = vadd.f32 %v3767, %v3779
    %v3781 = vpop.f32.mrf.mxu0
    %3782 = vdwg.mxu0
    %3783 = vmatpush.bf16.msra.mxu0 0
    %3784 = vmatpush.bf16.msra.mxu0 0
    %3785 = vmatpush.bf16.msra.mxu0 0
    %3786 = vmatpush.bf16.msra.mxu0 0
    %3787 = vmatpush.bf16.msra.mxu0 0
    %3788 = vmatpush.bf16.msra.mxu0 0
    %3789 = vmatpush.bf16.msra.mxu0 0
    %3790 = vmatpush.bf16.msra.mxu0 %v3637
    %3791 = vmatmul.bf16.gmra.mxu0 %v3742
    %v3792 = vpop.f32.mrf.mxu0
    %v3793 = vadd.f32 %v3780, %v3792
    %v3794 = vpop.f32.mrf.mxu0
    %3795 = vdwg.mxu0
    %3796 = vmatpush.bf16.msra.mxu0 %v3570
    %3797 = vmatpush.bf16.msra.mxu0 %v3566
    %3798 = vmatpush.bf16.msra.mxu0 %v3562
    %3799 = vmatpush.bf16.msra.mxu0 %v3558
    %3800 = vmatpush.bf16.msra.mxu0 %v3554
    %3801 = vmatpush.bf16.msra.mxu0 %v3550
    %3802 = vmatpush.bf16.msra.mxu0 %v3546
    %3803 = vmatpush.bf16.msra.mxu0 %v3542
    %3804 = vmatmul.bf16.gmra.mxu0 %v3120
    %v3805 = vpop.f32.mrf.mxu0
    %v3806 = vadd.f32 %v3238, %v3805
    %v3807 = vpop.f32.mrf.mxu0
    %3808 = vdwg.mxu0
    %3809 = vmatpush.bf16.msra.mxu0 %v3602
    %3810 = vmatpush.bf16.msra.mxu0 %v3598
    %3811 = vmatpush.bf16.msra.mxu0 %v3594
    %3812 = vmatpush.bf16.msra.mxu0 %v3590
    %3813 = vmatpush.bf16.msra.mxu0 %v3586
    %3814 = vmatpush.bf16.msra.mxu0 %v3582
    %3815 = vmatpush.bf16.msra.mxu0 %v3578
    %3816 = vmatpush.bf16.msra.mxu0 %v3574
    %3817 = vmatmul.bf16.gmra.mxu0 %v3121
    %v3818 = vpop.f32.mrf.mxu0
    %v3819 = vadd.f32 %v3806, %v3818
    %v3820 = vpop.f32.mrf.mxu0
    %3821 = vdwg.mxu0
    %3822 = vmatpush.bf16.msra.mxu0 %v3634
    %3823 = vmatpush.bf16.msra.mxu0 %v3630
    %3824 = vmatpush.bf16.msra.mxu0 %v3626
    %3825 = vmatpush.bf16.msra.mxu0 %v3622
    %3826 = vmatpush.bf16.msra.mxu0 %v3618
    %3827 = vmatpush.bf16.msra.mxu0 %v3614
    %3828 = vmatpush.bf16.msra.mxu0 %v3610
    %3829 = vmatpush.bf16.msra.mxu0 %v3606
    %3830 = vmatmul.bf16.gmra.mxu0 %v3122
    %v3831 = vpop.f32.mrf.mxu0
    %v3832 = vadd.f32 %v3819, %v3831
    %v3833 = vpop.f32.mrf.mxu0
    %3834 = vdwg.mxu0
    %3835 = vmatpush.bf16.msra.mxu0 0
    %3836 = vmatpush.bf16.msra.mxu0 0
    %3837 = vmatpush.bf16.msra.mxu0 0
    %3838 = vmatpush.bf16.msra.mxu0 0
    %3839 = vmatpush.bf16.msra.mxu0 0
    %3840 = vmatpush.bf16.msra.mxu0 0
    %3841 = vmatpush.bf16.msra.mxu0 0
    %3842 = vmatpush.bf16.msra.mxu0 %v3638
    %3843 = vmatmul.bf16.gmra.mxu0 %v3742
    %v3844 = vpop.f32.mrf.mxu0
    %v3845 = vadd.f32 %v3832, %v3844
    %v3846 = vpop.f32.mrf.mxu0
    %3847 = vdwg.mxu0
    %3848 = vmatpush.bf16.msra.mxu0 %v3571
    %3849 = vmatpush.bf16.msra.mxu0 %v3567
    %3850 = vmatpush.bf16.msra.mxu0 %v3563
    %3851 = vmatpush.bf16.msra.mxu0 %v3559
    %3852 = vmatpush.bf16.msra.mxu0 %v3555
    %3853 = vmatpush.bf16.msra.mxu0 %v3551
    %3854 = vmatpush.bf16.msra.mxu0 %v3547
    %3855 = vmatpush.bf16.msra.mxu0 %v3543
    %3856 = vmatmul.bf16.gmra.mxu0 %v3120
    %v3857 = vpop.f32.mrf.mxu0
    %v3858 = vadd.f32 %v3239, %v3857
    %v3859 = vpop.f32.mrf.mxu0
    %3860 = vdwg.mxu0
    %3861 = vmatpush.bf16.msra.mxu0 %v3603
    %3862 = vmatpush.bf16.msra.mxu0 %v3599
    %3863 = vmatpush.bf16.msra.mxu0 %v3595
    %3864 = vmatpush.bf16.msra.mxu0 %v3591
    %3865 = vmatpush.bf16.msra.mxu0 %v3587
    %3866 = vmatpush.bf16.msra.mxu0 %v3583
    %3867 = vmatpush.bf16.msra.mxu0 %v3579
    %3868 = vmatpush.bf16.msra.mxu0 %v3575
    %3869 = vmatmul.bf16.gmra.mxu0 %v3121
    %v3870 = vpop.f32.mrf.mxu0
    %v3871 = vadd.f32 %v3858, %v3870
    %v3872 = vpop.f32.mrf.mxu0
    %3873 = vdwg.mxu0
    %3874 = vmatpush.bf16.msra.mxu0 %v3635
    %3875 = vmatpush.bf16.msra.mxu0 %v3631
    %3876 = vmatpush.bf16.msra.mxu0 %v3627
    %3877 = vmatpush.bf16.msra.mxu0 %v3623
    %3878 = vmatpush.bf16.msra.mxu0 %v3619
    %3879 = vmatpush.bf16.msra.mxu0 %v3615
    %3880 = vmatpush.bf16.msra.mxu0 %v3611
    %3881 = vmatpush.bf16.msra.mxu0 %v3607
    %3882 = vmatmul.bf16.gmra.mxu0 %v3122
    %v3883 = vpop.f32.mrf.mxu0
    %v3884 = vadd.f32 %v3871, %v3883
    %v3885 = vpop.f32.mrf.mxu0
    %3886 = vdwg.mxu0
    %3887 = vmatpush.bf16.msra.mxu0 0
    %3888 = vmatpush.bf16.msra.mxu0 0
    %3889 = vmatpush.bf16.msra.mxu0 0
    %3890 = vmatpush.bf16.msra.mxu0 0
    %3891 = vmatpush.bf16.msra.mxu0 0
    %3892 = vmatpush.bf16.msra.mxu0 0
    %3893 = vmatpush.bf16.msra.mxu0 0
    %3894 = vmatpush.bf16.msra.mxu0 %v3639
    %3895 = vmatmul.bf16.gmra.mxu0 %v3742
    %v3896 = vpop.f32.mrf.mxu0
    %v3897 = vadd.f32 %v3884, %v3896
    %v3898 = vpop.f32.mrf.mxu0
    %3899 = vdwg.mxu0
    %3900 = vmatpush.bf16.msra.mxu0 %v3572
    %3901 = vmatpush.bf16.msra.mxu0 %v3568
    %3902 = vmatpush.bf16.msra.mxu0 %v3564
    %3903 = vmatpush.bf16.msra.mxu0 %v3560
    %3904 = vmatpush.bf16.msra.mxu0 %v3556
    %3905 = vmatpush.bf16.msra.mxu0 %v3552
    %3906 = vmatpush.bf16.msra.mxu0 %v3548
    %3907 = vmatpush.bf16.msra.mxu0 %v3544
    %3908 = vmatmul.bf16.gmra.mxu0 %v3120
    %v3909 = vpop.f32.mrf.mxu0
    %v3910 = vadd.f32 %v3240, %v3909
    %v3911 = vpop.f32.mrf.mxu0
    %3912 = vdwg.mxu0
    %3913 = vmatpush.bf16.msra.mxu0 %v3604
    %3914 = vmatpush.bf16.msra.mxu0 %v3600
    %3915 = vmatpush.bf16.msra.mxu0 %v3596
    %3916 = vmatpush.bf16.msra.mxu0 %v3592
    %3917 = vmatpush.bf16.msra.mxu0 %v3588
    %3918 = vmatpush.bf16.msra.mxu0 %v3584
    %3919 = vmatpush.bf16.msra.mxu0 %v3580
    %3920 = vmatpush.bf16.msra.mxu0 %v3576
    %3921 = vmatmul.bf16.gmra.mxu0 %v3121
    %v3922 = vpop.f32.mrf.mxu0
    %v3923 = vadd.f32 %v3910, %v3922
    %v3924 = vpop.f32.mrf.mxu0
    %3925 = vdwg.mxu0
    %3926 = vmatpush.bf16.msra.mxu0 %v3636
    %3927 = vmatpush.bf16.msra.mxu0 %v3632
    %3928 = vmatpush.bf16.msra.mxu0 %v3628
    %3929 = vmatpush.bf16.msra.mxu0 %v3624
    %3930 = vmatpush.bf16.msra.mxu0 %v3620
    %3931 = vmatpush.bf16.msra.mxu0 %v3616
    %3932 = vmatpush.bf16.msra.mxu0 %v3612
    %3933 = vmatpush.bf16.msra.mxu0 %v3608
    %3934 = vmatmul.bf16.gmra.mxu0 %v3122
    %v3935 = vpop.f32.mrf.mxu0
    %v3936 = vadd.f32 %v3923, %v3935
    %v3937 = vpop.f32.mrf.mxu0
    %3938 = vdwg.mxu0
    %3939 = vmatpush.bf16.msra.mxu0 0
    %3940 = vmatpush.bf16.msra.mxu0 0
    %3941 = vmatpush.bf16.msra.mxu0 0
    %3942 = vmatpush.bf16.msra.mxu0 0
    %3943 = vmatpush.bf16.msra.mxu0 0
    %3944 = vmatpush.bf16.msra.mxu0 0
    %3945 = vmatpush.bf16.msra.mxu0 0
    %3946 = vmatpush.bf16.msra.mxu0 %v3640
    %3947 = vmatmul.bf16.gmra.mxu0 %v3742
    %v3948 = vpop.f32.mrf.mxu0
    %v3949 = vadd.f32 %v3936, %v3948
    %v3950 = vpop.f32.mrf.mxu0
    %3951 = vdwg.mxu0
    %v3952 = vmax.f32 %v3793, 0.0
    %v3953 = vmax.f32 %v3845, 0.0
    %v3954 = vmax.f32 %v3897, 0.0
    %v3955 = vmax.f32 %v3949, 0.0
    %v3956 = vpack.c.bf16 %v3952, %v3952
    %v3957 = vpack.c.bf16 %v3953, %v3953
    %v3958 = vpack.c.bf16 %v3954, %v3954
    %v3959 = vpack.c.bf16 %v3955, %v3955
    %s3960 = scalar_lea.vmem %s7, 200
    %v3961 = vld [vmem:[%s3960] sm:$0xf]
    %v3962 = vld [vmem:[%s3960 + $0x4] sm:$0xf]
    %v3963 = vld [vmem:[%s3960 + $0x8] sm:$0xf]
    %v3964 = vld [vmem:[%s3960 + $0xc] sm:$0xf]
    %v3965 = vld [vmem:[%s3960 + $0x10] sm:$0xf]
    %v3966 = vld [vmem:[%s3960 + $0x14] sm:$0xf]
    %v3967 = vld [vmem:[%s3960 + $0x18] sm:$0xf]
    %v3968 = vld [vmem:[%s3960 + $0x1c] sm:$0xf]
    %v3969 = vld [vmem:[%s3960 + $0x20] sm:$0xf]
    %v3970 = vld [vmem:[%s3960 + $0x24] sm:$0xf]
    %v3971 = vld [vmem:[%s3960 + $0x28] sm:$0xf]
    %v3972 = vld [vmem:[%s3960 + $0x2c] sm:$0xf]
    %v3973 = vld [vmem:[%s3960 + $0x30] sm:$0xf]
    %v3974 = vld [vmem:[%s3960 + $0x34] sm:$0xf]
    %v3975 = vld [vmem:[%s3960 + $0x38] sm:$0xf]
    %v3976 = vld [vmem:[%s3960 + $0x3c] sm:$0xf]
    %v3977 = vld [vmem:[%s3960 + $0x40] sm:$0xf]
    %v3978 = vld [vmem:[%s3960 + $0x44] sm:$0xf]
    %v3979 = vld [vmem:[%s3960 + $0x48] sm:$0xf]
    %v3980 = vld [vmem:[%s3960 + $0x4c] sm:$0xf]
    %v3981 = vld [vmem:[%s3960 + $0x50] sm:$0xf]
    %v3982 = vld [vmem:[%s3960 + $0x54] sm:$0xf]
    %v3983 = vld [vmem:[%s3960 + $0x58] sm:$0xf]
    %v3984 = vld [vmem:[%s3960 + $0x5c] sm:$0xf]
    %v3985 = vld [vmem:[%s3960 + $0x60] sm:$0xf]
    %v3986 = vld [vmem:[%s3960 + $0x64] sm:$0xf]
    %v3987 = vld [vmem:[%s3960 + $0x68] sm:$0xf]
    %v3988 = vld [vmem:[%s3960 + $0x6c] sm:$0xf]
    %v3989 = vld [vmem:[%s3960 + $0x70] sm:$0xf]
    %v3990 = vld [vmem:[%s3960 + $0x74] sm:$0xf]
    %v3991 = vld [vmem:[%s3960 + $0x78] sm:$0xf]
    %v3992 = vld [vmem:[%s3960 + $0x7c] sm:$0xf]
    %v3993 = vld [vmem:[%s3960 + $0x80] sm:$0xf]
    %v3994 = vld [vmem:[%s3960 + $0x84] sm:$0xf]
    %v3995 = vld [vmem:[%s3960 + $0x88] sm:$0xf]
    %v3996 = vld [vmem:[%s3960 + $0x8c] sm:$0xf]
    %v3997 = vld [vmem:[%s3960 + $0x90] sm:$0xf]
    %v3998 = vld [vmem:[%s3960 + $0x94] sm:$0xf]
    %v3999 = vld [vmem:[%s3960 + $0x98] sm:$0xf]
    %v4000 = vld [vmem:[%s3960 + $0x9c] sm:$0xf]
    %v4001 = vld [vmem:[%s3960 + $0xa0] sm:$0xf]
    %v4002 = vld [vmem:[%s3960 + $0xa4] sm:$0xf]
    %v4003 = vld [vmem:[%s3960 + $0xa8] sm:$0xf]
    %v4004 = vld [vmem:[%s3960 + $0xac] sm:$0xf]
    %v4005 = vld [vmem:[%s3960 + $0xb0] sm:$0xf]
    %v4006 = vld [vmem:[%s3960 + $0xb4] sm:$0xf]
    %v4007 = vld [vmem:[%s3960 + $0xb8] sm:$0xf]
    %v4008 = vld [vmem:[%s3960 + $0xbc] sm:$0xf]
    %v4009 = vld [vmem:[%s3960 + $0xc0] sm:$0xf]
    %v4010 = vld [vmem:[%s3960 + $0xc4] sm:$0xf]
    %s4011 = scalar_lea.vmem %s8, 1
    %v4012 = vld [vmem:[%s4011] sm:$0x1]
    %v4013 = vunpack.c.l.bf16 %v4012
    %v4014 = vperm.slane %v4013, 0
    %v4065 = vunpack.c.l.b16 %v3961
    %v4066 = vunpack.c.l.b16 %v3962
    %v4067 = vunpack.c.l.b16 %v3963
    %v4068 = vunpack.c.l.b16 %v3964
    %v4069 = vunpack.c.l.b16 %v3965
    %v4070 = vunpack.c.l.b16 %v3966
    %v4071 = vunpack.c.l.b16 %v3967
    %v4072 = vunpack.c.l.b16 %v3968
    %v4073 = vunpack.c.l.b16 %v3969
    %v4074 = vunpack.c.l.b16 %v3970
    %v4075 = vunpack.c.l.b16 %v3971
    %v4076 = vunpack.c.l.b16 %v3972
    %v4077 = vunpack.c.l.b16 %v3973
    %v4078 = vunpack.c.l.b16 %v3974
    %v4079 = vunpack.c.l.b16 %v3975
    %v4080 = vunpack.c.l.b16 %v3976
    %v4081 = vunpack.c.l.b16 %v3977
    %v4082 = vunpack.c.l.b16 %v3978
    %v4083 = vunpack.c.l.b16 %v3979
    %v4084 = vunpack.c.l.b16 %v3980
    %v4085 = vunpack.c.l.b16 %v3981
    %v4086 = vunpack.c.l.b16 %v3982
    %v4087 = vunpack.c.l.b16 %v3983
    %v4088 = vunpack.c.l.b16 %v3984
    %v4089 = vunpack.c.l.b16 %v3985
    %v4090 = vunpack.c.l.b16 %v3986
    %v4091 = vunpack.c.l.b16 %v3987
    %v4092 = vunpack.c.l.b16 %v3988
    %v4093 = vunpack.c.l.b16 %v3989
    %v4094 = vunpack.c.l.b16 %v3990
    %v4095 = vunpack.c.l.b16 %v3991
    %v4096 = vunpack.c.l.b16 %v3992
    %v4097 = vunpack.c.l.b16 %v3993
    %v4098 = vunpack.c.l.b16 %v3994
    %v4099 = vunpack.c.l.b16 %v3995
    %v4100 = vunpack.c.l.b16 %v3996
    %v4101 = vunpack.c.l.b16 %v3997
    %v4102 = vunpack.c.l.b16 %v3998
    %v4103 = vunpack.c.l.b16 %v3999
    %v4104 = vunpack.c.l.b16 %v4000
    %v4105 = vunpack.c.l.b16 %v4001
    %v4106 = vunpack.c.l.b16 %v4002
    %v4107 = vunpack.c.l.b16 %v4003
    %v4108 = vunpack.c.l.b16 %v4004
    %v4109 = vunpack.c.l.b16 %v4005
    %v4110 = vunpack.c.l.b16 %v4006
    %v4111 = vunpack.c.l.b16 %v4007
    %v4112 = vunpack.c.l.b16 %v4008
    %v4113 = vunpack.c.l.b16 %v4009
    %v4114 = vunpack.c.l.b16 %v4010
    %v4115 = vpack.c.b16 %v4066, %v4065
    %v4116 = vpack.c.b16 %v4068, %v4067
    %v4117 = vpack.c.b16 %v4070, %v4069
    %v4118 = vpack.c.b16 %v4072, %v4071
    %v4119 = vpack.c.b16 %v4074, %v4073
    %v4120 = vpack.c.b16 %v4076, %v4075
    %v4121 = vpack.c.b16 %v4078, %v4077
    %v4122 = vpack.c.b16 %v4080, %v4079
    %v4123 = vpack.c.b16 %v4082, %v4081
    %v4124 = vpack.c.b16 %v4084, %v4083
    %v4125 = vpack.c.b16 %v4086, %v4085
    %v4126 = vpack.c.b16 %v4088, %v4087
    %v4127 = vpack.c.b16 %v4090, %v4089
    %v4128 = vpack.c.b16 %v4092, %v4091
    %v4129 = vpack.c.b16 %v4094, %v4093
    %v4130 = vpack.c.b16 %v4096, %v4095
    %v4131 = vpack.c.b16 %v4098, %v4097
    %v4132 = vpack.c.b16 %v4100, %v4099
    %v4133 = vpack.c.b16 %v4102, %v4101
    %v4134 = vpack.c.b16 %v4104, %v4103
    %v4135 = vpack.c.b16 %v4106, %v4105
    %v4136 = vpack.c.b16 %v4108, %v4107
    %v4137 = vpack.c.b16 %v4110, %v4109
    %v4138 = vpack.c.b16 %v4112, %v4111
    %v4139 = vpack.c.b16 %v4114, %v4113
    %v4166 = vsel %vm826, %v3959, 0
    %4168 = vmatpush.bf16.msra.mxu0 %v4122
    %4169 = vmatpush.bf16.msra.mxu0 %v4121
    %4170 = vmatpush.bf16.msra.mxu0 %v4120
    %4171 = vmatpush.bf16.msra.mxu0 %v4119
    %4172 = vmatpush.bf16.msra.mxu0 %v4118
    %4173 = vmatpush.bf16.msra.mxu0 %v4117
    %4174 = vmatpush.bf16.msra.mxu0 %v4116
    %4175 = vmatpush.bf16.msra.mxu0 %v4115
    %4176 = vmatmul.bf16.gmra.mxu0 %v3956
    %v4177 = vpop.f32.mrf.mxu0
    %v4178 = vadd.f32 %v4014, %v4177
    %v4179 = vpop.f32.mrf.mxu0
    %4180 = vdwg.mxu0
    %4181 = vmatpush.bf16.msra.mxu0 %v4130
    %4182 = vmatpush.bf16.msra.mxu0 %v4129
    %4183 = vmatpush.bf16.msra.mxu0 %v4128
    %4184 = vmatpush.bf16.msra.mxu0 %v4127
    %4185 = vmatpush.bf16.msra.mxu0 %v4126
    %4186 = vmatpush.bf16.msra.mxu0 %v4125
    %4187 = vmatpush.bf16.msra.mxu0 %v4124
    %4188 = vmatpush.bf16.msra.mxu0 %v4123
    %4189 = vmatmul.bf16.gmra.mxu0 %v3957
    %v4190 = vpop.f32.mrf.mxu0
    %v4191 = vadd.f32 %v4178, %v4190
    %v4192 = vpop.f32.mrf.mxu0
    %4193 = vdwg.mxu0
    %4194 = vmatpush.bf16.msra.mxu0 %v4138
    %4195 = vmatpush.bf16.msra.mxu0 %v4137
    %4196 = vmatpush.bf16.msra.mxu0 %v4136
    %4197 = vmatpush.bf16.msra.mxu0 %v4135
    %4198 = vmatpush.bf16.msra.mxu0 %v4134
    %4199 = vmatpush.bf16.msra.mxu0 %v4133
    %4200 = vmatpush.bf16.msra.mxu0 %v4132
    %4201 = vmatpush.bf16.msra.mxu0 %v4131
    %4202 = vmatmul.bf16.gmra.mxu0 %v3958
    %v4203 = vpop.f32.mrf.mxu0
    %v4204 = vadd.f32 %v4191, %v4203
    %v4205 = vpop.f32.mrf.mxu0
    %4206 = vdwg.mxu0
    %4207 = vmatpush.bf16.msra.mxu0 0
    %4208 = vmatpush.bf16.msra.mxu0 0
    %4209 = vmatpush.bf16.msra.mxu0 0
    %4210 = vmatpush.bf16.msra.mxu0 0
    %4211 = vmatpush.bf16.msra.mxu0 0
    %4212 = vmatpush.bf16.msra.mxu0 0
    %4213 = vmatpush.bf16.msra.mxu0 0
    %4214 = vmatpush.bf16.msra.mxu0 %v4139
    %4215 = vmatmul.bf16.gmra.mxu0 %v4166
    %v4216 = vpop.f32.mrf.mxu0
    %v4217 = vadd.f32 %v4204, %v4216
    %v4218 = vpop.f32.mrf.mxu0
    %4219 = vdwg.mxu0
    %v4220 = vsub.f32 %v2139, %v4217
    %v4221 = vmax.f32 %v4220, 0.0
    %vm4222 = vcmp.ne.f32.partialorder %v4220, %v4220
    %v4223 = vadd.f32 %v4220, 0.0
    %v4224 = vand.u32 2147483647, %v4220
    %v4225 = vsub.f32 0.0, %v4224
    %v4226 = vmul.f32 %v4225, 1.442695
    %v4227 = vpow.pop %v4226
    %v4228 = vadd.f32 %v4227, 1.0
    %v4229 = vlog2.pop %v4228
    %v4230 = vmul.f32 %v4229, 0.6931472
    %v4231 = vmul.f32 -0.5, %v4227
    %v4232 = vadd.f32 %v4231, 1.0
    %v4233 = vmul.f32 %v4232, %v4227
    %v4234 = vand.u32 2147483647, %v4227
    %vm4235 = vcmp.lt.f32.partialorder %v4234, 0.0004427343
    %v4236 = vsel %vm4235, %v4233, %v4230
    %v4237 = vadd.f32 %v4221, %v4236
    %v4238 = vsel %vm4222, %v4223, %v4237
    %v4239 = vsub.f32 %v2139, %v4238
    %v4240 = vsub.f32 %v4239, %v2162
    %v4241 = vmax.f32 %v4240, 0.0
    %vm4242 = vcmp.ne.f32.partialorder %v4240, %v4240
    %v4243 = vadd.f32 %v4240, 0.0
    %v4244 = vand.u32 2147483647, %v4240
    %v4245 = vsub.f32 0.0, %v4244
    %v4246 = vmul.f32 %v4245, 1.442695
    %v4247 = vpow.pop %v4246
    %v4248 = vadd.f32 %v4247, 1.0
    %v4249 = vlog2.pop %v4248
    %v4250 = vmul.f32 %v4249, 0.6931472
    %v4251 = vmul.f32 -0.5, %v4247
    %v4252 = vadd.f32 %v4251, 1.0
    %v4253 = vmul.f32 %v4252, %v4247
    %v4254 = vand.u32 2147483647, %v4247
    %vm4255 = vcmp.lt.f32.partialorder %v4254, 0.0004427343
    %v4256 = vsel %vm4255, %v4253, %v4250
    %v4257 = vadd.f32 %v4241, %v4256
    %v4258 = vsel %vm4242, %v4243, %v4257
    %v4259 = vadd.f32 %v2162, %v4258
    %v4260 = vsel %vm106, %v4259, %v4217
    %s4261 = scalar_lea.vmem %s11, 8
    %4262 = vst.msk [vmem:[%s4261] sm:$0xff] %vm2185, %v4260
    %s4263 = scalar_lea.vmem [#allocation4], 32
    %v4264 = vld [vmem:[%s4263] sm:$0x77]
    %v4265 = vld [vmem:[%s4263 + $0x8] sm:$0x77]
    %s4266 = scalar_lea.vmem %s2, 8
    %v4267 = vld [vmem:[%s4266] sm:$0xf]
    %v4268 = vunpack.c.l.bf16 %v4267
    %v4270 = vperm.slane %v4268, 0
    %v4271 = vperm.slane %v4268, 2
    %v4272 = vperm.slane %v4268, 4
    %v4273 = vperm.slane %v4268, 6
    %v4278 = vperm.slane %v4270, 0
    %v4279 = vperm.slane %v4271, 0
    %v4280 = vperm.slane %v4272, 0
    %v4281 = vperm.slane %v4273, 0
    %v4284 = vunpack.c.l.b16 %v4264
    %v4285 = vunpack.c.h.b16 %v4264
    %v4286 = vunpack.c.l.b16 %v4265
    %v4287 = vunpack.c.h.b16 %v4265
    %v4288 = vpack.c.b16 %v4284, %v4284
    %v4289 = vpack.c.b16 %v4285, %v4285
    %v4290 = vpack.c.b16 %v4286, %v4286
    %v4291 = vpack.c.b16 %v4287, %v4287
    %v4293 = vsel %vm138, %v4288, 0
    %v4296 = vsel %vm138, %v4289, 0
    %v4299 = vsel %vm138, %v4290, 0
    %v4302 = vsel %vm138, %v4291, 0
    %4304 = vmatpush.bf16.msra.mxu0 0
    %4305 = vmatpush.bf16.msra.mxu0 0
    %4306 = vmatpush.bf16.msra.mxu0 0
    %4307 = vmatpush.bf16.msra.mxu0 0
    %4308 = vmatpush.bf16.msra.mxu0 0
    %4309 = vmatpush.bf16.msra.mxu0 0
    %4310 = vmatpush.bf16.msra.mxu0 0
    %4311 = vmatpush.bf16.msra.mxu0 %v4293
    %4312 = vmatmul.bf16.gmra.mxu0 %v136
    %v4313 = vpop.f32.mrf.mxu0
    %v4314 = vadd.f32 %v4278, %v4313
    %v4315 = vpop.f32.mrf.mxu0
    %4316 = vdwg.mxu0
    %4317 = vmatpush.bf16.msra.mxu0 0
    %4318 = vmatpush.bf16.msra.mxu0 0
    %4319 = vmatpush.bf16.msra.mxu0 0
    %4320 = vmatpush.bf16.msra.mxu0 0
    %4321 = vmatpush.bf16.msra.mxu0 0
    %4322 = vmatpush.bf16.msra.mxu0 0
    %4323 = vmatpush.bf16.msra.mxu0 0
    %4324 = vmatpush.bf16.msra.mxu0 %v4296
    %4325 = vmatmul.bf16.gmra.mxu0 %v136
    %v4326 = vpop.f32.mrf.mxu0
    %v4327 = vadd.f32 %v4279, %v4326
    %v4328 = vpop.f32.mrf.mxu0
    %4329 = vdwg.mxu0
    %4330 = vmatpush.bf16.msra.mxu0 0
    %4331 = vmatpush.bf16.msra.mxu0 0
    %4332 = vmatpush.bf16.msra.mxu0 0
    %4333 = vmatpush.bf16.msra.mxu0 0
    %4334 = vmatpush.bf16.msra.mxu0 0
    %4335 = vmatpush.bf16.msra.mxu0 0
    %4336 = vmatpush.bf16.msra.mxu0 0
    %4337 = vmatpush.bf16.msra.mxu0 %v4299
    %4338 = vmatmul.bf16.gmra.mxu0 %v136
    %v4339 = vpop.f32.mrf.mxu0
    %v4340 = vadd.f32 %v4280, %v4339
    %v4341 = vpop.f32.mrf.mxu0
    %4342 = vdwg.mxu0
    %4343 = vmatpush.bf16.msra.mxu0 0
    %4344 = vmatpush.bf16.msra.mxu0 0
    %4345 = vmatpush.bf16.msra.mxu0 0
    %4346 = vmatpush.bf16.msra.mxu0 0
    %4347 = vmatpush.bf16.msra.mxu0 0
    %4348 = vmatpush.bf16.msra.mxu0 0
    %4349 = vmatpush.bf16.msra.mxu0 0
    %4350 = vmatpush.bf16.msra.mxu0 %v4302
    %4351 = vmatmul.bf16.gmra.mxu0 %v136
    %v4352 = vpop.f32.mrf.mxu0
    %v4353 = vadd.f32 %v4281, %v4352
    %v4354 = vpop.f32.mrf.mxu0
    %4355 = vdwg.mxu0
    %v4356 = vmax.f32 %v4314, 0.0
    %v4357 = vmax.f32 %v4327, 0.0
    %v4358 = vmax.f32 %v4340, 0.0
    %v4359 = vmax.f32 %v4353, 0.0
    %v4360 = vpack.c.bf16 %v4356, %v4356
    %v4361 = vpack.c.bf16 %v4357, %v4357
    %v4362 = vpack.c.bf16 %v4358, %v4358
    %v4363 = vpack.c.bf16 %v4359, %v4359
    %s4364 = scalar_lea.vmem [#allocation6], 1600
    %v4365 = vld [vmem:[%s4364] sm:$0xff]
    %v4366 = vld [vmem:[%s4364 + $0x8] sm:$0xff]
    %v4367 = vld [vmem:[%s4364 + $0x10] sm:$0xff]
    %v4368 = vld [vmem:[%s4364 + $0x18] sm:$0xff]
    %v4369 = vld [vmem:[%s4364 + $0x20] sm:$0xff]
    %v4370 = vld [vmem:[%s4364 + $0x28] sm:$0xff]
    %v4371 = vld [vmem:[%s4364 + $0x30] sm:$0xff]
    %v4372 = vld [vmem:[%s4364 + $0x38] sm:$0xff]
    %v4373 = vld [vmem:[%s4364 + $0x40] sm:$0xff]
    %v4374 = vld [vmem:[%s4364 + $0x48] sm:$0xff]
    %v4375 = vld [vmem:[%s4364 + $0x50] sm:$0xff]
    %v4376 = vld [vmem:[%s4364 + $0x58] sm:$0xff]
    %v4377 = vld [vmem:[%s4364 + $0x60] sm:$0xff]
    %v4378 = vld [vmem:[%s4364 + $0x68] sm:$0xff]
    %v4379 = vld [vmem:[%s4364 + $0x70] sm:$0xff]
    %v4380 = vld [vmem:[%s4364 + $0x78] sm:$0xff]
    %v4381 = vld [vmem:[%s4364 + $0x80] sm:$0xff]
    %v4382 = vld [vmem:[%s4364 + $0x88] sm:$0xff]
    %v4383 = vld [vmem:[%s4364 + $0x90] sm:$0xff]
    %v4384 = vld [vmem:[%s4364 + $0x98] sm:$0xff]
    %v4385 = vld [vmem:[%s4364 + $0xa0] sm:$0xff]
    %v4386 = vld [vmem:[%s4364 + $0xa8] sm:$0xff]
    %v4387 = vld [vmem:[%s4364 + $0xb0] sm:$0xff]
    %v4388 = vld [vmem:[%s4364 + $0xb8] sm:$0xff]
    %v4389 = vld [vmem:[%s4364 + $0xc0] sm:$0xff]
    %v4390 = vld [vmem:[%s4364 + $0xc8] sm:$0xff]
    %v4391 = vld [vmem:[%s4364 + $0xd0] sm:$0xff]
    %v4392 = vld [vmem:[%s4364 + $0xd8] sm:$0xff]
    %v4393 = vld [vmem:[%s4364 + $0xe0] sm:$0xff]
    %v4394 = vld [vmem:[%s4364 + $0xe8] sm:$0xff]
    %v4395 = vld [vmem:[%s4364 + $0xf0] sm:$0xff]
    %v4396 = vld [vmem:[%s4364 + $0xf8] sm:$0xff]
    %v4397 = vld [vmem:[%s4364 + $0x100] sm:$0xff]
    %v4398 = vld [vmem:[%s4364 + $0x108] sm:$0xff]
    %v4399 = vld [vmem:[%s4364 + $0x110] sm:$0xff]
    %v4400 = vld [vmem:[%s4364 + $0x118] sm:$0xff]
    %v4401 = vld [vmem:[%s4364 + $0x120] sm:$0xff]
    %v4402 = vld [vmem:[%s4364 + $0x128] sm:$0xff]
    %v4403 = vld [vmem:[%s4364 + $0x130] sm:$0xff]
    %v4404 = vld [vmem:[%s4364 + $0x138] sm:$0xff]
    %v4405 = vld [vmem:[%s4364 + $0x140] sm:$0xff]
    %v4406 = vld [vmem:[%s4364 + $0x148] sm:$0xff]
    %v4407 = vld [vmem:[%s4364 + $0x150] sm:$0xff]
    %v4408 = vld [vmem:[%s4364 + $0x158] sm:$0xff]
    %v4409 = vld [vmem:[%s4364 + $0x160] sm:$0xff]
    %v4410 = vld [vmem:[%s4364 + $0x168] sm:$0xff]
    %v4411 = vld [vmem:[%s4364 + $0x170] sm:$0xff]
    %v4412 = vld [vmem:[%s4364 + $0x178] sm:$0xff]
    %v4413 = vld [vmem:[%s4364 + $0x180] sm:$0xff]
    %v4414 = vld [vmem:[%s4364 + $0x188] sm:$0xff]
    %v4415 = vld [vmem:[%s4364 + $0x190] sm:$0xff]
    %v4416 = vld [vmem:[%s4364 + $0x198] sm:$0xff]
    %v4417 = vld [vmem:[%s4364 + $0x1a0] sm:$0xff]
    %v4418 = vld [vmem:[%s4364 + $0x1a8] sm:$0xff]
    %v4419 = vld [vmem:[%s4364 + $0x1b0] sm:$0xff]
    %v4420 = vld [vmem:[%s4364 + $0x1b8] sm:$0xff]
    %v4421 = vld [vmem:[%s4364 + $0x1c0] sm:$0xff]
    %v4422 = vld [vmem:[%s4364 + $0x1c8] sm:$0xff]
    %v4423 = vld [vmem:[%s4364 + $0x1d0] sm:$0xff]
    %v4424 = vld [vmem:[%s4364 + $0x1d8] sm:$0xff]
    %v4425 = vld [vmem:[%s4364 + $0x1e0] sm:$0xff]
    %v4426 = vld [vmem:[%s4364 + $0x1e8] sm:$0xff]
    %v4427 = vld [vmem:[%s4364 + $0x1f0] sm:$0xff]
    %v4428 = vld [vmem:[%s4364 + $0x1f8] sm:$0xff]
    %v4429 = vld [vmem:[%s4364 + $0x200] sm:$0xff]
    %v4430 = vld [vmem:[%s4364 + $0x208] sm:$0xff]
    %v4431 = vld [vmem:[%s4364 + $0x210] sm:$0xff]
    %v4432 = vld [vmem:[%s4364 + $0x218] sm:$0xff]
    %v4433 = vld [vmem:[%s4364 + $0x220] sm:$0xff]
    %v4434 = vld [vmem:[%s4364 + $0x228] sm:$0xff]
    %v4435 = vld [vmem:[%s4364 + $0x230] sm:$0xff]
    %v4436 = vld [vmem:[%s4364 + $0x238] sm:$0xff]
    %v4437 = vld [vmem:[%s4364 + $0x240] sm:$0xff]
    %v4438 = vld [vmem:[%s4364 + $0x248] sm:$0xff]
    %v4439 = vld [vmem:[%s4364 + $0x250] sm:$0xff]
    %v4440 = vld [vmem:[%s4364 + $0x258] sm:$0xff]
    %v4441 = vld [vmem:[%s4364 + $0x260] sm:$0xff]
    %v4442 = vld [vmem:[%s4364 + $0x268] sm:$0xff]
    %v4443 = vld [vmem:[%s4364 + $0x270] sm:$0xff]
    %v4444 = vld [vmem:[%s4364 + $0x278] sm:$0xff]
    %v4445 = vld [vmem:[%s4364 + $0x280] sm:$0xff]
    %v4446 = vld [vmem:[%s4364 + $0x288] sm:$0xff]
    %v4447 = vld [vmem:[%s4364 + $0x290] sm:$0xff]
    %v4448 = vld [vmem:[%s4364 + $0x298] sm:$0xff]
    %v4449 = vld [vmem:[%s4364 + $0x2a0] sm:$0xff]
    %v4450 = vld [vmem:[%s4364 + $0x2a8] sm:$0xff]
    %v4451 = vld [vmem:[%s4364 + $0x2b0] sm:$0xff]
    %v4452 = vld [vmem:[%s4364 + $0x2b8] sm:$0xff]
    %v4453 = vld [vmem:[%s4364 + $0x2c0] sm:$0xff]
    %v4454 = vld [vmem:[%s4364 + $0x2c8] sm:$0xff]
    %v4455 = vld [vmem:[%s4364 + $0x2d0] sm:$0xff]
    %v4456 = vld [vmem:[%s4364 + $0x2d8] sm:$0xff]
    %v4457 = vld [vmem:[%s4364 + $0x2e0] sm:$0xff]
    %v4458 = vld [vmem:[%s4364 + $0x2e8] sm:$0xff]
    %v4459 = vld [vmem:[%s4364 + $0x2f0] sm:$0xff]
    %v4460 = vld [vmem:[%s4364 + $0x2f8] sm:$0xff]
    %v4461 = vld [vmem:[%s4364 + $0x300] sm:$0xff]
    %v4462 = vld [vmem:[%s4364 + $0x308] sm:$0xff]
    %v4463 = vld [vmem:[%s4364 + $0x310] sm:$0xff]
    %v4464 = vld [vmem:[%s4364 + $0x318] sm:$0xff]
    %s4465 = scalar_lea.vmem %s4, 8
    %v4466 = vld [vmem:[%s4465] sm:$0xf]
    %v4467 = vunpack.c.l.bf16 %v4466
    %v4469 = vperm.slane %v4467, 0
    %v4470 = vperm.slane %v4467, 2
    %v4471 = vperm.slane %v4467, 4
    %v4472 = vperm.slane %v4467, 6
    %v4477 = vperm.slane %v4469, 0
    %v4478 = vperm.slane %v4470, 0
    %v4479 = vperm.slane %v4471, 0
    %v4480 = vperm.slane %v4472, 0
    %v4581 = vunpack.c.l.b16 %v4365
    %v4582 = vunpack.c.h.b16 %v4365
    %v4583 = vunpack.c.l.b16 %v4366
    %v4584 = vunpack.c.h.b16 %v4366
    %v4585 = vunpack.c.l.b16 %v4367
    %v4586 = vunpack.c.h.b16 %v4367
    %v4587 = vunpack.c.l.b16 %v4368
    %v4588 = vunpack.c.h.b16 %v4368
    %v4589 = vunpack.c.l.b16 %v4369
    %v4590 = vunpack.c.h.b16 %v4369
    %v4591 = vunpack.c.l.b16 %v4370
    %v4592 = vunpack.c.h.b16 %v4370
    %v4593 = vunpack.c.l.b16 %v4371
    %v4594 = vunpack.c.h.b16 %v4371
    %v4595 = vunpack.c.l.b16 %v4372
    %v4596 = vunpack.c.h.b16 %v4372
    %v4597 = vunpack.c.l.b16 %v4373
    %v4598 = vunpack.c.h.b16 %v4373
    %v4599 = vunpack.c.l.b16 %v4374
    %v4600 = vunpack.c.h.b16 %v4374
    %v4601 = vunpack.c.l.b16 %v4375
    %v4602 = vunpack.c.h.b16 %v4375
    %v4603 = vunpack.c.l.b16 %v4376
    %v4604 = vunpack.c.h.b16 %v4376
    %v4605 = vunpack.c.l.b16 %v4377
    %v4606 = vunpack.c.h.b16 %v4377
    %v4607 = vunpack.c.l.b16 %v4378
    %v4608 = vunpack.c.h.b16 %v4378
    %v4609 = vunpack.c.l.b16 %v4379
    %v4610 = vunpack.c.h.b16 %v4379
    %v4611 = vunpack.c.l.b16 %v4380
    %v4612 = vunpack.c.h.b16 %v4380
    %v4613 = vunpack.c.l.b16 %v4381
    %v4614 = vunpack.c.h.b16 %v4381
    %v4615 = vunpack.c.l.b16 %v4382
    %v4616 = vunpack.c.h.b16 %v4382
    %v4617 = vunpack.c.l.b16 %v4383
    %v4618 = vunpack.c.h.b16 %v4383
    %v4619 = vunpack.c.l.b16 %v4384
    %v4620 = vunpack.c.h.b16 %v4384
    %v4621 = vunpack.c.l.b16 %v4385
    %v4622 = vunpack.c.h.b16 %v4385
    %v4623 = vunpack.c.l.b16 %v4386
    %v4624 = vunpack.c.h.b16 %v4386
    %v4625 = vunpack.c.l.b16 %v4387
    %v4626 = vunpack.c.h.b16 %v4387
    %v4627 = vunpack.c.l.b16 %v4388
    %v4628 = vunpack.c.h.b16 %v4388
    %v4629 = vunpack.c.l.b16 %v4389
    %v4630 = vunpack.c.h.b16 %v4389
    %v4631 = vunpack.c.l.b16 %v4390
    %v4632 = vunpack.c.h.b16 %v4390
    %v4633 = vunpack.c.l.b16 %v4391
    %v4634 = vunpack.c.h.b16 %v4391
    %v4635 = vunpack.c.l.b16 %v4392
    %v4636 = vunpack.c.h.b16 %v4392
    %v4637 = vunpack.c.l.b16 %v4393
    %v4638 = vunpack.c.h.b16 %v4393
    %v4639 = vunpack.c.l.b16 %v4394
    %v4640 = vunpack.c.h.b16 %v4394
    %v4641 = vunpack.c.l.b16 %v4395
    %v4642 = vunpack.c.h.b16 %v4395
    %v4643 = vunpack.c.l.b16 %v4396
    %v4644 = vunpack.c.h.b16 %v4396
    %v4645 = vunpack.c.l.b16 %v4397
    %v4646 = vunpack.c.h.b16 %v4397
    %v4647 = vunpack.c.l.b16 %v4398
    %v4648 = vunpack.c.h.b16 %v4398
    %v4649 = vunpack.c.l.b16 %v4399
    %v4650 = vunpack.c.h.b16 %v4399
    %v4651 = vunpack.c.l.b16 %v4400
    %v4652 = vunpack.c.h.b16 %v4400
    %v4653 = vunpack.c.l.b16 %v4401
    %v4654 = vunpack.c.h.b16 %v4401
    %v4655 = vunpack.c.l.b16 %v4402
    %v4656 = vunpack.c.h.b16 %v4402
    %v4657 = vunpack.c.l.b16 %v4403
    %v4658 = vunpack.c.h.b16 %v4403
    %v4659 = vunpack.c.l.b16 %v4404
    %v4660 = vunpack.c.h.b16 %v4404
    %v4661 = vunpack.c.l.b16 %v4405
    %v4662 = vunpack.c.h.b16 %v4405
    %v4663 = vunpack.c.l.b16 %v4406
    %v4664 = vunpack.c.h.b16 %v4406
    %v4665 = vunpack.c.l.b16 %v4407
    %v4666 = vunpack.c.h.b16 %v4407
    %v4667 = vunpack.c.l.b16 %v4408
    %v4668 = vunpack.c.h.b16 %v4408
    %v4669 = vunpack.c.l.b16 %v4409
    %v4670 = vunpack.c.h.b16 %v4409
    %v4671 = vunpack.c.l.b16 %v4410
    %v4672 = vunpack.c.h.b16 %v4410
    %v4673 = vunpack.c.l.b16 %v4411
    %v4674 = vunpack.c.h.b16 %v4411
    %v4675 = vunpack.c.l.b16 %v4412
    %v4676 = vunpack.c.h.b16 %v4412
    %v4677 = vunpack.c.l.b16 %v4413
    %v4678 = vunpack.c.h.b16 %v4413
    %v4679 = vunpack.c.l.b16 %v4414
    %v4680 = vunpack.c.h.b16 %v4414
    %v4681 = vunpack.c.l.b16 %v4415
    %v4682 = vunpack.c.h.b16 %v4415
    %v4683 = vunpack.c.l.b16 %v4416
    %v4684 = vunpack.c.h.b16 %v4416
    %v4685 = vunpack.c.l.b16 %v4417
    %v4686 = vunpack.c.h.b16 %v4417
    %v4687 = vunpack.c.l.b16 %v4418
    %v4688 = vunpack.c.h.b16 %v4418
    %v4689 = vunpack.c.l.b16 %v4419
    %v4690 = vunpack.c.h.b16 %v4419
    %v4691 = vunpack.c.l.b16 %v4420
    %v4692 = vunpack.c.h.b16 %v4420
    %v4693 = vunpack.c.l.b16 %v4421
    %v4694 = vunpack.c.h.b16 %v4421
    %v4695 = vunpack.c.l.b16 %v4422
    %v4696 = vunpack.c.h.b16 %v4422
    %v4697 = vunpack.c.l.b16 %v4423
    %v4698 = vunpack.c.h.b16 %v4423
    %v4699 = vunpack.c.l.b16 %v4424
    %v4700 = vunpack.c.h.b16 %v4424
    %v4701 = vunpack.c.l.b16 %v4425
    %v4702 = vunpack.c.h.b16 %v4425
    %v4703 = vunpack.c.l.b16 %v4426
    %v4704 = vunpack.c.h.b16 %v4426
    %v4705 = vunpack.c.l.b16 %v4427
    %v4706 = vunpack.c.h.b16 %v4427
    %v4707 = vunpack.c.l.b16 %v4428
    %v4708 = vunpack.c.h.b16 %v4428
    %v4709 = vunpack.c.l.b16 %v4429
    %v4710 = vunpack.c.h.b16 %v4429
    %v4711 = vunpack.c.l.b16 %v4430
    %v4712 = vunpack.c.h.b16 %v4430
    %v4713 = vunpack.c.l.b16 %v4431
    %v4714 = vunpack.c.h.b16 %v4431
    %v4715 = vunpack.c.l.b16 %v4432
    %v4716 = vunpack.c.h.b16 %v4432
    %v4717 = vunpack.c.l.b16 %v4433
    %v4718 = vunpack.c.h.b16 %v4433
    %v4719 = vunpack.c.l.b16 %v4434
    %v4720 = vunpack.c.h.b16 %v4434
    %v4721 = vunpack.c.l.b16 %v4435
    %v4722 = vunpack.c.h.b16 %v4435
    %v4723 = vunpack.c.l.b16 %v4436
    %v4724 = vunpack.c.h.b16 %v4436
    %v4725 = vunpack.c.l.b16 %v4437
    %v4726 = vunpack.c.h.b16 %v4437
    %v4727 = vunpack.c.l.b16 %v4438
    %v4728 = vunpack.c.h.b16 %v4438
    %v4729 = vunpack.c.l.b16 %v4439
    %v4730 = vunpack.c.h.b16 %v4439
    %v4731 = vunpack.c.l.b16 %v4440
    %v4732 = vunpack.c.h.b16 %v4440
    %v4733 = vunpack.c.l.b16 %v4441
    %v4734 = vunpack.c.h.b16 %v4441
    %v4735 = vunpack.c.l.b16 %v4442
    %v4736 = vunpack.c.h.b16 %v4442
    %v4737 = vunpack.c.l.b16 %v4443
    %v4738 = vunpack.c.h.b16 %v4443
    %v4739 = vunpack.c.l.b16 %v4444
    %v4740 = vunpack.c.h.b16 %v4444
    %v4741 = vunpack.c.l.b16 %v4445
    %v4742 = vunpack.c.h.b16 %v4445
    %v4743 = vunpack.c.l.b16 %v4446
    %v4744 = vunpack.c.h.b16 %v4446
    %v4745 = vunpack.c.l.b16 %v4447
    %v4746 = vunpack.c.h.b16 %v4447
    %v4747 = vunpack.c.l.b16 %v4448
    %v4748 = vunpack.c.h.b16 %v4448
    %v4749 = vunpack.c.l.b16 %v4449
    %v4750 = vunpack.c.h.b16 %v4449
    %v4751 = vunpack.c.l.b16 %v4450
    %v4752 = vunpack.c.h.b16 %v4450
    %v4753 = vunpack.c.l.b16 %v4451
    %v4754 = vunpack.c.h.b16 %v4451
    %v4755 = vunpack.c.l.b16 %v4452
    %v4756 = vunpack.c.h.b16 %v4452
    %v4757 = vunpack.c.l.b16 %v4453
    %v4758 = vunpack.c.h.b16 %v4453
    %v4759 = vunpack.c.l.b16 %v4454
    %v4760 = vunpack.c.h.b16 %v4454
    %v4761 = vunpack.c.l.b16 %v4455
    %v4762 = vunpack.c.h.b16 %v4455
    %v4763 = vunpack.c.l.b16 %v4456
    %v4764 = vunpack.c.h.b16 %v4456
    %v4765 = vunpack.c.l.b16 %v4457
    %v4766 = vunpack.c.h.b16 %v4457
    %v4767 = vunpack.c.l.b16 %v4458
    %v4768 = vunpack.c.h.b16 %v4458
    %v4769 = vunpack.c.l.b16 %v4459
    %v4770 = vunpack.c.h.b16 %v4459
    %v4771 = vunpack.c.l.b16 %v4460
    %v4772 = vunpack.c.h.b16 %v4460
    %v4773 = vunpack.c.l.b16 %v4461
    %v4774 = vunpack.c.h.b16 %v4461
    %v4775 = vunpack.c.l.b16 %v4462
    %v4776 = vunpack.c.h.b16 %v4462
    %v4777 = vunpack.c.l.b16 %v4463
    %v4778 = vunpack.c.h.b16 %v4463
    %v4779 = vunpack.c.l.b16 %v4464
    %v4780 = vunpack.c.h.b16 %v4464
    %v4781 = vpack.c.b16 %v4585, %v4581
    %v4782 = vpack.c.b16 %v4586, %v4582
    %v4783 = vpack.c.b16 %v4587, %v4583
    %v4784 = vpack.c.b16 %v4588, %v4584
    %v4785 = vpack.c.b16 %v4593, %v4589
    %v4786 = vpack.c.b16 %v4594, %v4590
    %v4787 = vpack.c.b16 %v4595, %v4591
    %v4788 = vpack.c.b16 %v4596, %v4592
    %v4789 = vpack.c.b16 %v4601, %v4597
    %v4790 = vpack.c.b16 %v4602, %v4598
    %v4791 = vpack.c.b16 %v4603, %v4599
    %v4792 = vpack.c.b16 %v4604, %v4600
    %v4793 = vpack.c.b16 %v4609, %v4605
    %v4794 = vpack.c.b16 %v4610, %v4606
    %v4795 = vpack.c.b16 %v4611, %v4607
    %v4796 = vpack.c.b16 %v4612, %v4608
    %v4797 = vpack.c.b16 %v4617, %v4613
    %v4798 = vpack.c.b16 %v4618, %v4614
    %v4799 = vpack.c.b16 %v4619, %v4615
    %v4800 = vpack.c.b16 %v4620, %v4616
    %v4801 = vpack.c.b16 %v4625, %v4621
    %v4802 = vpack.c.b16 %v4626, %v4622
    %v4803 = vpack.c.b16 %v4627, %v4623
    %v4804 = vpack.c.b16 %v4628, %v4624
    %v4805 = vpack.c.b16 %v4633, %v4629
    %v4806 = vpack.c.b16 %v4634, %v4630
    %v4807 = vpack.c.b16 %v4635, %v4631
    %v4808 = vpack.c.b16 %v4636, %v4632
    %v4809 = vpack.c.b16 %v4641, %v4637
    %v4810 = vpack.c.b16 %v4642, %v4638
    %v4811 = vpack.c.b16 %v4643, %v4639
    %v4812 = vpack.c.b16 %v4644, %v4640
    %v4813 = vpack.c.b16 %v4649, %v4645
    %v4814 = vpack.c.b16 %v4650, %v4646
    %v4815 = vpack.c.b16 %v4651, %v4647
    %v4816 = vpack.c.b16 %v4652, %v4648
    %v4817 = vpack.c.b16 %v4657, %v4653
    %v4818 = vpack.c.b16 %v4658, %v4654
    %v4819 = vpack.c.b16 %v4659, %v4655
    %v4820 = vpack.c.b16 %v4660, %v4656
    %v4821 = vpack.c.b16 %v4665, %v4661
    %v4822 = vpack.c.b16 %v4666, %v4662
    %v4823 = vpack.c.b16 %v4667, %v4663
    %v4824 = vpack.c.b16 %v4668, %v4664
    %v4825 = vpack.c.b16 %v4673, %v4669
    %v4826 = vpack.c.b16 %v4674, %v4670
    %v4827 = vpack.c.b16 %v4675, %v4671
    %v4828 = vpack.c.b16 %v4676, %v4672
    %v4829 = vpack.c.b16 %v4681, %v4677
    %v4830 = vpack.c.b16 %v4682, %v4678
    %v4831 = vpack.c.b16 %v4683, %v4679
    %v4832 = vpack.c.b16 %v4684, %v4680
    %v4833 = vpack.c.b16 %v4689, %v4685
    %v4834 = vpack.c.b16 %v4690, %v4686
    %v4835 = vpack.c.b16 %v4691, %v4687
    %v4836 = vpack.c.b16 %v4692, %v4688
    %v4837 = vpack.c.b16 %v4697, %v4693
    %v4838 = vpack.c.b16 %v4698, %v4694
    %v4839 = vpack.c.b16 %v4699, %v4695
    %v4840 = vpack.c.b16 %v4700, %v4696
    %v4841 = vpack.c.b16 %v4705, %v4701
    %v4842 = vpack.c.b16 %v4706, %v4702
    %v4843 = vpack.c.b16 %v4707, %v4703
    %v4844 = vpack.c.b16 %v4708, %v4704
    %v4845 = vpack.c.b16 %v4713, %v4709
    %v4846 = vpack.c.b16 %v4714, %v4710
    %v4847 = vpack.c.b16 %v4715, %v4711
    %v4848 = vpack.c.b16 %v4716, %v4712
    %v4849 = vpack.c.b16 %v4721, %v4717
    %v4850 = vpack.c.b16 %v4722, %v4718
    %v4851 = vpack.c.b16 %v4723, %v4719
    %v4852 = vpack.c.b16 %v4724, %v4720
    %v4853 = vpack.c.b16 %v4729, %v4725
    %v4854 = vpack.c.b16 %v4730, %v4726
    %v4855 = vpack.c.b16 %v4731, %v4727
    %v4856 = vpack.c.b16 %v4732, %v4728
    %v4857 = vpack.c.b16 %v4737, %v4733
    %v4858 = vpack.c.b16 %v4738, %v4734
    %v4859 = vpack.c.b16 %v4739, %v4735
    %v4860 = vpack.c.b16 %v4740, %v4736
    %v4861 = vpack.c.b16 %v4745, %v4741
    %v4862 = vpack.c.b16 %v4746, %v4742
    %v4863 = vpack.c.b16 %v4747, %v4743
    %v4864 = vpack.c.b16 %v4748, %v4744
    %v4865 = vpack.c.b16 %v4753, %v4749
    %v4866 = vpack.c.b16 %v4754, %v4750
    %v4867 = vpack.c.b16 %v4755, %v4751
    %v4868 = vpack.c.b16 %v4756, %v4752
    %v4869 = vpack.c.b16 %v4761, %v4757
    %v4870 = vpack.c.b16 %v4762, %v4758
    %v4871 = vpack.c.b16 %v4763, %v4759
    %v4872 = vpack.c.b16 %v4764, %v4760
    %v4873 = vpack.c.b16 %v4769, %v4765
    %v4874 = vpack.c.b16 %v4770, %v4766
    %v4875 = vpack.c.b16 %v4771, %v4767
    %v4876 = vpack.c.b16 %v4772, %v4768
    %v4877 = vpack.c.b16 %v4777, %v4773
    %v4878 = vpack.c.b16 %v4778, %v4774
    %v4879 = vpack.c.b16 %v4779, %v4775
    %v4880 = vpack.c.b16 %v4780, %v4776
    %v4982 = vsel %vm826, %v4363, 0
    %4984 = vmatpush.bf16.msra.mxu0 %v4809
    %4985 = vmatpush.bf16.msra.mxu0 %v4805
    %4986 = vmatpush.bf16.msra.mxu0 %v4801
    %4987 = vmatpush.bf16.msra.mxu0 %v4797
    %4988 = vmatpush.bf16.msra.mxu0 %v4793
    %4989 = vmatpush.bf16.msra.mxu0 %v4789
    %4990 = vmatpush.bf16.msra.mxu0 %v4785
    %4991 = vmatpush.bf16.msra.mxu0 %v4781
    %4992 = vmatmul.bf16.gmra.mxu0 %v4360
    %v4993 = vpop.f32.mrf.mxu0
    %v4994 = vadd.f32 %v4477, %v4993
    %v4995 = vpop.f32.mrf.mxu0
    %4996 = vdwg.mxu0
    %4997 = vmatpush.bf16.msra.mxu0 %v4841
    %4998 = vmatpush.bf16.msra.mxu0 %v4837
    %4999 = vmatpush.bf16.msra.mxu0 %v4833
    %5000 = vmatpush.bf16.msra.mxu0 %v4829
    %5001 = vmatpush.bf16.msra.mxu0 %v4825
    %5002 = vmatpush.bf16.msra.mxu0 %v4821
    %5003 = vmatpush.bf16.msra.mxu0 %v4817
    %5004 = vmatpush.bf16.msra.mxu0 %v4813
    %5005 = vmatmul.bf16.gmra.mxu0 %v4361
    %v5006 = vpop.f32.mrf.mxu0
    %v5007 = vadd.f32 %v4994, %v5006
    %v5008 = vpop.f32.mrf.mxu0
    %5009 = vdwg.mxu0
    %5010 = vmatpush.bf16.msra.mxu0 %v4873
    %5011 = vmatpush.bf16.msra.mxu0 %v4869
    %5012 = vmatpush.bf16.msra.mxu0 %v4865
    %5013 = vmatpush.bf16.msra.mxu0 %v4861
    %5014 = vmatpush.bf16.msra.mxu0 %v4857
    %5015 = vmatpush.bf16.msra.mxu0 %v4853
    %5016 = vmatpush.bf16.msra.mxu0 %v4849
    %5017 = vmatpush.bf16.msra.mxu0 %v4845
    %5018 = vmatmul.bf16.gmra.mxu0 %v4362
    %v5019 = vpop.f32.mrf.mxu0
    %v5020 = vadd.f32 %v5007, %v5019
    %v5021 = vpop.f32.mrf.mxu0
    %5022 = vdwg.mxu0
    %5023 = vmatpush.bf16.msra.mxu0 0
    %5024 = vmatpush.bf16.msra.mxu0 0
    %5025 = vmatpush.bf16.msra.mxu0 0
    %5026 = vmatpush.bf16.msra.mxu0 0
    %5027 = vmatpush.bf16.msra.mxu0 0
    %5028 = vmatpush.bf16.msra.mxu0 0
    %5029 = vmatpush.bf16.msra.mxu0 0
    %5030 = vmatpush.bf16.msra.mxu0 %v4877
    %5031 = vmatmul.bf16.gmra.mxu0 %v4982
    %v5032 = vpop.f32.mrf.mxu0
    %v5033 = vadd.f32 %v5020, %v5032
    %v5034 = vpop.f32.mrf.mxu0
    %5035 = vdwg.mxu0
    %5036 = vmatpush.bf16.msra.mxu0 %v4810
    %5037 = vmatpush.bf16.msra.mxu0 %v4806
    %5038 = vmatpush.bf16.msra.mxu0 %v4802
    %5039 = vmatpush.bf16.msra.mxu0 %v4798
    %5040 = vmatpush.bf16.msra.mxu0 %v4794
    %5041 = vmatpush.bf16.msra.mxu0 %v4790
    %5042 = vmatpush.bf16.msra.mxu0 %v4786
    %5043 = vmatpush.bf16.msra.mxu0 %v4782
    %5044 = vmatmul.bf16.gmra.mxu0 %v4360
    %v5045 = vpop.f32.mrf.mxu0
    %v5046 = vadd.f32 %v4478, %v5045
    %v5047 = vpop.f32.mrf.mxu0
    %5048 = vdwg.mxu0
    %5049 = vmatpush.bf16.msra.mxu0 %v4842
    %5050 = vmatpush.bf16.msra.mxu0 %v4838
    %5051 = vmatpush.bf16.msra.mxu0 %v4834
    %5052 = vmatpush.bf16.msra.mxu0 %v4830
    %5053 = vmatpush.bf16.msra.mxu0 %v4826
    %5054 = vmatpush.bf16.msra.mxu0 %v4822
    %5055 = vmatpush.bf16.msra.mxu0 %v4818
    %5056 = vmatpush.bf16.msra.mxu0 %v4814
    %5057 = vmatmul.bf16.gmra.mxu0 %v4361
    %v5058 = vpop.f32.mrf.mxu0
    %v5059 = vadd.f32 %v5046, %v5058
    %v5060 = vpop.f32.mrf.mxu0
    %5061 = vdwg.mxu0
    %5062 = vmatpush.bf16.msra.mxu0 %v4874
    %5063 = vmatpush.bf16.msra.mxu0 %v4870
    %5064 = vmatpush.bf16.msra.mxu0 %v4866
    %5065 = vmatpush.bf16.msra.mxu0 %v4862
    %5066 = vmatpush.bf16.msra.mxu0 %v4858
    %5067 = vmatpush.bf16.msra.mxu0 %v4854
    %5068 = vmatpush.bf16.msra.mxu0 %v4850
    %5069 = vmatpush.bf16.msra.mxu0 %v4846
    %5070 = vmatmul.bf16.gmra.mxu0 %v4362
    %v5071 = vpop.f32.mrf.mxu0
    %v5072 = vadd.f32 %v5059, %v5071
    %v5073 = vpop.f32.mrf.mxu0
    %5074 = vdwg.mxu0
    %5075 = vmatpush.bf16.msra.mxu0 0
    %5076 = vmatpush.bf16.msra.mxu0 0
    %5077 = vmatpush.bf16.msra.mxu0 0
    %5078 = vmatpush.bf16.msra.mxu0 0
    %5079 = vmatpush.bf16.msra.mxu0 0
    %5080 = vmatpush.bf16.msra.mxu0 0
    %5081 = vmatpush.bf16.msra.mxu0 0
    %5082 = vmatpush.bf16.msra.mxu0 %v4878
    %5083 = vmatmul.bf16.gmra.mxu0 %v4982
    %v5084 = vpop.f32.mrf.mxu0
    %v5085 = vadd.f32 %v5072, %v5084
    %v5086 = vpop.f32.mrf.mxu0
    %5087 = vdwg.mxu0
    %5088 = vmatpush.bf16.msra.mxu0 %v4811
    %5089 = vmatpush.bf16.msra.mxu0 %v4807
    %5090 = vmatpush.bf16.msra.mxu0 %v4803
    %5091 = vmatpush.bf16.msra.mxu0 %v4799
    %5092 = vmatpush.bf16.msra.mxu0 %v4795
    %5093 = vmatpush.bf16.msra.mxu0 %v4791
    %5094 = vmatpush.bf16.msra.mxu0 %v4787
    %5095 = vmatpush.bf16.msra.mxu0 %v4783
    %5096 = vmatmul.bf16.gmra.mxu0 %v4360
    %v5097 = vpop.f32.mrf.mxu0
    %v5098 = vadd.f32 %v4479, %v5097
    %v5099 = vpop.f32.mrf.mxu0
    %5100 = vdwg.mxu0
    %5101 = vmatpush.bf16.msra.mxu0 %v4843
    %5102 = vmatpush.bf16.msra.mxu0 %v4839
    %5103 = vmatpush.bf16.msra.mxu0 %v4835
    %5104 = vmatpush.bf16.msra.mxu0 %v4831
    %5105 = vmatpush.bf16.msra.mxu0 %v4827
    %5106 = vmatpush.bf16.msra.mxu0 %v4823
    %5107 = vmatpush.bf16.msra.mxu0 %v4819
    %5108 = vmatpush.bf16.msra.mxu0 %v4815
    %5109 = vmatmul.bf16.gmra.mxu0 %v4361
    %v5110 = vpop.f32.mrf.mxu0
    %v5111 = vadd.f32 %v5098, %v5110
    %v5112 = vpop.f32.mrf.mxu0
    %5113 = vdwg.mxu0
    %5114 = vmatpush.bf16.msra.mxu0 %v4875
    %5115 = vmatpush.bf16.msra.mxu0 %v4871
    %5116 = vmatpush.bf16.msra.mxu0 %v4867
    %5117 = vmatpush.bf16.msra.mxu0 %v4863
    %5118 = vmatpush.bf16.msra.mxu0 %v4859
    %5119 = vmatpush.bf16.msra.mxu0 %v4855
    %5120 = vmatpush.bf16.msra.mxu0 %v4851
    %5121 = vmatpush.bf16.msra.mxu0 %v4847
    %5122 = vmatmul.bf16.gmra.mxu0 %v4362
    %v5123 = vpop.f32.mrf.mxu0
    %v5124 = vadd.f32 %v5111, %v5123
    %v5125 = vpop.f32.mrf.mxu0
    %5126 = vdwg.mxu0
    %5127 = vmatpush.bf16.msra.mxu0 0
    %5128 = vmatpush.bf16.msra.mxu0 0
    %5129 = vmatpush.bf16.msra.mxu0 0
    %5130 = vmatpush.bf16.msra.mxu0 0
    %5131 = vmatpush.bf16.msra.mxu0 0
    %5132 = vmatpush.bf16.msra.mxu0 0
    %5133 = vmatpush.bf16.msra.mxu0 0
    %5134 = vmatpush.bf16.msra.mxu0 %v4879
    %5135 = vmatmul.bf16.gmra.mxu0 %v4982
    %v5136 = vpop.f32.mrf.mxu0
    %v5137 = vadd.f32 %v5124, %v5136
    %v5138 = vpop.f32.mrf.mxu0
    %5139 = vdwg.mxu0
    %5140 = vmatpush.bf16.msra.mxu0 %v4812
    %5141 = vmatpush.bf16.msra.mxu0 %v4808
    %5142 = vmatpush.bf16.msra.mxu0 %v4804
    %5143 = vmatpush.bf16.msra.mxu0 %v4800
    %5144 = vmatpush.bf16.msra.mxu0 %v4796
    %5145 = vmatpush.bf16.msra.mxu0 %v4792
    %5146 = vmatpush.bf16.msra.mxu0 %v4788
    %5147 = vmatpush.bf16.msra.mxu0 %v4784
    %5148 = vmatmul.bf16.gmra.mxu0 %v4360
    %v5149 = vpop.f32.mrf.mxu0
    %v5150 = vadd.f32 %v4480, %v5149
    %v5151 = vpop.f32.mrf.mxu0
    %5152 = vdwg.mxu0
    %5153 = vmatpush.bf16.msra.mxu0 %v4844
    %5154 = vmatpush.bf16.msra.mxu0 %v4840
    %5155 = vmatpush.bf16.msra.mxu0 %v4836
    %5156 = vmatpush.bf16.msra.mxu0 %v4832
    %5157 = vmatpush.bf16.msra.mxu0 %v4828
    %5158 = vmatpush.bf16.msra.mxu0 %v4824
    %5159 = vmatpush.bf16.msra.mxu0 %v4820
    %5160 = vmatpush.bf16.msra.mxu0 %v4816
    %5161 = vmatmul.bf16.gmra.mxu0 %v4361
    %v5162 = vpop.f32.mrf.mxu0
    %v5163 = vadd.f32 %v5150, %v5162
    %v5164 = vpop.f32.mrf.mxu0
    %5165 = vdwg.mxu0
    %5166 = vmatpush.bf16.msra.mxu0 %v4876
    %5167 = vmatpush.bf16.msra.mxu0 %v4872
    %5168 = vmatpush.bf16.msra.mxu0 %v4868
    %5169 = vmatpush.bf16.msra.mxu0 %v4864
    %5170 = vmatpush.bf16.msra.mxu0 %v4860
    %5171 = vmatpush.bf16.msra.mxu0 %v4856
    %5172 = vmatpush.bf16.msra.mxu0 %v4852
    %5173 = vmatpush.bf16.msra.mxu0 %v4848
    %5174 = vmatmul.bf16.gmra.mxu0 %v4362
    %v5175 = vpop.f32.mrf.mxu0
    %v5176 = vadd.f32 %v5163, %v5175
    %v5177 = vpop.f32.mrf.mxu0
    %5178 = vdwg.mxu0
    %5179 = vmatpush.bf16.msra.mxu0 0
    %5180 = vmatpush.bf16.msra.mxu0 0
    %5181 = vmatpush.bf16.msra.mxu0 0
    %5182 = vmatpush.bf16.msra.mxu0 0
    %5183 = vmatpush.bf16.msra.mxu0 0
    %5184 = vmatpush.bf16.msra.mxu0 0
    %5185 = vmatpush.bf16.msra.mxu0 0
    %5186 = vmatpush.bf16.msra.mxu0 %v4880
    %5187 = vmatmul.bf16.gmra.mxu0 %v4982
    %v5188 = vpop.f32.mrf.mxu0
    %v5189 = vadd.f32 %v5176, %v5188
    %v5190 = vpop.f32.mrf.mxu0
    %5191 = vdwg.mxu0
    %v5192 = vmax.f32 %v5033, 0.0
    %v5193 = vmax.f32 %v5085, 0.0
    %v5194 = vmax.f32 %v5137, 0.0
    %v5195 = vmax.f32 %v5189, 0.0
    %v5196 = vpack.c.bf16 %v5192, %v5192
    %v5197 = vpack.c.bf16 %v5193, %v5193
    %v5198 = vpack.c.bf16 %v5194, %v5194
    %v5199 = vpack.c.bf16 %v5195, %v5195
    %s5200 = scalar_lea.vmem [#allocation7], 1600
    %v5201 = vld [vmem:[%s5200] sm:$0xff]
    %v5202 = vld [vmem:[%s5200 + $0x8] sm:$0xff]
    %v5203 = vld [vmem:[%s5200 + $0x10] sm:$0xff]
    %v5204 = vld [vmem:[%s5200 + $0x18] sm:$0xff]
    %v5205 = vld [vmem:[%s5200 + $0x20] sm:$0xff]
    %v5206 = vld [vmem:[%s5200 + $0x28] sm:$0xff]
    %v5207 = vld [vmem:[%s5200 + $0x30] sm:$0xff]
    %v5208 = vld [vmem:[%s5200 + $0x38] sm:$0xff]
    %v5209 = vld [vmem:[%s5200 + $0x40] sm:$0xff]
    %v5210 = vld [vmem:[%s5200 + $0x48] sm:$0xff]
    %v5211 = vld [vmem:[%s5200 + $0x50] sm:$0xff]
    %v5212 = vld [vmem:[%s5200 + $0x58] sm:$0xff]
    %v5213 = vld [vmem:[%s5200 + $0x60] sm:$0xff]
    %v5214 = vld [vmem:[%s5200 + $0x68] sm:$0xff]
    %v5215 = vld [vmem:[%s5200 + $0x70] sm:$0xff]
    %v5216 = vld [vmem:[%s5200 + $0x78] sm:$0xff]
    %v5217 = vld [vmem:[%s5200 + $0x80] sm:$0xff]
    %v5218 = vld [vmem:[%s5200 + $0x88] sm:$0xff]
    %v5219 = vld [vmem:[%s5200 + $0x90] sm:$0xff]
    %v5220 = vld [vmem:[%s5200 + $0x98] sm:$0xff]
    %v5221 = vld [vmem:[%s5200 + $0xa0] sm:$0xff]
    %v5222 = vld [vmem:[%s5200 + $0xa8] sm:$0xff]
    %v5223 = vld [vmem:[%s5200 + $0xb0] sm:$0xff]
    %v5224 = vld [vmem:[%s5200 + $0xb8] sm:$0xff]
    %v5225 = vld [vmem:[%s5200 + $0xc0] sm:$0xff]
    %v5226 = vld [vmem:[%s5200 + $0xc8] sm:$0xff]
    %v5227 = vld [vmem:[%s5200 + $0xd0] sm:$0xff]
    %v5228 = vld [vmem:[%s5200 + $0xd8] sm:$0xff]
    %v5229 = vld [vmem:[%s5200 + $0xe0] sm:$0xff]
    %v5230 = vld [vmem:[%s5200 + $0xe8] sm:$0xff]
    %v5231 = vld [vmem:[%s5200 + $0xf0] sm:$0xff]
    %v5232 = vld [vmem:[%s5200 + $0xf8] sm:$0xff]
    %v5233 = vld [vmem:[%s5200 + $0x100] sm:$0xff]
    %v5234 = vld [vmem:[%s5200 + $0x108] sm:$0xff]
    %v5235 = vld [vmem:[%s5200 + $0x110] sm:$0xff]
    %v5236 = vld [vmem:[%s5200 + $0x118] sm:$0xff]
    %v5237 = vld [vmem:[%s5200 + $0x120] sm:$0xff]
    %v5238 = vld [vmem:[%s5200 + $0x128] sm:$0xff]
    %v5239 = vld [vmem:[%s5200 + $0x130] sm:$0xff]
    %v5240 = vld [vmem:[%s5200 + $0x138] sm:$0xff]
    %v5241 = vld [vmem:[%s5200 + $0x140] sm:$0xff]
    %v5242 = vld [vmem:[%s5200 + $0x148] sm:$0xff]
    %v5243 = vld [vmem:[%s5200 + $0x150] sm:$0xff]
    %v5244 = vld [vmem:[%s5200 + $0x158] sm:$0xff]
    %v5245 = vld [vmem:[%s5200 + $0x160] sm:$0xff]
    %v5246 = vld [vmem:[%s5200 + $0x168] sm:$0xff]
    %v5247 = vld [vmem:[%s5200 + $0x170] sm:$0xff]
    %v5248 = vld [vmem:[%s5200 + $0x178] sm:$0xff]
    %v5249 = vld [vmem:[%s5200 + $0x180] sm:$0xff]
    %v5250 = vld [vmem:[%s5200 + $0x188] sm:$0xff]
    %v5251 = vld [vmem:[%s5200 + $0x190] sm:$0xff]
    %v5252 = vld [vmem:[%s5200 + $0x198] sm:$0xff]
    %v5253 = vld [vmem:[%s5200 + $0x1a0] sm:$0xff]
    %v5254 = vld [vmem:[%s5200 + $0x1a8] sm:$0xff]
    %v5255 = vld [vmem:[%s5200 + $0x1b0] sm:$0xff]
    %v5256 = vld [vmem:[%s5200 + $0x1b8] sm:$0xff]
    %v5257 = vld [vmem:[%s5200 + $0x1c0] sm:$0xff]
    %v5258 = vld [vmem:[%s5200 + $0x1c8] sm:$0xff]
    %v5259 = vld [vmem:[%s5200 + $0x1d0] sm:$0xff]
    %v5260 = vld [vmem:[%s5200 + $0x1d8] sm:$0xff]
    %v5261 = vld [vmem:[%s5200 + $0x1e0] sm:$0xff]
    %v5262 = vld [vmem:[%s5200 + $0x1e8] sm:$0xff]
    %v5263 = vld [vmem:[%s5200 + $0x1f0] sm:$0xff]
    %v5264 = vld [vmem:[%s5200 + $0x1f8] sm:$0xff]
    %v5265 = vld [vmem:[%s5200 + $0x200] sm:$0xff]
    %v5266 = vld [vmem:[%s5200 + $0x208] sm:$0xff]
    %v5267 = vld [vmem:[%s5200 + $0x210] sm:$0xff]
    %v5268 = vld [vmem:[%s5200 + $0x218] sm:$0xff]
    %v5269 = vld [vmem:[%s5200 + $0x220] sm:$0xff]
    %v5270 = vld [vmem:[%s5200 + $0x228] sm:$0xff]
    %v5271 = vld [vmem:[%s5200 + $0x230] sm:$0xff]
    %v5272 = vld [vmem:[%s5200 + $0x238] sm:$0xff]
    %v5273 = vld [vmem:[%s5200 + $0x240] sm:$0xff]
    %v5274 = vld [vmem:[%s5200 + $0x248] sm:$0xff]
    %v5275 = vld [vmem:[%s5200 + $0x250] sm:$0xff]
    %v5276 = vld [vmem:[%s5200 + $0x258] sm:$0xff]
    %v5277 = vld [vmem:[%s5200 + $0x260] sm:$0xff]
    %v5278 = vld [vmem:[%s5200 + $0x268] sm:$0xff]
    %v5279 = vld [vmem:[%s5200 + $0x270] sm:$0xff]
    %v5280 = vld [vmem:[%s5200 + $0x278] sm:$0xff]
    %v5281 = vld [vmem:[%s5200 + $0x280] sm:$0xff]
    %v5282 = vld [vmem:[%s5200 + $0x288] sm:$0xff]
    %v5283 = vld [vmem:[%s5200 + $0x290] sm:$0xff]
    %v5284 = vld [vmem:[%s5200 + $0x298] sm:$0xff]
    %v5285 = vld [vmem:[%s5200 + $0x2a0] sm:$0xff]
    %v5286 = vld [vmem:[%s5200 + $0x2a8] sm:$0xff]
    %v5287 = vld [vmem:[%s5200 + $0x2b0] sm:$0xff]
    %v5288 = vld [vmem:[%s5200 + $0x2b8] sm:$0xff]
    %v5289 = vld [vmem:[%s5200 + $0x2c0] sm:$0xff]
    %v5290 = vld [vmem:[%s5200 + $0x2c8] sm:$0xff]
    %v5291 = vld [vmem:[%s5200 + $0x2d0] sm:$0xff]
    %v5292 = vld [vmem:[%s5200 + $0x2d8] sm:$0xff]
    %v5293 = vld [vmem:[%s5200 + $0x2e0] sm:$0xff]
    %v5294 = vld [vmem:[%s5200 + $0x2e8] sm:$0xff]
    %v5295 = vld [vmem:[%s5200 + $0x2f0] sm:$0xff]
    %v5296 = vld [vmem:[%s5200 + $0x2f8] sm:$0xff]
    %v5297 = vld [vmem:[%s5200 + $0x300] sm:$0xff]
    %v5298 = vld [vmem:[%s5200 + $0x308] sm:$0xff]
    %v5299 = vld [vmem:[%s5200 + $0x310] sm:$0xff]
    %v5300 = vld [vmem:[%s5200 + $0x318] sm:$0xff]
    %s5301 = scalar_lea.vmem %s6, 8
    %v5302 = vld [vmem:[%s5301] sm:$0xf]
    %v5303 = vunpack.c.l.bf16 %v5302
    %v5305 = vperm.slane %v5303, 0
    %v5306 = vperm.slane %v5303, 2
    %v5307 = vperm.slane %v5303, 4
    %v5308 = vperm.slane %v5303, 6
    %v5313 = vperm.slane %v5305, 0
    %v5314 = vperm.slane %v5306, 0
    %v5315 = vperm.slane %v5307, 0
    %v5316 = vperm.slane %v5308, 0
    %v5417 = vunpack.c.l.b16 %v5201
    %v5418 = vunpack.c.h.b16 %v5201
    %v5419 = vunpack.c.l.b16 %v5202
    %v5420 = vunpack.c.h.b16 %v5202
    %v5421 = vunpack.c.l.b16 %v5203
    %v5422 = vunpack.c.h.b16 %v5203
    %v5423 = vunpack.c.l.b16 %v5204
    %v5424 = vunpack.c.h.b16 %v5204
    %v5425 = vunpack.c.l.b16 %v5205
    %v5426 = vunpack.c.h.b16 %v5205
    %v5427 = vunpack.c.l.b16 %v5206
    %v5428 = vunpack.c.h.b16 %v5206
    %v5429 = vunpack.c.l.b16 %v5207
    %v5430 = vunpack.c.h.b16 %v5207
    %v5431 = vunpack.c.l.b16 %v5208
    %v5432 = vunpack.c.h.b16 %v5208
    %v5433 = vunpack.c.l.b16 %v5209
    %v5434 = vunpack.c.h.b16 %v5209
    %v5435 = vunpack.c.l.b16 %v5210
    %v5436 = vunpack.c.h.b16 %v5210
    %v5437 = vunpack.c.l.b16 %v5211
    %v5438 = vunpack.c.h.b16 %v5211
    %v5439 = vunpack.c.l.b16 %v5212
    %v5440 = vunpack.c.h.b16 %v5212
    %v5441 = vunpack.c.l.b16 %v5213
    %v5442 = vunpack.c.h.b16 %v5213
    %v5443 = vunpack.c.l.b16 %v5214
    %v5444 = vunpack.c.h.b16 %v5214
    %v5445 = vunpack.c.l.b16 %v5215
    %v5446 = vunpack.c.h.b16 %v5215
    %v5447 = vunpack.c.l.b16 %v5216
    %v5448 = vunpack.c.h.b16 %v5216
    %v5449 = vunpack.c.l.b16 %v5217
    %v5450 = vunpack.c.h.b16 %v5217
    %v5451 = vunpack.c.l.b16 %v5218
    %v5452 = vunpack.c.h.b16 %v5218
    %v5453 = vunpack.c.l.b16 %v5219
    %v5454 = vunpack.c.h.b16 %v5219
    %v5455 = vunpack.c.l.b16 %v5220
    %v5456 = vunpack.c.h.b16 %v5220
    %v5457 = vunpack.c.l.b16 %v5221
    %v5458 = vunpack.c.h.b16 %v5221
    %v5459 = vunpack.c.l.b16 %v5222
    %v5460 = vunpack.c.h.b16 %v5222
    %v5461 = vunpack.c.l.b16 %v5223
    %v5462 = vunpack.c.h.b16 %v5223
    %v5463 = vunpack.c.l.b16 %v5224
    %v5464 = vunpack.c.h.b16 %v5224
    %v5465 = vunpack.c.l.b16 %v5225
    %v5466 = vunpack.c.h.b16 %v5225
    %v5467 = vunpack.c.l.b16 %v5226
    %v5468 = vunpack.c.h.b16 %v5226
    %v5469 = vunpack.c.l.b16 %v5227
    %v5470 = vunpack.c.h.b16 %v5227
    %v5471 = vunpack.c.l.b16 %v5228
    %v5472 = vunpack.c.h.b16 %v5228
    %v5473 = vunpack.c.l.b16 %v5229
    %v5474 = vunpack.c.h.b16 %v5229
    %v5475 = vunpack.c.l.b16 %v5230
    %v5476 = vunpack.c.h.b16 %v5230
    %v5477 = vunpack.c.l.b16 %v5231
    %v5478 = vunpack.c.h.b16 %v5231
    %v5479 = vunpack.c.l.b16 %v5232
    %v5480 = vunpack.c.h.b16 %v5232
    %v5481 = vunpack.c.l.b16 %v5233
    %v5482 = vunpack.c.h.b16 %v5233
    %v5483 = vunpack.c.l.b16 %v5234
    %v5484 = vunpack.c.h.b16 %v5234
    %v5485 = vunpack.c.l.b16 %v5235
    %v5486 = vunpack.c.h.b16 %v5235
    %v5487 = vunpack.c.l.b16 %v5236
    %v5488 = vunpack.c.h.b16 %v5236
    %v5489 = vunpack.c.l.b16 %v5237
    %v5490 = vunpack.c.h.b16 %v5237
    %v5491 = vunpack.c.l.b16 %v5238
    %v5492 = vunpack.c.h.b16 %v5238
    %v5493 = vunpack.c.l.b16 %v5239
    %v5494 = vunpack.c.h.b16 %v5239
    %v5495 = vunpack.c.l.b16 %v5240
    %v5496 = vunpack.c.h.b16 %v5240
    %v5497 = vunpack.c.l.b16 %v5241
    %v5498 = vunpack.c.h.b16 %v5241
    %v5499 = vunpack.c.l.b16 %v5242
    %v5500 = vunpack.c.h.b16 %v5242
    %v5501 = vunpack.c.l.b16 %v5243
    %v5502 = vunpack.c.h.b16 %v5243
    %v5503 = vunpack.c.l.b16 %v5244
    %v5504 = vunpack.c.h.b16 %v5244
    %v5505 = vunpack.c.l.b16 %v5245
    %v5506 = vunpack.c.h.b16 %v5245
    %v5507 = vunpack.c.l.b16 %v5246
    %v5508 = vunpack.c.h.b16 %v5246
    %v5509 = vunpack.c.l.b16 %v5247
    %v5510 = vunpack.c.h.b16 %v5247
    %v5511 = vunpack.c.l.b16 %v5248
    %v5512 = vunpack.c.h.b16 %v5248
    %v5513 = vunpack.c.l.b16 %v5249
    %v5514 = vunpack.c.h.b16 %v5249
    %v5515 = vunpack.c.l.b16 %v5250
    %v5516 = vunpack.c.h.b16 %v5250
    %v5517 = vunpack.c.l.b16 %v5251
    %v5518 = vunpack.c.h.b16 %v5251
    %v5519 = vunpack.c.l.b16 %v5252
    %v5520 = vunpack.c.h.b16 %v5252
    %v5521 = vunpack.c.l.b16 %v5253
    %v5522 = vunpack.c.h.b16 %v5253
    %v5523 = vunpack.c.l.b16 %v5254
    %v5524 = vunpack.c.h.b16 %v5254
    %v5525 = vunpack.c.l.b16 %v5255
    %v5526 = vunpack.c.h.b16 %v5255
    %v5527 = vunpack.c.l.b16 %v5256
    %v5528 = vunpack.c.h.b16 %v5256
    %v5529 = vunpack.c.l.b16 %v5257
    %v5530 = vunpack.c.h.b16 %v5257
    %v5531 = vunpack.c.l.b16 %v5258
    %v5532 = vunpack.c.h.b16 %v5258
    %v5533 = vunpack.c.l.b16 %v5259
    %v5534 = vunpack.c.h.b16 %v5259
    %v5535 = vunpack.c.l.b16 %v5260
    %v5536 = vunpack.c.h.b16 %v5260
    %v5537 = vunpack.c.l.b16 %v5261
    %v5538 = vunpack.c.h.b16 %v5261
    %v5539 = vunpack.c.l.b16 %v5262
    %v5540 = vunpack.c.h.b16 %v5262
    %v5541 = vunpack.c.l.b16 %v5263
    %v5542 = vunpack.c.h.b16 %v5263
    %v5543 = vunpack.c.l.b16 %v5264
    %v5544 = vunpack.c.h.b16 %v5264
    %v5545 = vunpack.c.l.b16 %v5265
    %v5546 = vunpack.c.h.b16 %v5265
    %v5547 = vunpack.c.l.b16 %v5266
    %v5548 = vunpack.c.h.b16 %v5266
    %v5549 = vunpack.c.l.b16 %v5267
    %v5550 = vunpack.c.h.b16 %v5267
    %v5551 = vunpack.c.l.b16 %v5268
    %v5552 = vunpack.c.h.b16 %v5268
    %v5553 = vunpack.c.l.b16 %v5269
    %v5554 = vunpack.c.h.b16 %v5269
    %v5555 = vunpack.c.l.b16 %v5270
    %v5556 = vunpack.c.h.b16 %v5270
    %v5557 = vunpack.c.l.b16 %v5271
    %v5558 = vunpack.c.h.b16 %v5271
    %v5559 = vunpack.c.l.b16 %v5272
    %v5560 = vunpack.c.h.b16 %v5272
    %v5561 = vunpack.c.l.b16 %v5273
    %v5562 = vunpack.c.h.b16 %v5273
    %v5563 = vunpack.c.l.b16 %v5274
    %v5564 = vunpack.c.h.b16 %v5274
    %v5565 = vunpack.c.l.b16 %v5275
    %v5566 = vunpack.c.h.b16 %v5275
    %v5567 = vunpack.c.l.b16 %v5276
    %v5568 = vunpack.c.h.b16 %v5276
    %v5569 = vunpack.c.l.b16 %v5277
    %v5570 = vunpack.c.h.b16 %v5277
    %v5571 = vunpack.c.l.b16 %v5278
    %v5572 = vunpack.c.h.b16 %v5278
    %v5573 = vunpack.c.l.b16 %v5279
    %v5574 = vunpack.c.h.b16 %v5279
    %v5575 = vunpack.c.l.b16 %v5280
    %v5576 = vunpack.c.h.b16 %v5280
    %v5577 = vunpack.c.l.b16 %v5281
    %v5578 = vunpack.c.h.b16 %v5281
    %v5579 = vunpack.c.l.b16 %v5282
    %v5580 = vunpack.c.h.b16 %v5282
    %v5581 = vunpack.c.l.b16 %v5283
    %v5582 = vunpack.c.h.b16 %v5283
    %v5583 = vunpack.c.l.b16 %v5284
    %v5584 = vunpack.c.h.b16 %v5284
    %v5585 = vunpack.c.l.b16 %v5285
    %v5586 = vunpack.c.h.b16 %v5285
    %v5587 = vunpack.c.l.b16 %v5286
    %v5588 = vunpack.c.h.b16 %v5286
    %v5589 = vunpack.c.l.b16 %v5287
    %v5590 = vunpack.c.h.b16 %v5287
    %v5591 = vunpack.c.l.b16 %v5288
    %v5592 = vunpack.c.h.b16 %v5288
    %v5593 = vunpack.c.l.b16 %v5289
    %v5594 = vunpack.c.h.b16 %v5289
    %v5595 = vunpack.c.l.b16 %v5290
    %v5596 = vunpack.c.h.b16 %v5290
    %v5597 = vunpack.c.l.b16 %v5291
    %v5598 = vunpack.c.h.b16 %v5291
    %v5599 = vunpack.c.l.b16 %v5292
    %v5600 = vunpack.c.h.b16 %v5292
    %v5601 = vunpack.c.l.b16 %v5293
    %v5602 = vunpack.c.h.b16 %v5293
    %v5603 = vunpack.c.l.b16 %v5294
    %v5604 = vunpack.c.h.b16 %v5294
    %v5605 = vunpack.c.l.b16 %v5295
    %v5606 = vunpack.c.h.b16 %v5295
    %v5607 = vunpack.c.l.b16 %v5296
    %v5608 = vunpack.c.h.b16 %v5296
    %v5609 = vunpack.c.l.b16 %v5297
    %v5610 = vunpack.c.h.b16 %v5297
    %v5611 = vunpack.c.l.b16 %v5298
    %v5612 = vunpack.c.h.b16 %v5298
    %v5613 = vunpack.c.l.b16 %v5299
    %v5614 = vunpack.c.h.b16 %v5299
    %v5615 = vunpack.c.l.b16 %v5300
    %v5616 = vunpack.c.h.b16 %v5300
    %v5617 = vpack.c.b16 %v5421, %v5417
    %v5618 = vpack.c.b16 %v5422, %v5418
    %v5619 = vpack.c.b16 %v5423, %v5419
    %v5620 = vpack.c.b16 %v5424, %v5420
    %v5621 = vpack.c.b16 %v5429, %v5425
    %v5622 = vpack.c.b16 %v5430, %v5426
    %v5623 = vpack.c.b16 %v5431, %v5427
    %v5624 = vpack.c.b16 %v5432, %v5428
    %v5625 = vpack.c.b16 %v5437, %v5433
    %v5626 = vpack.c.b16 %v5438, %v5434
    %v5627 = vpack.c.b16 %v5439, %v5435
    %v5628 = vpack.c.b16 %v5440, %v5436
    %v5629 = vpack.c.b16 %v5445, %v5441
    %v5630 = vpack.c.b16 %v5446, %v5442
    %v5631 = vpack.c.b16 %v5447, %v5443
    %v5632 = vpack.c.b16 %v5448, %v5444
    %v5633 = vpack.c.b16 %v5453, %v5449
    %v5634 = vpack.c.b16 %v5454, %v5450
    %v5635 = vpack.c.b16 %v5455, %v5451
    %v5636 = vpack.c.b16 %v5456, %v5452
    %v5637 = vpack.c.b16 %v5461, %v5457
    %v5638 = vpack.c.b16 %v5462, %v5458
    %v5639 = vpack.c.b16 %v5463, %v5459
    %v5640 = vpack.c.b16 %v5464, %v5460
    %v5641 = vpack.c.b16 %v5469, %v5465
    %v5642 = vpack.c.b16 %v5470, %v5466
    %v5643 = vpack.c.b16 %v5471, %v5467
    %v5644 = vpack.c.b16 %v5472, %v5468
    %v5645 = vpack.c.b16 %v5477, %v5473
    %v5646 = vpack.c.b16 %v5478, %v5474
    %v5647 = vpack.c.b16 %v5479, %v5475
    %v5648 = vpack.c.b16 %v5480, %v5476
    %v5649 = vpack.c.b16 %v5485, %v5481
    %v5650 = vpack.c.b16 %v5486, %v5482
    %v5651 = vpack.c.b16 %v5487, %v5483
    %v5652 = vpack.c.b16 %v5488, %v5484
    %v5653 = vpack.c.b16 %v5493, %v5489
    %v5654 = vpack.c.b16 %v5494, %v5490
    %v5655 = vpack.c.b16 %v5495, %v5491
    %v5656 = vpack.c.b16 %v5496, %v5492
    %v5657 = vpack.c.b16 %v5501, %v5497
    %v5658 = vpack.c.b16 %v5502, %v5498
    %v5659 = vpack.c.b16 %v5503, %v5499
    %v5660 = vpack.c.b16 %v5504, %v5500
    %v5661 = vpack.c.b16 %v5509, %v5505
    %v5662 = vpack.c.b16 %v5510, %v5506
    %v5663 = vpack.c.b16 %v5511, %v5507
    %v5664 = vpack.c.b16 %v5512, %v5508
    %v5665 = vpack.c.b16 %v5517, %v5513
    %v5666 = vpack.c.b16 %v5518, %v5514
    %v5667 = vpack.c.b16 %v5519, %v5515
    %v5668 = vpack.c.b16 %v5520, %v5516
    %v5669 = vpack.c.b16 %v5525, %v5521
    %v5670 = vpack.c.b16 %v5526, %v5522
    %v5671 = vpack.c.b16 %v5527, %v5523
    %v5672 = vpack.c.b16 %v5528, %v5524
    %v5673 = vpack.c.b16 %v5533, %v5529
    %v5674 = vpack.c.b16 %v5534, %v5530
    %v5675 = vpack.c.b16 %v5535, %v5531
    %v5676 = vpack.c.b16 %v5536, %v5532
    %v5677 = vpack.c.b16 %v5541, %v5537
    %v5678 = vpack.c.b16 %v5542, %v5538
    %v5679 = vpack.c.b16 %v5543, %v5539
    %v5680 = vpack.c.b16 %v5544, %v5540
    %v5681 = vpack.c.b16 %v5549, %v5545
    %v5682 = vpack.c.b16 %v5550, %v5546
    %v5683 = vpack.c.b16 %v5551, %v5547
    %v5684 = vpack.c.b16 %v5552, %v5548
    %v5685 = vpack.c.b16 %v5557, %v5553
    %v5686 = vpack.c.b16 %v5558, %v5554
    %v5687 = vpack.c.b16 %v5559, %v5555
    %v5688 = vpack.c.b16 %v5560, %v5556
    %v5689 = vpack.c.b16 %v5565, %v5561
    %v5690 = vpack.c.b16 %v5566, %v5562
    %v5691 = vpack.c.b16 %v5567, %v5563
    %v5692 = vpack.c.b16 %v5568, %v5564
    %v5693 = vpack.c.b16 %v5573, %v5569
    %v5694 = vpack.c.b16 %v5574, %v5570
    %v5695 = vpack.c.b16 %v5575, %v5571
    %v5696 = vpack.c.b16 %v5576, %v5572
    %v5697 = vpack.c.b16 %v5581, %v5577
    %v5698 = vpack.c.b16 %v5582, %v5578
    %v5699 = vpack.c.b16 %v5583, %v5579
    %v5700 = vpack.c.b16 %v5584, %v5580
    %v5701 = vpack.c.b16 %v5589, %v5585
    %v5702 = vpack.c.b16 %v5590, %v5586
    %v5703 = vpack.c.b16 %v5591, %v5587
    %v5704 = vpack.c.b16 %v5592, %v5588
    %v5705 = vpack.c.b16 %v5597, %v5593
    %v5706 = vpack.c.b16 %v5598, %v5594
    %v5707 = vpack.c.b16 %v5599, %v5595
    %v5708 = vpack.c.b16 %v5600, %v5596
    %v5709 = vpack.c.b16 %v5605, %v5601
    %v5710 = vpack.c.b16 %v5606, %v5602
    %v5711 = vpack.c.b16 %v5607, %v5603
    %v5712 = vpack.c.b16 %v5608, %v5604
    %v5713 = vpack.c.b16 %v5613, %v5609
    %v5714 = vpack.c.b16 %v5614, %v5610
    %v5715 = vpack.c.b16 %v5615, %v5611
    %v5716 = vpack.c.b16 %v5616, %v5612
    %v5818 = vsel %vm826, %v5199, 0
    %5820 = vmatpush.bf16.msra.mxu0 %v5645
    %5821 = vmatpush.bf16.msra.mxu0 %v5641
    %5822 = vmatpush.bf16.msra.mxu0 %v5637
    %5823 = vmatpush.bf16.msra.mxu0 %v5633
    %5824 = vmatpush.bf16.msra.mxu0 %v5629
    %5825 = vmatpush.bf16.msra.mxu0 %v5625
    %5826 = vmatpush.bf16.msra.mxu0 %v5621
    %5827 = vmatpush.bf16.msra.mxu0 %v5617
    %5828 = vmatmul.bf16.gmra.mxu0 %v5196
    %v5829 = vpop.f32.mrf.mxu0
    %v5830 = vadd.f32 %v5313, %v5829
    %v5831 = vpop.f32.mrf.mxu0
    %5832 = vdwg.mxu0
    %5833 = vmatpush.bf16.msra.mxu0 %v5677
    %5834 = vmatpush.bf16.msra.mxu0 %v5673
    %5835 = vmatpush.bf16.msra.mxu0 %v5669
    %5836 = vmatpush.bf16.msra.mxu0 %v5665
    %5837 = vmatpush.bf16.msra.mxu0 %v5661
    %5838 = vmatpush.bf16.msra.mxu0 %v5657
    %5839 = vmatpush.bf16.msra.mxu0 %v5653
    %5840 = vmatpush.bf16.msra.mxu0 %v5649
    %5841 = vmatmul.bf16.gmra.mxu0 %v5197
    %v5842 = vpop.f32.mrf.mxu0
    %v5843 = vadd.f32 %v5830, %v5842
    %v5844 = vpop.f32.mrf.mxu0
    %5845 = vdwg.mxu0
    %5846 = vmatpush.bf16.msra.mxu0 %v5709
    %5847 = vmatpush.bf16.msra.mxu0 %v5705
    %5848 = vmatpush.bf16.msra.mxu0 %v5701
    %5849 = vmatpush.bf16.msra.mxu0 %v5697
    %5850 = vmatpush.bf16.msra.mxu0 %v5693
    %5851 = vmatpush.bf16.msra.mxu0 %v5689
    %5852 = vmatpush.bf16.msra.mxu0 %v5685
    %5853 = vmatpush.bf16.msra.mxu0 %v5681
    %5854 = vmatmul.bf16.gmra.mxu0 %v5198
    %v5855 = vpop.f32.mrf.mxu0
    %v5856 = vadd.f32 %v5843, %v5855
    %v5857 = vpop.f32.mrf.mxu0
    %5858 = vdwg.mxu0
    %5859 = vmatpush.bf16.msra.mxu0 0
    %5860 = vmatpush.bf16.msra.mxu0 0
    %5861 = vmatpush.bf16.msra.mxu0 0
    %5862 = vmatpush.bf16.msra.mxu0 0
    %5863 = vmatpush.bf16.msra.mxu0 0
    %5864 = vmatpush.bf16.msra.mxu0 0
    %5865 = vmatpush.bf16.msra.mxu0 0
    %5866 = vmatpush.bf16.msra.mxu0 %v5713
    %5867 = vmatmul.bf16.gmra.mxu0 %v5818
    %v5868 = vpop.f32.mrf.mxu0
    %v5869 = vadd.f32 %v5856, %v5868
    %v5870 = vpop.f32.mrf.mxu0
    %5871 = vdwg.mxu0
    %5872 = vmatpush.bf16.msra.mxu0 %v5646
    %5873 = vmatpush.bf16.msra.mxu0 %v5642
    %5874 = vmatpush.bf16.msra.mxu0 %v5638
    %5875 = vmatpush.bf16.msra.mxu0 %v5634
    %5876 = vmatpush.bf16.msra.mxu0 %v5630
    %5877 = vmatpush.bf16.msra.mxu0 %v5626
    %5878 = vmatpush.bf16.msra.mxu0 %v5622
    %5879 = vmatpush.bf16.msra.mxu0 %v5618
    %5880 = vmatmul.bf16.gmra.mxu0 %v5196
    %v5881 = vpop.f32.mrf.mxu0
    %v5882 = vadd.f32 %v5314, %v5881
    %v5883 = vpop.f32.mrf.mxu0
    %5884 = vdwg.mxu0
    %5885 = vmatpush.bf16.msra.mxu0 %v5678
    %5886 = vmatpush.bf16.msra.mxu0 %v5674
    %5887 = vmatpush.bf16.msra.mxu0 %v5670
    %5888 = vmatpush.bf16.msra.mxu0 %v5666
    %5889 = vmatpush.bf16.msra.mxu0 %v5662
    %5890 = vmatpush.bf16.msra.mxu0 %v5658
    %5891 = vmatpush.bf16.msra.mxu0 %v5654
    %5892 = vmatpush.bf16.msra.mxu0 %v5650
    %5893 = vmatmul.bf16.gmra.mxu0 %v5197
    %v5894 = vpop.f32.mrf.mxu0
    %v5895 = vadd.f32 %v5882, %v5894
    %v5896 = vpop.f32.mrf.mxu0
    %5897 = vdwg.mxu0
    %5898 = vmatpush.bf16.msra.mxu0 %v5710
    %5899 = vmatpush.bf16.msra.mxu0 %v5706
    %5900 = vmatpush.bf16.msra.mxu0 %v5702
    %5901 = vmatpush.bf16.msra.mxu0 %v5698
    %5902 = vmatpush.bf16.msra.mxu0 %v5694
    %5903 = vmatpush.bf16.msra.mxu0 %v5690
    %5904 = vmatpush.bf16.msra.mxu0 %v5686
    %5905 = vmatpush.bf16.msra.mxu0 %v5682
    %5906 = vmatmul.bf16.gmra.mxu0 %v5198
    %v5907 = vpop.f32.mrf.mxu0
    %v5908 = vadd.f32 %v5895, %v5907
    %v5909 = vpop.f32.mrf.mxu0
    %5910 = vdwg.mxu0
    %5911 = vmatpush.bf16.msra.mxu0 0
    %5912 = vmatpush.bf16.msra.mxu0 0
    %5913 = vmatpush.bf16.msra.mxu0 0
    %5914 = vmatpush.bf16.msra.mxu0 0
    %5915 = vmatpush.bf16.msra.mxu0 0
    %5916 = vmatpush.bf16.msra.mxu0 0
    %5917 = vmatpush.bf16.msra.mxu0 0
    %5918 = vmatpush.bf16.msra.mxu0 %v5714
    %5919 = vmatmul.bf16.gmra.mxu0 %v5818
    %v5920 = vpop.f32.mrf.mxu0
    %v5921 = vadd.f32 %v5908, %v5920
    %v5922 = vpop.f32.mrf.mxu0
    %5923 = vdwg.mxu0
    %5924 = vmatpush.bf16.msra.mxu0 %v5647
    %5925 = vmatpush.bf16.msra.mxu0 %v5643
    %5926 = vmatpush.bf16.msra.mxu0 %v5639
    %5927 = vmatpush.bf16.msra.mxu0 %v5635
    %5928 = vmatpush.bf16.msra.mxu0 %v5631
    %5929 = vmatpush.bf16.msra.mxu0 %v5627
    %5930 = vmatpush.bf16.msra.mxu0 %v5623
    %5931 = vmatpush.bf16.msra.mxu0 %v5619
    %5932 = vmatmul.bf16.gmra.mxu0 %v5196
    %v5933 = vpop.f32.mrf.mxu0
    %v5934 = vadd.f32 %v5315, %v5933
    %v5935 = vpop.f32.mrf.mxu0
    %5936 = vdwg.mxu0
    %5937 = vmatpush.bf16.msra.mxu0 %v5679
    %5938 = vmatpush.bf16.msra.mxu0 %v5675
    %5939 = vmatpush.bf16.msra.mxu0 %v5671
    %5940 = vmatpush.bf16.msra.mxu0 %v5667
    %5941 = vmatpush.bf16.msra.mxu0 %v5663
    %5942 = vmatpush.bf16.msra.mxu0 %v5659
    %5943 = vmatpush.bf16.msra.mxu0 %v5655
    %5944 = vmatpush.bf16.msra.mxu0 %v5651
    %5945 = vmatmul.bf16.gmra.mxu0 %v5197
    %v5946 = vpop.f32.mrf.mxu0
    %v5947 = vadd.f32 %v5934, %v5946
    %v5948 = vpop.f32.mrf.mxu0
    %5949 = vdwg.mxu0
    %5950 = vmatpush.bf16.msra.mxu0 %v5711
    %5951 = vmatpush.bf16.msra.mxu0 %v5707
    %5952 = vmatpush.bf16.msra.mxu0 %v5703
    %5953 = vmatpush.bf16.msra.mxu0 %v5699
    %5954 = vmatpush.bf16.msra.mxu0 %v5695
    %5955 = vmatpush.bf16.msra.mxu0 %v5691
    %5956 = vmatpush.bf16.msra.mxu0 %v5687
    %5957 = vmatpush.bf16.msra.mxu0 %v5683
    %5958 = vmatmul.bf16.gmra.mxu0 %v5198
    %v5959 = vpop.f32.mrf.mxu0
    %v5960 = vadd.f32 %v5947, %v5959
    %v5961 = vpop.f32.mrf.mxu0
    %5962 = vdwg.mxu0
    %5963 = vmatpush.bf16.msra.mxu0 0
    %5964 = vmatpush.bf16.msra.mxu0 0
    %5965 = vmatpush.bf16.msra.mxu0 0
    %5966 = vmatpush.bf16.msra.mxu0 0
    %5967 = vmatpush.bf16.msra.mxu0 0
    %5968 = vmatpush.bf16.msra.mxu0 0
    %5969 = vmatpush.bf16.msra.mxu0 0
    %5970 = vmatpush.bf16.msra.mxu0 %v5715
    %5971 = vmatmul.bf16.gmra.mxu0 %v5818
    %v5972 = vpop.f32.mrf.mxu0
    %v5973 = vadd.f32 %v5960, %v5972
    %v5974 = vpop.f32.mrf.mxu0
    %5975 = vdwg.mxu0
    %5976 = vmatpush.bf16.msra.mxu0 %v5648
    %5977 = vmatpush.bf16.msra.mxu0 %v5644
    %5978 = vmatpush.bf16.msra.mxu0 %v5640
    %5979 = vmatpush.bf16.msra.mxu0 %v5636
    %5980 = vmatpush.bf16.msra.mxu0 %v5632
    %5981 = vmatpush.bf16.msra.mxu0 %v5628
    %5982 = vmatpush.bf16.msra.mxu0 %v5624
    %5983 = vmatpush.bf16.msra.mxu0 %v5620
    %5984 = vmatmul.bf16.gmra.mxu0 %v5196
    %v5985 = vpop.f32.mrf.mxu0
    %v5986 = vadd.f32 %v5316, %v5985
    %v5987 = vpop.f32.mrf.mxu0
    %5988 = vdwg.mxu0
    %5989 = vmatpush.bf16.msra.mxu0 %v5680
    %5990 = vmatpush.bf16.msra.mxu0 %v5676
    %5991 = vmatpush.bf16.msra.mxu0 %v5672
    %5992 = vmatpush.bf16.msra.mxu0 %v5668
    %5993 = vmatpush.bf16.msra.mxu0 %v5664
    %5994 = vmatpush.bf16.msra.mxu0 %v5660
    %5995 = vmatpush.bf16.msra.mxu0 %v5656
    %5996 = vmatpush.bf16.msra.mxu0 %v5652
    %5997 = vmatmul.bf16.gmra.mxu0 %v5197
    %v5998 = vpop.f32.mrf.mxu0
    %v5999 = vadd.f32 %v5986, %v5998
    %v6000 = vpop.f32.mrf.mxu0
    %6001 = vdwg.mxu0
    %6002 = vmatpush.bf16.msra.mxu0 %v5712
    %6003 = vmatpush.bf16.msra.mxu0 %v5708
    %6004 = vmatpush.bf16.msra.mxu0 %v5704
    %6005 = vmatpush.bf16.msra.mxu0 %v5700
    %6006 = vmatpush.bf16.msra.mxu0 %v5696
    %6007 = vmatpush.bf16.msra.mxu0 %v5692
    %6008 = vmatpush.bf16.msra.mxu0 %v5688
    %6009 = vmatpush.bf16.msra.mxu0 %v5684
    %6010 = vmatmul.bf16.gmra.mxu0 %v5198
    %v6011 = vpop.f32.mrf.mxu0
    %v6012 = vadd.f32 %v5999, %v6011
    %v6013 = vpop.f32.mrf.mxu0
    %6014 = vdwg.mxu0
    %6015 = vmatpush.bf16.msra.mxu0 0
    %6016 = vmatpush.bf16.msra.mxu0 0
    %6017 = vmatpush.bf16.msra.mxu0 0
    %6018 = vmatpush.bf16.msra.mxu0 0
    %6019 = vmatpush.bf16.msra.mxu0 0
    %6020 = vmatpush.bf16.msra.mxu0 0
    %6021 = vmatpush.bf16.msra.mxu0 0
    %6022 = vmatpush.bf16.msra.mxu0 %v5716
    %6023 = vmatmul.bf16.gmra.mxu0 %v5818
    %v6024 = vpop.f32.mrf.mxu0
    %v6025 = vadd.f32 %v6012, %v6024
    %v6026 = vpop.f32.mrf.mxu0
    %6027 = vdwg.mxu0
    %v6028 = vmax.f32 %v5869, 0.0
    %v6029 = vmax.f32 %v5921, 0.0
    %v6030 = vmax.f32 %v5973, 0.0
    %v6031 = vmax.f32 %v6025, 0.0
    %v6032 = vpack.c.bf16 %v6028, %v6028
    %v6033 = vpack.c.bf16 %v6029, %v6029
    %v6034 = vpack.c.bf16 %v6030, %v6030
    %v6035 = vpack.c.bf16 %v6031, %v6031
    %s6036 = scalar_lea.vmem %s7, 400
    %v6037 = vld [vmem:[%s6036] sm:$0xf]
    %v6038 = vld [vmem:[%s6036 + $0x4] sm:$0xf]
    %v6039 = vld [vmem:[%s6036 + $0x8] sm:$0xf]
    %v6040 = vld [vmem:[%s6036 + $0xc] sm:$0xf]
    %v6041 = vld [vmem:[%s6036 + $0x10] sm:$0xf]
    %v6042 = vld [vmem:[%s6036 + $0x14] sm:$0xf]
    %v6043 = vld [vmem:[%s6036 + $0x18] sm:$0xf]
    %v6044 = vld [vmem:[%s6036 + $0x1c] sm:$0xf]
    %v6045 = vld [vmem:[%s6036 + $0x20] sm:$0xf]
    %v6046 = vld [vmem:[%s6036 + $0x24] sm:$0xf]
    %v6047 = vld [vmem:[%s6036 + $0x28] sm:$0xf]
    %v6048 = vld [vmem:[%s6036 + $0x2c] sm:$0xf]
    %v6049 = vld [vmem:[%s6036 + $0x30] sm:$0xf]
    %v6050 = vld [vmem:[%s6036 + $0x34] sm:$0xf]
    %v6051 = vld [vmem:[%s6036 + $0x38] sm:$0xf]
    %v6052 = vld [vmem:[%s6036 + $0x3c] sm:$0xf]
    %v6053 = vld [vmem:[%s6036 + $0x40] sm:$0xf]
    %v6054 = vld [vmem:[%s6036 + $0x44] sm:$0xf]
    %v6055 = vld [vmem:[%s6036 + $0x48] sm:$0xf]
    %v6056 = vld [vmem:[%s6036 + $0x4c] sm:$0xf]
    %v6057 = vld [vmem:[%s6036 + $0x50] sm:$0xf]
    %v6058 = vld [vmem:[%s6036 + $0x54] sm:$0xf]
    %v6059 = vld [vmem:[%s6036 + $0x58] sm:$0xf]
    %v6060 = vld [vmem:[%s6036 + $0x5c] sm:$0xf]
    %v6061 = vld [vmem:[%s6036 + $0x60] sm:$0xf]
    %v6062 = vld [vmem:[%s6036 + $0x64] sm:$0xf]
    %v6063 = vld [vmem:[%s6036 + $0x68] sm:$0xf]
    %v6064 = vld [vmem:[%s6036 + $0x6c] sm:$0xf]
    %v6065 = vld [vmem:[%s6036 + $0x70] sm:$0xf]
    %v6066 = vld [vmem:[%s6036 + $0x74] sm:$0xf]
    %v6067 = vld [vmem:[%s6036 + $0x78] sm:$0xf]
    %v6068 = vld [vmem:[%s6036 + $0x7c] sm:$0xf]
    %v6069 = vld [vmem:[%s6036 + $0x80] sm:$0xf]
    %v6070 = vld [vmem:[%s6036 + $0x84] sm:$0xf]
    %v6071 = vld [vmem:[%s6036 + $0x88] sm:$0xf]
    %v6072 = vld [vmem:[%s6036 + $0x8c] sm:$0xf]
    %v6073 = vld [vmem:[%s6036 + $0x90] sm:$0xf]
    %v6074 = vld [vmem:[%s6036 + $0x94] sm:$0xf]
    %v6075 = vld [vmem:[%s6036 + $0x98] sm:$0xf]
    %v6076 = vld [vmem:[%s6036 + $0x9c] sm:$0xf]
    %v6077 = vld [vmem:[%s6036 + $0xa0] sm:$0xf]
    %v6078 = vld [vmem:[%s6036 + $0xa4] sm:$0xf]
    %v6079 = vld [vmem:[%s6036 + $0xa8] sm:$0xf]
    %v6080 = vld [vmem:[%s6036 + $0xac] sm:$0xf]
    %v6081 = vld [vmem:[%s6036 + $0xb0] sm:$0xf]
    %v6082 = vld [vmem:[%s6036 + $0xb4] sm:$0xf]
    %v6083 = vld [vmem:[%s6036 + $0xb8] sm:$0xf]
    %v6084 = vld [vmem:[%s6036 + $0xbc] sm:$0xf]
    %v6085 = vld [vmem:[%s6036 + $0xc0] sm:$0xf]
    %v6086 = vld [vmem:[%s6036 + $0xc4] sm:$0xf]
    %s6087 = scalar_lea.vmem %s8, 2
    %v6088 = vld [vmem:[%s6087] sm:$0x1]
    %v6089 = vunpack.c.l.bf16 %v6088
    %v6090 = vperm.slane %v6089, 0
    %v6141 = vunpack.c.l.b16 %v6037
    %v6142 = vunpack.c.l.b16 %v6038
    %v6143 = vunpack.c.l.b16 %v6039
    %v6144 = vunpack.c.l.b16 %v6040
    %v6145 = vunpack.c.l.b16 %v6041
    %v6146 = vunpack.c.l.b16 %v6042
    %v6147 = vunpack.c.l.b16 %v6043
    %v6148 = vunpack.c.l.b16 %v6044
    %v6149 = vunpack.c.l.b16 %v6045
    %v6150 = vunpack.c.l.b16 %v6046
    %v6151 = vunpack.c.l.b16 %v6047
    %v6152 = vunpack.c.l.b16 %v6048
    %v6153 = vunpack.c.l.b16 %v6049
    %v6154 = vunpack.c.l.b16 %v6050
    %v6155 = vunpack.c.l.b16 %v6051
    %v6156 = vunpack.c.l.b16 %v6052
    %v6157 = vunpack.c.l.b16 %v6053
    %v6158 = vunpack.c.l.b16 %v6054
    %v6159 = vunpack.c.l.b16 %v6055
    %v6160 = vunpack.c.l.b16 %v6056
    %v6161 = vunpack.c.l.b16 %v6057
    %v6162 = vunpack.c.l.b16 %v6058
    %v6163 = vunpack.c.l.b16 %v6059
    %v6164 = vunpack.c.l.b16 %v6060
    %v6165 = vunpack.c.l.b16 %v6061
    %v6166 = vunpack.c.l.b16 %v6062
    %v6167 = vunpack.c.l.b16 %v6063
    %v6168 = vunpack.c.l.b16 %v6064
    %v6169 = vunpack.c.l.b16 %v6065
    %v6170 = vunpack.c.l.b16 %v6066
    %v6171 = vunpack.c.l.b16 %v6067
    %v6172 = vunpack.c.l.b16 %v6068
    %v6173 = vunpack.c.l.b16 %v6069
    %v6174 = vunpack.c.l.b16 %v6070
    %v6175 = vunpack.c.l.b16 %v6071
    %v6176 = vunpack.c.l.b16 %v6072
    %v6177 = vunpack.c.l.b16 %v6073
    %v6178 = vunpack.c.l.b16 %v6074
    %v6179 = vunpack.c.l.b16 %v6075
    %v6180 = vunpack.c.l.b16 %v6076
    %v6181 = vunpack.c.l.b16 %v6077
    %v6182 = vunpack.c.l.b16 %v6078
    %v6183 = vunpack.c.l.b16 %v6079
    %v6184 = vunpack.c.l.b16 %v6080
    %v6185 = vunpack.c.l.b16 %v6081
    %v6186 = vunpack.c.l.b16 %v6082
    %v6187 = vunpack.c.l.b16 %v6083
    %v6188 = vunpack.c.l.b16 %v6084
    %v6189 = vunpack.c.l.b16 %v6085
    %v6190 = vunpack.c.l.b16 %v6086
    %v6191 = vpack.c.b16 %v6142, %v6141
    %v6192 = vpack.c.b16 %v6144, %v6143
    %v6193 = vpack.c.b16 %v6146, %v6145
    %v6194 = vpack.c.b16 %v6148, %v6147
    %v6195 = vpack.c.b16 %v6150, %v6149
    %v6196 = vpack.c.b16 %v6152, %v6151
    %v6197 = vpack.c.b16 %v6154, %v6153
    %v6198 = vpack.c.b16 %v6156, %v6155
    %v6199 = vpack.c.b16 %v6158, %v6157
    %v6200 = vpack.c.b16 %v6160, %v6159
    %v6201 = vpack.c.b16 %v6162, %v6161
    %v6202 = vpack.c.b16 %v6164, %v6163
    %v6203 = vpack.c.b16 %v6166, %v6165
    %v6204 = vpack.c.b16 %v6168, %v6167
    %v6205 = vpack.c.b16 %v6170, %v6169
    %v6206 = vpack.c.b16 %v6172, %v6171
    %v6207 = vpack.c.b16 %v6174, %v6173
    %v6208 = vpack.c.b16 %v6176, %v6175
    %v6209 = vpack.c.b16 %v6178, %v6177
    %v6210 = vpack.c.b16 %v6180, %v6179
    %v6211 = vpack.c.b16 %v6182, %v6181
    %v6212 = vpack.c.b16 %v6184, %v6183
    %v6213 = vpack.c.b16 %v6186, %v6185
    %v6214 = vpack.c.b16 %v6188, %v6187
    %v6215 = vpack.c.b16 %v6190, %v6189
    %v6242 = vsel %vm826, %v6035, 0
    %6244 = vmatpush.bf16.msra.mxu0 %v6198
    %6245 = vmatpush.bf16.msra.mxu0 %v6197
    %6246 = vmatpush.bf16.msra.mxu0 %v6196
    %6247 = vmatpush.bf16.msra.mxu0 %v6195
    %6248 = vmatpush.bf16.msra.mxu0 %v6194
    %6249 = vmatpush.bf16.msra.mxu0 %v6193
    %6250 = vmatpush.bf16.msra.mxu0 %v6192
    %6251 = vmatpush.bf16.msra.mxu0 %v6191
    %6252 = vmatmul.bf16.gmra.mxu0 %v6032
    %v6253 = vpop.f32.mrf.mxu0
    %v6254 = vadd.f32 %v6090, %v6253
    %v6255 = vpop.f32.mrf.mxu0
    %6256 = vdwg.mxu0
    %6257 = vmatpush.bf16.msra.mxu0 %v6206
    %6258 = vmatpush.bf16.msra.mxu0 %v6205
    %6259 = vmatpush.bf16.msra.mxu0 %v6204
    %6260 = vmatpush.bf16.msra.mxu0 %v6203
    %6261 = vmatpush.bf16.msra.mxu0 %v6202
    %6262 = vmatpush.bf16.msra.mxu0 %v6201
    %6263 = vmatpush.bf16.msra.mxu0 %v6200
    %6264 = vmatpush.bf16.msra.mxu0 %v6199
    %6265 = vmatmul.bf16.gmra.mxu0 %v6033
    %v6266 = vpop.f32.mrf.mxu0
    %v6267 = vadd.f32 %v6254, %v6266
    %v6268 = vpop.f32.mrf.mxu0
    %6269 = vdwg.mxu0
    %6270 = vmatpush.bf16.msra.mxu0 %v6214
    %6271 = vmatpush.bf16.msra.mxu0 %v6213
    %6272 = vmatpush.bf16.msra.mxu0 %v6212
    %6273 = vmatpush.bf16.msra.mxu0 %v6211
    %6274 = vmatpush.bf16.msra.mxu0 %v6210
    %6275 = vmatpush.bf16.msra.mxu0 %v6209
    %6276 = vmatpush.bf16.msra.mxu0 %v6208
    %6277 = vmatpush.bf16.msra.mxu0 %v6207
    %6278 = vmatmul.bf16.gmra.mxu0 %v6034
    %v6279 = vpop.f32.mrf.mxu0
    %v6280 = vadd.f32 %v6267, %v6279
    %v6281 = vpop.f32.mrf.mxu0
    %6282 = vdwg.mxu0
    %6283 = vmatpush.bf16.msra.mxu0 0
    %6284 = vmatpush.bf16.msra.mxu0 0
    %6285 = vmatpush.bf16.msra.mxu0 0
    %6286 = vmatpush.bf16.msra.mxu0 0
    %6287 = vmatpush.bf16.msra.mxu0 0
    %6288 = vmatpush.bf16.msra.mxu0 0
    %6289 = vmatpush.bf16.msra.mxu0 0
    %6290 = vmatpush.bf16.msra.mxu0 %v6215
    %6291 = vmatmul.bf16.gmra.mxu0 %v6242
    %v6292 = vpop.f32.mrf.mxu0
    %v6293 = vadd.f32 %v6280, %v6292
    %v6294 = vpop.f32.mrf.mxu0
    %6295 = vdwg.mxu0
    %v6296 = vsub.f32 %v2139, %v6293
    %v6297 = vmax.f32 %v6296, 0.0
    %vm6298 = vcmp.ne.f32.partialorder %v6296, %v6296
    %v6299 = vadd.f32 %v6296, 0.0
    %v6300 = vand.u32 2147483647, %v6296
    %v6301 = vsub.f32 0.0, %v6300
    %v6302 = vmul.f32 %v6301, 1.442695
    %v6303 = vpow.pop %v6302
    %v6304 = vadd.f32 %v6303, 1.0
    %v6305 = vlog2.pop %v6304
    %v6306 = vmul.f32 %v6305, 0.6931472
    %v6307 = vmul.f32 -0.5, %v6303
    %v6308 = vadd.f32 %v6307, 1.0
    %v6309 = vmul.f32 %v6308, %v6303
    %v6310 = vand.u32 2147483647, %v6303
    %vm6311 = vcmp.lt.f32.partialorder %v6310, 0.0004427343
    %v6312 = vsel %vm6311, %v6309, %v6306
    %v6313 = vadd.f32 %v6297, %v6312
    %v6314 = vsel %vm6298, %v6299, %v6313
    %v6315 = vsub.f32 %v2139, %v6314
    %v6316 = vsub.f32 %v6315, %v2162
    %v6317 = vmax.f32 %v6316, 0.0
    %vm6318 = vcmp.ne.f32.partialorder %v6316, %v6316
    %v6319 = vadd.f32 %v6316, 0.0
    %v6320 = vand.u32 2147483647, %v6316
    %v6321 = vsub.f32 0.0, %v6320
    %v6322 = vmul.f32 %v6321, 1.442695
    %v6323 = vpow.pop %v6322
    %v6324 = vadd.f32 %v6323, 1.0
    %v6325 = vlog2.pop %v6324
    %v6326 = vmul.f32 %v6325, 0.6931472
    %v6327 = vmul.f32 -0.5, %v6323
    %v6328 = vadd.f32 %v6327, 1.0
    %v6329 = vmul.f32 %v6328, %v6323
    %v6330 = vand.u32 2147483647, %v6323
    %vm6331 = vcmp.lt.f32.partialorder %v6330, 0.0004427343
    %v6332 = vsel %vm6331, %v6329, %v6326
    %v6333 = vadd.f32 %v6317, %v6332
    %v6334 = vsel %vm6318, %v6319, %v6333
    %v6335 = vadd.f32 %v2162, %v6334
    %v6336 = vsel %vm106, %v6335, %v6293
    %s6337 = scalar_lea.vmem %s11, 16
    %6338 = vst.msk [vmem:[%s6337] sm:$0xff] %vm2185, %v6336
    // Predicated region
    $region62: #{penn_forward.1} parent=1 // pred_check
      _
    $region63: #{penn_forward.1} parent=1 // pred_check_branch
      %6340 = sbr.rel (0) target = $region65
    $region64: #{penn_forward.1} parent=1 // pred_region
      _
    $region65: #{penn_forward.1} parent=1 // pred_fallthru
      _
    // Predicated region
    $region66: #{penn_forward.1} parent=1 // pred_check
      _
    $region67: #{penn_forward.1} parent=1 // pred_check_branch
      %6342 = sbr.rel (0) target = $region69
    $region68: #{penn_forward.1} parent=1 // pred_region
      _
    $region69: #{penn_forward.1} parent=1 // pred_fallthru
      _
    %6343 = vsyncpa [#allocation3], 1
    %6344 = vsyncpa [#allocation5], 1
    %6345 = vsyncpa [#allocation8], 1

</llo_original>
